<compile_context>
chip_gen: v6e
topology: v6e:2x2x1
jax: 0.10.0
libtpu: 0.0.40
codegen_flags: <defaults>
</compile_context>

<pallas_src>
import functools

import jax
import jax.numpy as jnp
import numpy as np
from jax import lax
from jax.experimental import pallas as pl
from jax.experimental.pallas import tpu as pltpu


# ---------------------------------------------------------------------------
# Fused Pallas kernel: gnn1 -> activation -> gnn2, everything VMEM-resident.
#   x_ref     : [Np, Fp]   node features (zero padded)
#   w1_ref    : [Fp, Hp]   layer-1 weight (zero padded)
#   b1_ref    : [1,  Hp]   layer-1 bias
#   w2_ref    : [Hp, Op]   layer-2 weight (zero padded)
#   b2_ref    : [1,  Op]   layer-2 bias
#   a_hbm_ref : [Np, Np]   (1-alpha) * D^-1/2 (A + I) D^-1/2, already in
#                          matmul_dtype, left in HBM (pl.ANY) and DMA'd here
#   o_ref     : [Np, Op]   output (lane-dense, Op multiple of 128)
#   a_vmem    : [Np, Np]   VMEM scratch receiving the A DMA
#   a_sem     : DMA semaphore for the A copy
# ---------------------------------------------------------------------------
def fused_model_kernel(x_ref, w1_ref, b1_ref, w2_ref, b2_ref, a_hbm_ref,
                       o_ref, a_vmem, a_sem,
                       *, K, alpha, activation, matmul_dtype):
    # Kick off the dominant N^2 transfer immediately; overlap it with layer-1's
    # dense linear and the alpha*h hoist.
    a_copy = pltpu.make_async_copy(a_hbm_ref, a_vmem, a_sem)
    a_copy.start()

    def linear(x, w_ref, b_ref):
        return jnp.dot(x.astype(matmul_dtype), w_ref[...].astype(matmul_dtype),
                       preferred_element_type=jnp.float32) + b_ref[...]

    h1 = linear(x_ref[...], w1_ref, b1_ref)
    ah1 = alpha * h1                     # hoisted out of the K-step loop

    a_copy.wait()                        # A first needed by the propagation
    a_hat = a_vmem[...]                  # pre-scaled by (1-alpha), matmul_dtype

    def propagate(h, ah):
        z = h
        for _ in range(K):               # K static (=10): unrolled matmul chain
            z = jnp.dot(a_hat, z.astype(matmul_dtype),
                        preferred_element_type=jnp.float32) + ah
        return z

    z1 = propagate(h1, ah1)
    if activation == "elu":              # backbone == 'GAT'
        z1 = jnp.where(z1 > 0.0, z1, jnp.expm1(z1))
    else:                                # ReLU for every other backbone
        z1 = jnp.maximum(z1, 0.0)

    h2 = linear(z1, w2_ref, b2_ref)
    o_ref[...] = propagate(h2, alpha * h2).astype(o_ref.dtype)


# ---------------------------------------------------------------------------
# Glue (plain JAX)
# ---------------------------------------------------------------------------
def _round_up(x, m):
    return ((x + m - 1) // m) * m


def _pad2(x, rows, cols):
    return jnp.pad(x, ((0, rows - x.shape[0]), (0, cols - x.shape[1])))


def _vmem_limit_bytes(headroom=0.85):
    """Per-generation VMEM budget (v5e/v6e ~128 MiB, v7x 64 MiB) minus headroom."""
    cap = None
    try:
        cap = getattr(pltpu.get_tpu_info(), "vmem_capacity_bytes", None)
    except Exception:
        cap = None
    if not cap:
        cap = 64 * 1024 * 1024           # conservative fallback (v7x per-core)
    return int(cap * headroom)


def normalized_adjacency(edge_index, num_nodes):
    """Dense GCN normalization with self loops: D^-1/2 (A + I) D^-1/2."""
    src, dst = edge_index[0], edge_index[1]
    a = jnp.zeros((num_nodes, num_nodes), jnp.float32)
    a = a.at[dst, src].add(1.0)                       # message from src -> dst
    a = a + jnp.eye(num_nodes, dtype=jnp.float32)     # add self loops
    deg = jnp.sum(a, axis=1)
    d_inv_sqrt = jnp.where(deg > 0, lax.rsqrt(deg), 0.0)
    return a * d_inv_sqrt[:, None] * d_inv_sqrt[None, :]


def glorot(key, shape):
    fan_in, fan_out = shape
    limit = np.sqrt(6.0 / (fan_in + fan_out))
    return jax.random.uniform(key, shape, jnp.float32, -limit, limit)


def init_model_params(key, feature_num, output_num, hidden=64, unbias=False):
    k1, k2 = jax.random.split(key)
    w1 = glorot(k1, (feature_num, hidden))
    w2 = glorot(k2, (hidden, output_num))
    b1 = jnp.zeros((1, hidden), jnp.float32)
    b2 = jnp.zeros((1, output_num), jnp.float32)
    return {"w1": w1, "b1": b1, "w2": w2, "b2": b2}


def model_forward(params, x, edge_index, drop_rate=0.0, backbone="APPNP",
                  matmul_dtype=jnp.bfloat16, alpha=0.1, K=10):
    """Fused forward pass.  matmul_dtype=f32 reproduces PyTorch numerics;
    bf16 is the MXU-native fast path (f32 accumulation)."""
    # drop_rate == 0 -> message dropout is the identity (default forward call).
    n, f_in = x.shape
    hidden = params["w1"].shape[1]
    out_dim = params["w2"].shape[1]

    # N is the last dim of A AND the MXU contraction dim of every propagation
    # matmul -> pad to 128 for lane-dense, unmasked, full-tile layout.
    n_pad = _round_up(n, 128)
    f_pad = _round_up(f_in, 128)
    h_pad = _round_up(hidden, 128)
    o_pad = _round_up(out_dim, 128)
    # TODO(synk): on v6e/v7x the 256-wide MXU is only half filled by a 128-lane
    #             propagation RHS; batching graphs / hidden=256 would recover it.

    # Pre-scale by (1 - alpha) and pre-cast to the MXU operand dtype in the
    # wrapper: the kernel never holds an f32 copy of A in the bf16 path.
    a = normalized_adjacency(edge_index, n)
    a_p = _pad2((1.0 - alpha) * a, n_pad, n_pad).astype(matmul_dtype)
    x_p = _pad2(x, n_pad, f_pad)
    w1_p = _pad2(params["w1"], f_pad, h_pad)
    b1_p = _pad2(params["b1"], 1, h_pad)
    w2_p = _pad2(params["w2"], h_pad, o_pad)
    b2_p = _pad2(params["b2"], 1, o_pad)
    # Note: padded rows of h pick up the bias, but A's padded columns are zero
    # and the wrapper slices the output, so real rows are unaffected.

    kernel = functools.partial(
        fused_model_kernel, K=K, alpha=alpha,
        activation=("elu" if backbone == "GAT" else "relu"),
        matmul_dtype=matmul_dtype)

    vmem_ops = pl.BlockSpec(memory_space=pltpu.MemorySpace.VMEM)

    # No grid -> single invocation, whole arrays resident in VMEM, no wasted
    # double-buffering.  A stays in HBM (pl.ANY) and is DMA'd manually so the
    # transfer overlaps layer-1's linear.
    out_p = pl.pallas_call(
        kernel,
        out_shape=jax.ShapeDtypeStruct((n_pad, o_pad), jnp.float32),
        in_specs=[vmem_ops, vmem_ops, vmem_ops, vmem_ops, vmem_ops,
                  pl.BlockSpec(memory_space=pl.ANY)],
        out_specs=pl.BlockSpec(memory_space=pltpu.MemorySpace.VMEM),
        scratch_shapes=[pltpu.VMEM((n_pad, n_pad), matmul_dtype),
                        pltpu.SemaphoreType.DMA],
        compiler_params=pltpu.CompilerParams(
            vmem_limit_bytes=_vmem_limit_bytes()),
    )(x_p, w1_p, b1_p, w2_p, b2_p, a_p)

    return out_p[:n, :out_dim]


# ---------------------------------------------------------------------------
# Pure-JAX reference (same math, parameterized by matmul operand dtype).
# ---------------------------------------------------------------------------
def model_forward_ref(params, x, edge_index, matmul_dtype=jnp.float32,
                      alpha=0.1, K=10):
    n = x.shape[0]
    a = normalized_adjacency(edge_index, n)
    a_scaled = ((1.0 - alpha) * a).astype(matmul_dtype)

    def layer(xx, w, b):
        h = jnp.dot(xx.astype(matmul_dtype), w.astype(matmul_dtype),
                    preferred_element_type=jnp.float32) + b
        ah = alpha * h
        z = h
        for _ in range(K):
            z = jnp.dot(a_scaled, z.astype(matmul_dtype),
                        preferred_element_type=jnp.float32) + ah
        return z

    h = jnp.maximum(layer(x, params["w1"], params["b1"]), 0.0)
    return layer(h, params["w2"], params["b2"])


if __name__ == "__main__":
    N = 16            # number of graph nodes
    FEATURE_NUM = 8
    OUTPUT_NUM = 4
    E = 32            # number of directed edges

    key = jax.random.PRNGKey(0)
    kx, ke, kp = jax.random.split(key, 3)

    x = jax.random.normal(kx, (N, FEATURE_NUM), jnp.float32)
    edge_index = jax.random.randint(ke, (2, E), 0, N, jnp.int32)
    params = init_model_params(kp, FEATURE_NUM, OUTPUT_NUM, hidden=64, unbias=False)

    # Exact (f32) path: matches the original module's forward numerics.
    out_f32 = jax.block_until_ready(
        model_forward(params, x, edge_index, matmul_dtype=jnp.float32))
    ref_f32 = jax.block_until_ready(model_forward_ref(params, x, edge_index))
    assert out_f32.shape == (N, OUTPUT_NUM)
    np.testing.assert_allclose(np.asarray(out_f32), np.asarray(ref_f32),
                               rtol=1e-4, atol=1e-4)

    # MXU-native bf16-operand fast path (f32 accumulation), validated against a
    # pure-JAX reference running the same bf16 math.
    out_bf16 = jax.block_until_ready(
        model_forward(params, x, edge_index, matmul_dtype=jnp.bfloat16))
    ref_bf16 = jax.block_until_ready(
        model_forward_ref(params, x, edge_index, matmul_dtype=jnp.bfloat16))
    np.testing.assert_allclose(np.asarray(out_bf16), np.asarray(ref_bf16),
                               rtol=5e-3, atol=5e-3)

    print("KERNEL_OK")
</pallas_src>

<mosaic_0001>
module attributes {stable_mosaic.version = 11 : i64} {
  func.func @fused_model_kernel(%arg0: memref<128x128xf32, #tpu.memory_space<vmem>>, %arg1: memref<128x128xf32, #tpu.memory_space<vmem>>, %arg2: memref<1x128xf32, #tpu.memory_space<vmem>>, %arg3: memref<128x128xf32, #tpu.memory_space<vmem>>, %arg4: memref<1x128xf32, #tpu.memory_space<vmem>>, %arg5: memref<128x128xf32, #tpu.memory_space<any>>, %arg6: memref<128x128xf32, #tpu.memory_space<vmem>>, %arg7: memref<128x128xf32, #tpu.memory_space<vmem>>, %arg8: memref<!tpu.dma_semaphore, #tpu.memory_space<semaphore_mem>>) attributes {dimension_semantics = [], scalar_prefetch = 0 : i64, scratch_operands = 2 : i64, tpu.core_type = #tpu.core_type<tc>} {
    tpu.enqueue_dma source(%arg5 : memref<128x128xf32, #tpu.memory_space<any>>) target(%arg7 : memref<128x128xf32, #tpu.memory_space<vmem>>) target_semaphore(%arg8 : memref<!tpu.dma_semaphore, #tpu.memory_space<semaphore_mem>>)
    %c0 = arith.constant 0 : index
    %c0_0 = arith.constant 0 : index
    %0 = vector.load %arg0[%c0, %c0_0] : memref<128x128xf32, #tpu.memory_space<vmem>>, vector<128x128xf32>
    %c0_1 = arith.constant 0 : index
    %c0_2 = arith.constant 0 : index
    %1 = vector.load %arg1[%c0_1, %c0_2] : memref<128x128xf32, #tpu.memory_space<vmem>>, vector<128x128xf32>
    %cst = arith.constant dense<0.000000e+00> : vector<128x128xf32>
    %2 = tpu.matmul %0, %1, %cst {dimension_numbers = #tpu.dot_dimension_numbers<[1], [0], [0], [1], [0, 0, 1, 1], [], []>} : vector<128x128xf32>, vector<128x128xf32>, vector<128x128xf32> -> vector<128x128xf32>
    %c0_3 = arith.constant 0 : index
    %c0_4 = arith.constant 0 : index
    %3 = vector.load %arg2[%c0_3, %c0_4] : memref<1x128xf32, #tpu.memory_space<vmem>>, vector<1x128xf32>
    %4 = vector.broadcast %3 : vector<1x128xf32> to vector<128x128xf32>
    %5 = arith.addf %2, %4 : vector<128x128xf32>
    %cst_5 = arith.constant 1.000000e-01 : f32
    %6 = vector.broadcast %cst_5 : f32 to vector<128x128xf32>
    %7 = arith.mulf %6, %5 : vector<128x128xf32>
    tpu.wait_dma2 semaphore(%arg8 : memref<!tpu.dma_semaphore, #tpu.memory_space<semaphore_mem>>) src(%arg5 : memref<128x128xf32, #tpu.memory_space<any>>) dst(%arg7 : memref<128x128xf32, #tpu.memory_space<vmem>>)
    %c0_6 = arith.constant 0 : index
    %c0_7 = arith.constant 0 : index
    %8 = vector.load %arg7[%c0_6, %c0_7] : memref<128x128xf32, #tpu.memory_space<vmem>>, vector<128x128xf32>
    %cst_8 = arith.constant dense<0.000000e+00> : vector<128x128xf32>
    %9 = tpu.matmul %8, %5, %cst_8 {dimension_numbers = #tpu.dot_dimension_numbers<[1], [0], [0], [1], [0, 0, 1, 1], [], []>} : vector<128x128xf32>, vector<128x128xf32>, vector<128x128xf32> -> vector<128x128xf32>
    %10 = arith.addf %9, %7 : vector<128x128xf32>
    %cst_9 = arith.constant dense<0.000000e+00> : vector<128x128xf32>
    %11 = tpu.matmul %8, %10, %cst_9 {dimension_numbers = #tpu.dot_dimension_numbers<[1], [0], [0], [1], [0, 0, 1, 1], [], []>} : vector<128x128xf32>, vector<128x128xf32>, vector<128x128xf32> -> vector<128x128xf32>
    %12 = arith.addf %11, %7 : vector<128x128xf32>
    %cst_10 = arith.constant dense<0.000000e+00> : vector<128x128xf32>
    %13 = tpu.matmul %8, %12, %cst_10 {dimension_numbers = #tpu.dot_dimension_numbers<[1], [0], [0], [1], [0, 0, 1, 1], [], []>} : vector<128x128xf32>, vector<128x128xf32>, vector<128x128xf32> -> vector<128x128xf32>
    %14 = arith.addf %13, %7 : vector<128x128xf32>
    %cst_11 = arith.constant dense<0.000000e+00> : vector<128x128xf32>
    %15 = tpu.matmul %8, %14, %cst_11 {dimension_numbers = #tpu.dot_dimension_numbers<[1], [0], [0], [1], [0, 0, 1, 1], [], []>} : vector<128x128xf32>, vector<128x128xf32>, vector<128x128xf32> -> vector<128x128xf32>
    %16 = arith.addf %15, %7 : vector<128x128xf32>
    %cst_12 = arith.constant dense<0.000000e+00> : vector<128x128xf32>
    %17 = tpu.matmul %8, %16, %cst_12 {dimension_numbers = #tpu.dot_dimension_numbers<[1], [0], [0], [1], [0, 0, 1, 1], [], []>} : vector<128x128xf32>, vector<128x128xf32>, vector<128x128xf32> -> vector<128x128xf32>
    %18 = arith.addf %17, %7 : vector<128x128xf32>
    %cst_13 = arith.constant dense<0.000000e+00> : vector<128x128xf32>
    %19 = tpu.matmul %8, %18, %cst_13 {dimension_numbers = #tpu.dot_dimension_numbers<[1], [0], [0], [1], [0, 0, 1, 1], [], []>} : vector<128x128xf32>, vector<128x128xf32>, vector<128x128xf32> -> vector<128x128xf32>
    %20 = arith.addf %19, %7 : vector<128x128xf32>
    %cst_14 = arith.constant dense<0.000000e+00> : vector<128x128xf32>
    %21 = tpu.matmul %8, %20, %cst_14 {dimension_numbers = #tpu.dot_dimension_numbers<[1], [0], [0], [1], [0, 0, 1, 1], [], []>} : vector<128x128xf32>, vector<128x128xf32>, vector<128x128xf32> -> vector<128x128xf32>
    %22 = arith.addf %21, %7 : vector<128x128xf32>
    %cst_15 = arith.constant dense<0.000000e+00> : vector<128x128xf32>
    %23 = tpu.matmul %8, %22, %cst_15 {dimension_numbers = #tpu.dot_dimension_numbers<[1], [0], [0], [1], [0, 0, 1, 1], [], []>} : vector<128x128xf32>, vector<128x128xf32>, vector<128x128xf32> -> vector<128x128xf32>
    %24 = arith.addf %23, %7 : vector<128x128xf32>
    %cst_16 = arith.constant dense<0.000000e+00> : vector<128x128xf32>
    %25 = tpu.matmul %8, %24, %cst_16 {dimension_numbers = #tpu.dot_dimension_numbers<[1], [0], [0], [1], [0, 0, 1, 1], [], []>} : vector<128x128xf32>, vector<128x128xf32>, vector<128x128xf32> -> vector<128x128xf32>
    %26 = arith.addf %25, %7 : vector<128x128xf32>
    %cst_17 = arith.constant dense<0.000000e+00> : vector<128x128xf32>
    %27 = tpu.matmul %8, %26, %cst_17 {dimension_numbers = #tpu.dot_dimension_numbers<[1], [0], [0], [1], [0, 0, 1, 1], [], []>} : vector<128x128xf32>, vector<128x128xf32>, vector<128x128xf32> -> vector<128x128xf32>
    %28 = arith.addf %27, %7 : vector<128x128xf32>
    %cst_18 = arith.constant 0.000000e+00 : f32
    %29 = vector.broadcast %cst_18 : f32 to vector<128x128xf32>
    %30 = arith.maximumf %28, %29 : vector<128x128xf32>
    %c0_19 = arith.constant 0 : index
    %c0_20 = arith.constant 0 : index
    %31 = vector.load %arg3[%c0_19, %c0_20] : memref<128x128xf32, #tpu.memory_space<vmem>>, vector<128x128xf32>
    %cst_21 = arith.constant dense<0.000000e+00> : vector<128x128xf32>
    %32 = tpu.matmul %30, %31, %cst_21 {dimension_numbers = #tpu.dot_dimension_numbers<[1], [0], [0], [1], [0, 0, 1, 1], [], []>} : vector<128x128xf32>, vector<128x128xf32>, vector<128x128xf32> -> vector<128x128xf32>
    %c0_22 = arith.constant 0 : index
    %c0_23 = arith.constant 0 : index
    %33 = vector.load %arg4[%c0_22, %c0_23] : memref<1x128xf32, #tpu.memory_space<vmem>>, vector<1x128xf32>
    %34 = vector.broadcast %33 : vector<1x128xf32> to vector<128x128xf32>
    %35 = arith.addf %32, %34 : vector<128x128xf32>
    %cst_24 = arith.constant 1.000000e-01 : f32
    %36 = vector.broadcast %cst_24 : f32 to vector<128x128xf32>
    %37 = arith.mulf %36, %35 : vector<128x128xf32>
    %cst_25 = arith.constant dense<0.000000e+00> : vector<128x128xf32>
    %38 = tpu.matmul %8, %35, %cst_25 {dimension_numbers = #tpu.dot_dimension_numbers<[1], [0], [0], [1], [0, 0, 1, 1], [], []>} : vector<128x128xf32>, vector<128x128xf32>, vector<128x128xf32> -> vector<128x128xf32>
    %39 = arith.addf %38, %37 : vector<128x128xf32>
    %cst_26 = arith.constant dense<0.000000e+00> : vector<128x128xf32>
    %40 = tpu.matmul %8, %39, %cst_26 {dimension_numbers = #tpu.dot_dimension_numbers<[1], [0], [0], [1], [0, 0, 1, 1], [], []>} : vector<128x128xf32>, vector<128x128xf32>, vector<128x128xf32> -> vector<128x128xf32>
    %41 = arith.addf %40, %37 : vector<128x128xf32>
    %cst_27 = arith.constant dense<0.000000e+00> : vector<128x128xf32>
    %42 = tpu.matmul %8, %41, %cst_27 {dimension_numbers = #tpu.dot_dimension_numbers<[1], [0], [0], [1], [0, 0, 1, 1], [], []>} : vector<128x128xf32>, vector<128x128xf32>, vector<128x128xf32> -> vector<128x128xf32>
    %43 = arith.addf %42, %37 : vector<128x128xf32>
    %cst_28 = arith.constant dense<0.000000e+00> : vector<128x128xf32>
    %44 = tpu.matmul %8, %43, %cst_28 {dimension_numbers = #tpu.dot_dimension_numbers<[1], [0], [0], [1], [0, 0, 1, 1], [], []>} : vector<128x128xf32>, vector<128x128xf32>, vector<128x128xf32> -> vector<128x128xf32>
    %45 = arith.addf %44, %37 : vector<128x128xf32>
    %cst_29 = arith.constant dense<0.000000e+00> : vector<128x128xf32>
    %46 = tpu.matmul %8, %45, %cst_29 {dimension_numbers = #tpu.dot_dimension_numbers<[1], [0], [0], [1], [0, 0, 1, 1], [], []>} : vector<128x128xf32>, vector<128x128xf32>, vector<128x128xf32> -> vector<128x128xf32>
    %47 = arith.addf %46, %37 : vector<128x128xf32>
    %cst_30 = arith.constant dense<0.000000e+00> : vector<128x128xf32>
    %48 = tpu.matmul %8, %47, %cst_30 {dimension_numbers = #tpu.dot_dimension_numbers<[1], [0], [0], [1], [0, 0, 1, 1], [], []>} : vector<128x128xf32>, vector<128x128xf32>, vector<128x128xf32> -> vector<128x128xf32>
    %49 = arith.addf %48, %37 : vector<128x128xf32>
    %cst_31 = arith.constant dense<0.000000e+00> : vector<128x128xf32>
    %50 = tpu.matmul %8, %49, %cst_31 {dimension_numbers = #tpu.dot_dimension_numbers<[1], [0], [0], [1], [0, 0, 1, 1], [], []>} : vector<128x128xf32>, vector<128x128xf32>, vector<128x128xf32> -> vector<128x128xf32>
    %51 = arith.addf %50, %37 : vector<128x128xf32>
    %cst_32 = arith.constant dense<0.000000e+00> : vector<128x128xf32>
    %52 = tpu.matmul %8, %51, %cst_32 {dimension_numbers = #tpu.dot_dimension_numbers<[1], [0], [0], [1], [0, 0, 1, 1], [], []>} : vector<128x128xf32>, vector<128x128xf32>, vector<128x128xf32> -> vector<128x128xf32>
    %53 = arith.addf %52, %37 : vector<128x128xf32>
    %cst_33 = arith.constant dense<0.000000e+00> : vector<128x128xf32>
    %54 = tpu.matmul %8, %53, %cst_33 {dimension_numbers = #tpu.dot_dimension_numbers<[1], [0], [0], [1], [0, 0, 1, 1], [], []>} : vector<128x128xf32>, vector<128x128xf32>, vector<128x128xf32> -> vector<128x128xf32>
    %55 = arith.addf %54, %37 : vector<128x128xf32>
    %cst_34 = arith.constant dense<0.000000e+00> : vector<128x128xf32>
    %56 = tpu.matmul %8, %55, %cst_34 {dimension_numbers = #tpu.dot_dimension_numbers<[1], [0], [0], [1], [0, 0, 1, 1], [], []>} : vector<128x128xf32>, vector<128x128xf32>, vector<128x128xf32> -> vector<128x128xf32>
    %57 = arith.addf %56, %37 : vector<128x128xf32>
    %c0_35 = arith.constant 0 : index
    %c0_36 = arith.constant 0 : index
    %58 = vector.load %arg6[%c0_35, %c0_36] : memref<128x128xf32, #tpu.memory_space<vmem>>, vector<128x128xf32>
    tpu.vector_store %arg6[%c0_35, %c0_36], %57 {strides = array<i32>} : memref<128x128xf32, #tpu.memory_space<vmem>>, vector<128x128xf32>,
    return
  }
}

</mosaic_0001>

<llo_original>
// kernel: tpu_custom_call.1
$region0: #{tpu_custom_call.1}
  #allocation0 [shape = 'u32[]', space=smem, size = 0x4, offset = 0x4, fixed_abs, tag = 'smem constant byte address 0x4 - core index']
  #allocation1 [shape = 'u32[144,128]{1,0:T(1,128)}', space=vmem, size = 0x12000, scoped, tag = 'internal scratch']
  #allocation2 [shape = 'f32[128,128]{1,0:T(8,128)}', space=vmem, size = 0x10000, scoped, tag = 'scratch operand']
  #allocation3 [shape = 's32[1]{0}', space=sflag, size = 0x4, scoped, tag = 'scratch operand']
  #allocation11 [shape = 's32[]', space=sflag, size = 0x4, offset = 0, fixed_abs, tag = 'sflag constant byte address 0x0 - dummy sync flag']
  #allocation12 [shape = 's32[]', space=sflag, size = 0x4, offset = 0, fixed_abs, tag = 'sflag constant byte address 0x0 - dummy sync flag']
  #allocation13 [shape = 'u32[]', space=smem, size = 0x4, offset = 0x44, fixed_abs, tag = 'smem constant byte address 0x44 - assertion arg 0']
  #allocation14 [shape = 'u32[]', space=smem, size = 0x4, offset = 0x48, fixed_abs, tag = 'smem constant byte address 0x48 - assertion arg 1']
  %s0 = inlined_call_operand.hbm [shape: f32[128,128], index: 0, kind: input, shape index: {}]
  %s1 = inlined_call_operand.hbm [shape: f32[128,128], index: 1, kind: input, shape index: {}]
  %s2 = inlined_call_operand.vmem [shape: f32[1,128], index: 2, kind: input, shape index: {}]
  %s3 = inlined_call_operand.hbm [shape: f32[128,128], index: 3, kind: input, shape index: {}]
  %s4 = inlined_call_operand.vmem [shape: f32[1,128], index: 4, kind: input, shape index: {}]
  %s5 = inlined_call_operand.hbm [shape: f32[128,128], index: 5, kind: input, shape index: {}]
  %s6 = inlined_call_operand.hbm [shape: f32[128,128], index: 6, kind: output, shape index: {}]
  %s7 = sld [smem:[#allocation0]]
  $region46: #{tpu_custom_call.1} parent=0
    _
  %s9 = ssub.s32 1, %s7
  %s10 = scalar_select 0, %s9, %s7
  $region1: #{tpu_custom_call.1} parent=0
    #allocation4 [shape = 'u8[65536]{0}', space=vmem, size = 0x10000, scoped, tag = 'input window, operand 0, single buffered']
    #allocation5 [shape = 's32[1]{0}', space=sflag, size = 0x4, scoped, tag = 'scoped memory for tpu_custom_call.1']
    #allocation6 [shape = 's32[1]{0}', space=sflag, size = 0x4, scoped, tag = 'scoped memory for tpu_custom_call.1']
    #allocation7 [shape = 'u8[65536]{0}', space=vmem, size = 0x10000, scoped, tag = 'input window, operand 1, single buffered']
    #allocation8 [shape = 's32[1]{0}', space=sflag, size = 0x4, scoped, tag = 'scoped memory for tpu_custom_call.1']
    #allocation9 [shape = 'u8[65536]{0}', space=vmem, size = 0x10000, scoped, tag = 'input window, operand 3, single buffered']
    #allocation10 [shape = 'u8[65536]{0}', space=vmem, size = 0x10000, scoped, tag = 'output window, operand 0, single buffered']
    %11 = vsyncpa [#allocation5], 0
    %12 = vsyncpa [#allocation8], 0
    %13 = vsyncpa [#allocation6], 0
    // Predicated region
    $region2: #{tpu_custom_call.1} parent=1 // pred_check
      _
    $region3: #{tpu_custom_call.1} parent=1 // pred_check_branch
      %15 = sbr.rel (0) target = $region5
    $region4: #{tpu_custom_call.1} parent=1 // pred_region
      %s17 = ssub.s32 2048, 2048
      %18 = vsyncadd [#allocation5], %s17
      %s19 = sshll.u32 [#allocation4], 4
      %s20 = int_to_ptr.vmem [resolvable:$true] %s19
      %25 = dma.hbm_to_vmem [thread:$0]  %s0, 2048, %s20, [#allocation5], 128, 128, 8
    $region5: #{tpu_custom_call.1} parent=1 // pred_fallthru
      _
    // Predicated region
    $region6: #{tpu_custom_call.1} parent=1 // pred_check
      _
    $region7: #{tpu_custom_call.1} parent=1 // pred_check_branch
      %27 = sbr.rel (0) target = $region9
    $region8: #{tpu_custom_call.1} parent=1 // pred_region
      %s29 = ssub.s32 2048, 2048
      %30 = vsyncadd [#allocation8], %s29
      %s31 = sshll.u32 [#allocation7], 4
      %s32 = int_to_ptr.vmem [resolvable:$true] %s31
      %37 = dma.hbm_to_vmem [thread:$0]  %s1, 2048, %s32, [#allocation8], 128, 128, 8
    $region9: #{tpu_custom_call.1} parent=1 // pred_fallthru
      _
    // Predicated region
    $region10: #{tpu_custom_call.1} parent=1 // pred_check
      _
    $region11: #{tpu_custom_call.1} parent=1 // pred_check_branch
      %39 = sbr.rel (0) target = $region13
    $region12: #{tpu_custom_call.1} parent=1 // pred_region
      _
    $region13: #{tpu_custom_call.1} parent=1 // pred_fallthru
      _
    // Predicated region
    $region14: #{tpu_custom_call.1} parent=1 // pred_check
      _
    $region15: #{tpu_custom_call.1} parent=1 // pred_check_branch
      %41 = sbr.rel (0) target = $region17
    $region16: #{tpu_custom_call.1} parent=1 // pred_region
      %s43 = ssub.s32 2048, 2048
      %44 = vsyncadd [#allocation8], %s43
      %s45 = sshll.u32 [#allocation9], 4
      %s46 = int_to_ptr.vmem [resolvable:$true] %s45
      %51 = dma.hbm_to_vmem [thread:$0]  %s3, 2048, %s46, [#allocation8], 128, 128, 8
    $region17: #{tpu_custom_call.1} parent=1 // pred_fallthru
      _
    // Predicated region
    $region18: #{tpu_custom_call.1} parent=1 // pred_check
      _
    $region19: #{tpu_custom_call.1} parent=1 // pred_check_branch
      %53 = sbr.rel (0) target = $region21
    $region20: #{tpu_custom_call.1} parent=1 // pred_region
      _
    $region21: #{tpu_custom_call.1} parent=1 // pred_fallthru
      _
    // Predicated region
    $region22: #{tpu_custom_call.1} parent=1 // pred_check
      _
    $region23: #{tpu_custom_call.1} parent=1 // pred_check_branch
      %55 = sbr.rel (0) target = $region25
    $region24: #{tpu_custom_call.1} parent=1 // pred_region
      %56 = dma.done [#allocation5], 2048
    $region25: #{tpu_custom_call.1} parent=1 // pred_fallthru
      _
    // Predicated region
    $region26: #{tpu_custom_call.1} parent=1 // pred_check
      _
    $region27: #{tpu_custom_call.1} parent=1 // pred_check_branch
      %58 = sbr.rel (0) target = $region29
    $region28: #{tpu_custom_call.1} parent=1 // pred_region
      %59 = dma.done [#allocation8], 2048
    $region29: #{tpu_custom_call.1} parent=1 // pred_fallthru
      _
    // Predicated region
    $region30: #{tpu_custom_call.1} parent=1 // pred_check
      _
    $region31: #{tpu_custom_call.1} parent=1 // pred_check_branch
      %61 = sbr.rel (0) target = $region33
    $region32: #{tpu_custom_call.1} parent=1 // pred_region
      %62 = dma.done [#allocation8], 2048
    $region33: #{tpu_custom_call.1} parent=1 // pred_fallthru
      _
    // Predicated region
    $region34: #{tpu_custom_call.1} parent=1 // pred_check
      _
    $region35: #{tpu_custom_call.1} parent=1 // pred_check_branch
      %64 = sbr.rel target = $region37
    $region36: #{tpu_custom_call.1} parent=1 // pred_region
      %65 = sst [smem:[#allocation13]] [#allocation12]
      %66 = sst [smem:[#allocation14]] [#allocation11]
    $region37: #{tpu_custom_call.1} parent=1 // pred_fallthru
      _
    %68 = shalt.err (0)
    %s70 = sshll.u32 [#allocation2], 4
    %s71 = int_to_ptr.vmem [resolvable:$true] %s70
    %73 = dma.hbm_to_vmem [thread:$0]  %s5, 2048, %s71, [#allocation3]
    %v74 = vld [vmem:[#allocation4] sm:$0xff]
    %v75 = vld [vmem:[#allocation4 + $0x8] sm:$0xff]
    %v76 = vld [vmem:[#allocation4 + $0x10] sm:$0xff]
    %v77 = vld [vmem:[#allocation4 + $0x18] sm:$0xff]
    %v78 = vld [vmem:[#allocation4 + $0x20] sm:$0xff]
    %v79 = vld [vmem:[#allocation4 + $0x28] sm:$0xff]
    %v80 = vld [vmem:[#allocation4 + $0x30] sm:$0xff]
    %v81 = vld [vmem:[#allocation4 + $0x38] sm:$0xff]
    %v82 = vld [vmem:[#allocation4 + $0x40] sm:$0xff]
    %v83 = vld [vmem:[#allocation4 + $0x48] sm:$0xff]
    %v84 = vld [vmem:[#allocation4 + $0x50] sm:$0xff]
    %v85 = vld [vmem:[#allocation4 + $0x58] sm:$0xff]
    %v86 = vld [vmem:[#allocation4 + $0x60] sm:$0xff]
    %v87 = vld [vmem:[#allocation4 + $0x68] sm:$0xff]
    %v88 = vld [vmem:[#allocation4 + $0x70] sm:$0xff]
    %v89 = vld [vmem:[#allocation4 + $0x78] sm:$0xff]
    %v90 = vld [vmem:[#allocation7] sm:$0xff]
    %v91 = vld [vmem:[#allocation7 + $0x8] sm:$0xff]
    %v92 = vld [vmem:[#allocation7 + $0x10] sm:$0xff]
    %v93 = vld [vmem:[#allocation7 + $0x18] sm:$0xff]
    %v94 = vld [vmem:[#allocation7 + $0x20] sm:$0xff]
    %v95 = vld [vmem:[#allocation7 + $0x28] sm:$0xff]
    %v96 = vld [vmem:[#allocation7 + $0x30] sm:$0xff]
    %v97 = vld [vmem:[#allocation7 + $0x38] sm:$0xff]
    %v98 = vld [vmem:[#allocation7 + $0x40] sm:$0xff]
    %v99 = vld [vmem:[#allocation7 + $0x48] sm:$0xff]
    %v100 = vld [vmem:[#allocation7 + $0x50] sm:$0xff]
    %v101 = vld [vmem:[#allocation7 + $0x58] sm:$0xff]
    %v102 = vld [vmem:[#allocation7 + $0x60] sm:$0xff]
    %v103 = vld [vmem:[#allocation7 + $0x68] sm:$0xff]
    %v104 = vld [vmem:[#allocation7 + $0x70] sm:$0xff]
    %v105 = vld [vmem:[#allocation7 + $0x78] sm:$0xff]
    %v106 = vld [vmem:[%s2] sm:$0x1]
    %v108 = vlaneseq
    %v109 = vshrl.u32 %v108, 7
    %v110 = vsub.s32 0, %v109
    %v111 = vrot.slane %v106, %v110
    %113 = vmatprep.subr.mxu0 0.0
    %114 = vmatpush1.msra.mxu0 %v105
    %115 = vmatprep.subr.mxu0 0.0
    %116 = vmatpush1.msra.mxu0 %v104
    %117 = vmatprep.subr.mxu0 0.0
    %118 = vmatpush1.msra.mxu0 %v103
    %119 = vmatprep.subr.mxu0 0.0
    %120 = vmatpush1.msra.mxu0 %v102
    %121 = vmatprep.subr.mxu0 0.0
    %122 = vmatpush1.msra.mxu0 %v101
    %123 = vmatprep.subr.mxu0 0.0
    %124 = vmatpush1.msra.mxu0 %v100
    %125 = vmatprep.subr.mxu0 0.0
    %126 = vmatpush1.msra.mxu0 %v99
    %127 = vmatprep.subr.mxu0 0.0
    %128 = vmatpush1.msra.mxu0 %v98
    %129 = vmatprep.subr.mxu0 0.0
    %130 = vmatpush1.msra.mxu0 %v97
    %131 = vmatprep.subr.mxu0 0.0
    %132 = vmatpush1.msra.mxu0 %v96
    %133 = vmatprep.subr.mxu0 0.0
    %134 = vmatpush1.msra.mxu0 %v95
    %135 = vmatprep.subr.mxu0 0.0
    %136 = vmatpush1.msra.mxu0 %v94
    %137 = vmatprep.subr.mxu0 0.0
    %138 = vmatpush1.msra.mxu0 %v93
    %139 = vmatprep.subr.mxu0 0.0
    %140 = vmatpush1.msra.mxu0 %v92
    %141 = vmatprep.subr.mxu0 0.0
    %142 = vmatpush1.msra.mxu0 %v91
    %143 = vmatprep.subr.mxu0 0.0
    %144 = vmatpush1.msra.mxu0 %v90
    %145 = vmatprep.subr.mxu0 0.0
    %146 = vmatpush2.msra.mxu0 0.0
    %147 = vmatprep.subr.mxu0 0.0
    %148 = vmatpush2.msra.mxu0 0.0
    %149 = vmatprep.subr.mxu0 0.0
    %150 = vmatpush2.msra.mxu0 0.0
    %151 = vmatprep.subr.mxu0 0.0
    %152 = vmatpush2.msra.mxu0 0.0
    %153 = vmatprep.subr.mxu0 0.0
    %154 = vmatpush2.msra.mxu0 0.0
    %155 = vmatprep.subr.mxu0 0.0
    %156 = vmatpush2.msra.mxu0 0.0
    %157 = vmatprep.subr.mxu0 0.0
    %158 = vmatpush2.msra.mxu0 0.0
    %159 = vmatprep.subr.mxu0 0.0
    %160 = vmatpush2.msra.mxu0 0.0
    %161 = vmatprep.subr.mxu0 0.0
    %162 = vmatpush2.msra.mxu0 0.0
    %163 = vmatprep.subr.mxu0 0.0
    %164 = vmatpush2.msra.mxu0 0.0
    %165 = vmatprep.subr.mxu0 0.0
    %166 = vmatpush2.msra.mxu0 0.0
    %167 = vmatprep.subr.mxu0 0.0
    %168 = vmatpush2.msra.mxu0 0.0
    %169 = vmatprep.subr.mxu0 0.0
    %170 = vmatpush2.msra.mxu0 0.0
    %171 = vmatprep.subr.mxu0 0.0
    %172 = vmatpush2.msra.mxu0 0.0
    %173 = vmatprep.subr.mxu0 0.0
    %174 = vmatpush2.msra.mxu0 0.0
    %175 = vmatprep.subr.mxu0 0.0
    %176 = vmatpush2.msra.mxu0 0.0
    %177 = vmatprep.mubr.f32.mxu0 0.0
    %178 = vmatmul.mubr.f32.gmra.mxu0 %v74
    %v179 = vpop.f32.mrf.mxu0
    %v180 = vadd.f32 %v111, %v179
    %v181 = vpop.f32.mrf.mxu0
    %182 = vmatprep.mubr.f32.mxu0 0.0
    %183 = vmatmul.mubr.f32.gmra.mxu0 %v75
    %v184 = vpop.f32.mrf.mxu0
    %v185 = vadd.f32 %v111, %v184
    %v186 = vpop.f32.mrf.mxu0
    %187 = vmatprep.mubr.f32.mxu0 0.0
    %188 = vmatmul.mubr.f32.gmra.mxu0 %v76
    %v189 = vpop.f32.mrf.mxu0
    %v190 = vadd.f32 %v111, %v189
    %v191 = vpop.f32.mrf.mxu0
    %192 = vmatprep.mubr.f32.mxu0 0.0
    %193 = vmatmul.mubr.f32.gmra.mxu0 %v77
    %v194 = vpop.f32.mrf.mxu0
    %v195 = vadd.f32 %v111, %v194
    %v196 = vpop.f32.mrf.mxu0
    %197 = vmatprep.mubr.f32.mxu0 0.0
    %198 = vmatmul.mubr.f32.gmra.mxu0 %v78
    %v199 = vpop.f32.mrf.mxu0
    %v200 = vadd.f32 %v111, %v199
    %v201 = vpop.f32.mrf.mxu0
    %202 = vmatprep.mubr.f32.mxu0 0.0
    %203 = vmatmul.mubr.f32.gmra.mxu0 %v79
    %v204 = vpop.f32.mrf.mxu0
    %v205 = vadd.f32 %v111, %v204
    %v206 = vpop.f32.mrf.mxu0
    %207 = vmatprep.mubr.f32.mxu0 0.0
    %208 = vmatmul.mubr.f32.gmra.mxu0 %v80
    %v209 = vpop.f32.mrf.mxu0
    %v210 = vadd.f32 %v111, %v209
    %v211 = vpop.f32.mrf.mxu0
    %212 = vmatprep.mubr.f32.mxu0 0.0
    %213 = vmatmul.mubr.f32.gmra.mxu0 %v81
    %v214 = vpop.f32.mrf.mxu0
    %v215 = vadd.f32 %v111, %v214
    %v216 = vpop.f32.mrf.mxu0
    %217 = vmatprep.mubr.f32.mxu0 0.0
    %218 = vmatmul.mubr.f32.gmra.mxu0 %v82
    %v219 = vpop.f32.mrf.mxu0
    %v220 = vadd.f32 %v111, %v219
    %v221 = vpop.f32.mrf.mxu0
    %222 = vmatprep.mubr.f32.mxu0 0.0
    %223 = vmatmul.mubr.f32.gmra.mxu0 %v83
    %v224 = vpop.f32.mrf.mxu0
    %v225 = vadd.f32 %v111, %v224
    %v226 = vpop.f32.mrf.mxu0
    %227 = vmatprep.mubr.f32.mxu0 0.0
    %228 = vmatmul.mubr.f32.gmra.mxu0 %v84
    %v229 = vpop.f32.mrf.mxu0
    %v230 = vadd.f32 %v111, %v229
    %v231 = vpop.f32.mrf.mxu0
    %232 = vmatprep.mubr.f32.mxu0 0.0
    %233 = vmatmul.mubr.f32.gmra.mxu0 %v85
    %v234 = vpop.f32.mrf.mxu0
    %v235 = vadd.f32 %v111, %v234
    %v236 = vpop.f32.mrf.mxu0
    %237 = vmatprep.mubr.f32.mxu0 0.0
    %238 = vmatmul.mubr.f32.gmra.mxu0 %v86
    %v239 = vpop.f32.mrf.mxu0
    %v240 = vadd.f32 %v111, %v239
    %v241 = vpop.f32.mrf.mxu0
    %242 = vmatprep.mubr.f32.mxu0 0.0
    %243 = vmatmul.mubr.f32.gmra.mxu0 %v87
    %v244 = vpop.f32.mrf.mxu0
    %v245 = vadd.f32 %v111, %v244
    %v246 = vpop.f32.mrf.mxu0
    %247 = vmatprep.mubr.f32.mxu0 0.0
    %248 = vmatmul.mubr.f32.gmra.mxu0 %v88
    %v249 = vpop.f32.mrf.mxu0
    %v250 = vadd.f32 %v111, %v249
    %v251 = vpop.f32.mrf.mxu0
    %252 = vmatprep.mubr.f32.mxu0 0.0
    %253 = vmatmul.mubr.f32.gmra.mxu0 %v89
    %v254 = vpop.f32.mrf.mxu0
    %v255 = vadd.f32 %v111, %v254
    %v256 = vpop.f32.mrf.mxu0
    %257 = vdwg.mxu0
    %v258 = vmul.f32 %v180, 0.1
    %v259 = vmul.f32 %v185, 0.1
    %v260 = vmul.f32 %v190, 0.1
    %v261 = vmul.f32 %v195, 0.1
    %v262 = vmul.f32 %v200, 0.1
    %v263 = vmul.f32 %v205, 0.1
    %v264 = vmul.f32 %v210, 0.1
    %v265 = vmul.f32 %v215, 0.1
    %v266 = vmul.f32 %v220, 0.1
    %v267 = vmul.f32 %v225, 0.1
    %v268 = vmul.f32 %v230, 0.1
    %v269 = vmul.f32 %v235, 0.1
    %v270 = vmul.f32 %v240, 0.1
    %v271 = vmul.f32 %v245, 0.1
    %v272 = vmul.f32 %v250, 0.1
    %v273 = vmul.f32 %v255, 0.1
    %s274 = smul.u32 128, 1
    %s275 = sshll.u32 %s274, 4
    %276 = dma.done [#allocation3], %s275
    %v277 = vld [vmem:[#allocation2] sm:$0xff]
    %v278 = vld [vmem:[#allocation2 + $0x8] sm:$0xff]
    %v279 = vld [vmem:[#allocation2 + $0x10] sm:$0xff]
    %v280 = vld [vmem:[#allocation2 + $0x18] sm:$0xff]
    %v281 = vld [vmem:[#allocation2 + $0x20] sm:$0xff]
    %v282 = vld [vmem:[#allocation2 + $0x28] sm:$0xff]
    %v283 = vld [vmem:[#allocation2 + $0x30] sm:$0xff]
    %v284 = vld [vmem:[#allocation2 + $0x38] sm:$0xff]
    %v285 = vld [vmem:[#allocation2 + $0x40] sm:$0xff]
    %v286 = vld [vmem:[#allocation2 + $0x48] sm:$0xff]
    %v287 = vld [vmem:[#allocation2 + $0x50] sm:$0xff]
    %v288 = vld [vmem:[#allocation2 + $0x58] sm:$0xff]
    %v289 = vld [vmem:[#allocation2 + $0x60] sm:$0xff]
    %v290 = vld [vmem:[#allocation2 + $0x68] sm:$0xff]
    %v291 = vld [vmem:[#allocation2 + $0x70] sm:$0xff]
    %v292 = vld [vmem:[#allocation2 + $0x78] sm:$0xff]
    %293 = vmatprep.subr.mxu0 0.0
    %294 = vmatpush1.msra.mxu0 %v255
    %295 = vmatprep.subr.mxu0 0.0
    %296 = vmatpush1.msra.mxu0 %v250
    %297 = vmatprep.subr.mxu0 0.0
    %298 = vmatpush1.msra.mxu0 %v245
    %299 = vmatprep.subr.mxu0 0.0
    %300 = vmatpush1.msra.mxu0 %v240
    %301 = vmatprep.subr.mxu0 0.0
    %302 = vmatpush1.msra.mxu0 %v235
    %303 = vmatprep.subr.mxu0 0.0
    %304 = vmatpush1.msra.mxu0 %v230
    %305 = vmatprep.subr.mxu0 0.0
    %306 = vmatpush1.msra.mxu0 %v225
    %307 = vmatprep.subr.mxu0 0.0
    %308 = vmatpush1.msra.mxu0 %v220
    %309 = vmatprep.subr.mxu0 0.0
    %310 = vmatpush1.msra.mxu0 %v215
    %311 = vmatprep.subr.mxu0 0.0
    %312 = vmatpush1.msra.mxu0 %v210
    %313 = vmatprep.subr.mxu0 0.0
    %314 = vmatpush1.msra.mxu0 %v205
    %315 = vmatprep.subr.mxu0 0.0
    %316 = vmatpush1.msra.mxu0 %v200
    %317 = vmatprep.subr.mxu0 0.0
    %318 = vmatpush1.msra.mxu0 %v195
    %319 = vmatprep.subr.mxu0 0.0
    %320 = vmatpush1.msra.mxu0 %v190
    %321 = vmatprep.subr.mxu0 0.0
    %322 = vmatpush1.msra.mxu0 %v185
    %323 = vmatprep.subr.mxu0 0.0
    %324 = vmatpush1.msra.mxu0 %v180
    %325 = vmatprep.subr.mxu0 0.0
    %326 = vmatpush2.msra.mxu0 0.0
    %327 = vmatprep.subr.mxu0 0.0
    %328 = vmatpush2.msra.mxu0 0.0
    %329 = vmatprep.subr.mxu0 0.0
    %330 = vmatpush2.msra.mxu0 0.0
    %331 = vmatprep.subr.mxu0 0.0
    %332 = vmatpush2.msra.mxu0 0.0
    %333 = vmatprep.subr.mxu0 0.0
    %334 = vmatpush2.msra.mxu0 0.0
    %335 = vmatprep.subr.mxu0 0.0
    %336 = vmatpush2.msra.mxu0 0.0
    %337 = vmatprep.subr.mxu0 0.0
    %338 = vmatpush2.msra.mxu0 0.0
    %339 = vmatprep.subr.mxu0 0.0
    %340 = vmatpush2.msra.mxu0 0.0
    %341 = vmatprep.subr.mxu0 0.0
    %342 = vmatpush2.msra.mxu0 0.0
    %343 = vmatprep.subr.mxu0 0.0
    %344 = vmatpush2.msra.mxu0 0.0
    %345 = vmatprep.subr.mxu0 0.0
    %346 = vmatpush2.msra.mxu0 0.0
    %347 = vmatprep.subr.mxu0 0.0
    %348 = vmatpush2.msra.mxu0 0.0
    %349 = vmatprep.subr.mxu0 0.0
    %350 = vmatpush2.msra.mxu0 0.0
    %351 = vmatprep.subr.mxu0 0.0
    %352 = vmatpush2.msra.mxu0 0.0
    %353 = vmatprep.subr.mxu0 0.0
    %354 = vmatpush2.msra.mxu0 0.0
    %355 = vmatprep.subr.mxu0 0.0
    %356 = vmatpush2.msra.mxu0 0.0
    %357 = vmatprep.mubr.f32.mxu0 0.0
    %358 = vmatmul.mubr.f32.gmra.mxu0 %v277
    %v359 = vpop.f32.mrf.mxu0
    %v360 = vadd.f32 %v258, %v359
    %v361 = vpop.f32.mrf.mxu0
    %362 = vmatprep.mubr.f32.mxu0 0.0
    %363 = vmatmul.mubr.f32.gmra.mxu0 %v278
    %v364 = vpop.f32.mrf.mxu0
    %v365 = vadd.f32 %v259, %v364
    %v366 = vpop.f32.mrf.mxu0
    %367 = vmatprep.mubr.f32.mxu0 0.0
    %368 = vmatmul.mubr.f32.gmra.mxu0 %v279
    %v369 = vpop.f32.mrf.mxu0
    %v370 = vadd.f32 %v260, %v369
    %v371 = vpop.f32.mrf.mxu0
    %372 = vmatprep.mubr.f32.mxu0 0.0
    %373 = vmatmul.mubr.f32.gmra.mxu0 %v280
    %v374 = vpop.f32.mrf.mxu0
    %v375 = vadd.f32 %v261, %v374
    %v376 = vpop.f32.mrf.mxu0
    %377 = vmatprep.mubr.f32.mxu0 0.0
    %378 = vmatmul.mubr.f32.gmra.mxu0 %v281
    %v379 = vpop.f32.mrf.mxu0
    %v380 = vadd.f32 %v262, %v379
    %v381 = vpop.f32.mrf.mxu0
    %382 = vmatprep.mubr.f32.mxu0 0.0
    %383 = vmatmul.mubr.f32.gmra.mxu0 %v282
    %v384 = vpop.f32.mrf.mxu0
    %v385 = vadd.f32 %v263, %v384
    %v386 = vpop.f32.mrf.mxu0
    %387 = vmatprep.mubr.f32.mxu0 0.0
    %388 = vmatmul.mubr.f32.gmra.mxu0 %v283
    %v389 = vpop.f32.mrf.mxu0
    %v390 = vadd.f32 %v264, %v389
    %v391 = vpop.f32.mrf.mxu0
    %392 = vmatprep.mubr.f32.mxu0 0.0
    %393 = vmatmul.mubr.f32.gmra.mxu0 %v284
    %v394 = vpop.f32.mrf.mxu0
    %v395 = vadd.f32 %v265, %v394
    %v396 = vpop.f32.mrf.mxu0
    %397 = vmatprep.mubr.f32.mxu0 0.0
    %398 = vmatmul.mubr.f32.gmra.mxu0 %v285
    %v399 = vpop.f32.mrf.mxu0
    %v400 = vadd.f32 %v266, %v399
    %v401 = vpop.f32.mrf.mxu0
    %402 = vmatprep.mubr.f32.mxu0 0.0
    %403 = vmatmul.mubr.f32.gmra.mxu0 %v286
    %v404 = vpop.f32.mrf.mxu0
    %v405 = vadd.f32 %v267, %v404
    %v406 = vpop.f32.mrf.mxu0
    %407 = vmatprep.mubr.f32.mxu0 0.0
    %408 = vmatmul.mubr.f32.gmra.mxu0 %v287
    %v409 = vpop.f32.mrf.mxu0
    %v410 = vadd.f32 %v268, %v409
    %v411 = vpop.f32.mrf.mxu0
    %412 = vmatprep.mubr.f32.mxu0 0.0
    %413 = vmatmul.mubr.f32.gmra.mxu0 %v288
    %v414 = vpop.f32.mrf.mxu0
    %v415 = vadd.f32 %v269, %v414
    %v416 = vpop.f32.mrf.mxu0
    %417 = vmatprep.mubr.f32.mxu0 0.0
    %418 = vmatmul.mubr.f32.gmra.mxu0 %v289
    %v419 = vpop.f32.mrf.mxu0
    %v420 = vadd.f32 %v270, %v419
    %v421 = vpop.f32.mrf.mxu0
    %422 = vmatprep.mubr.f32.mxu0 0.0
    %423 = vmatmul.mubr.f32.gmra.mxu0 %v290
    %v424 = vpop.f32.mrf.mxu0
    %v425 = vadd.f32 %v271, %v424
    %v426 = vpop.f32.mrf.mxu0
    %427 = vmatprep.mubr.f32.mxu0 0.0
    %428 = vmatmul.mubr.f32.gmra.mxu0 %v291
    %v429 = vpop.f32.mrf.mxu0
    %v430 = vadd.f32 %v272, %v429
    %v431 = vpop.f32.mrf.mxu0
    %432 = vmatprep.mubr.f32.mxu0 0.0
    %433 = vmatmul.mubr.f32.gmra.mxu0 %v292
    %v434 = vpop.f32.mrf.mxu0
    %v435 = vadd.f32 %v273, %v434
    %v436 = vpop.f32.mrf.mxu0
    %437 = vdwg.mxu0
    %438 = vmatprep.subr.mxu0 0.0
    %439 = vmatpush1.msra.mxu0 %v435
    %440 = vmatprep.subr.mxu0 0.0
    %441 = vmatpush1.msra.mxu0 %v430
    %442 = vmatprep.subr.mxu0 0.0
    %443 = vmatpush1.msra.mxu0 %v425
    %444 = vmatprep.subr.mxu0 0.0
    %445 = vmatpush1.msra.mxu0 %v420
    %446 = vmatprep.subr.mxu0 0.0
    %447 = vmatpush1.msra.mxu0 %v415
    %448 = vmatprep.subr.mxu0 0.0
    %449 = vmatpush1.msra.mxu0 %v410
    %450 = vmatprep.subr.mxu0 0.0
    %451 = vmatpush1.msra.mxu0 %v405
    %452 = vmatprep.subr.mxu0 0.0
    %453 = vmatpush1.msra.mxu0 %v400
    %454 = vmatprep.subr.mxu0 0.0
    %455 = vmatpush1.msra.mxu0 %v395
    %456 = vmatprep.subr.mxu0 0.0
    %457 = vmatpush1.msra.mxu0 %v390
    %458 = vmatprep.subr.mxu0 0.0
    %459 = vmatpush1.msra.mxu0 %v385
    %460 = vmatprep.subr.mxu0 0.0
    %461 = vmatpush1.msra.mxu0 %v380
    %462 = vmatprep.subr.mxu0 0.0
    %463 = vmatpush1.msra.mxu0 %v375
    %464 = vmatprep.subr.mxu0 0.0
    %465 = vmatpush1.msra.mxu0 %v370
    %466 = vmatprep.subr.mxu0 0.0
    %467 = vmatpush1.msra.mxu0 %v365
    %468 = vmatprep.subr.mxu0 0.0
    %469 = vmatpush1.msra.mxu0 %v360
    %470 = vmatprep.subr.mxu0 0.0
    %471 = vmatpush2.msra.mxu0 0.0
    %472 = vmatprep.subr.mxu0 0.0
    %473 = vmatpush2.msra.mxu0 0.0
    %474 = vmatprep.subr.mxu0 0.0
    %475 = vmatpush2.msra.mxu0 0.0
    %476 = vmatprep.subr.mxu0 0.0
    %477 = vmatpush2.msra.mxu0 0.0
    %478 = vmatprep.subr.mxu0 0.0
    %479 = vmatpush2.msra.mxu0 0.0
    %480 = vmatprep.subr.mxu0 0.0
    %481 = vmatpush2.msra.mxu0 0.0
    %482 = vmatprep.subr.mxu0 0.0
    %483 = vmatpush2.msra.mxu0 0.0
    %484 = vmatprep.subr.mxu0 0.0
    %485 = vmatpush2.msra.mxu0 0.0
    %486 = vmatprep.subr.mxu0 0.0
    %487 = vmatpush2.msra.mxu0 0.0
    %488 = vmatprep.subr.mxu0 0.0
    %489 = vmatpush2.msra.mxu0 0.0
    %490 = vmatprep.subr.mxu0 0.0
    %491 = vmatpush2.msra.mxu0 0.0
    %492 = vmatprep.subr.mxu0 0.0
    %493 = vmatpush2.msra.mxu0 0.0
    %494 = vmatprep.subr.mxu0 0.0
    %495 = vmatpush2.msra.mxu0 0.0
    %496 = vmatprep.subr.mxu0 0.0
    %497 = vmatpush2.msra.mxu0 0.0
    %498 = vmatprep.subr.mxu0 0.0
    %499 = vmatpush2.msra.mxu0 0.0
    %500 = vmatprep.subr.mxu0 0.0
    %501 = vmatpush2.msra.mxu0 0.0
    %502 = vmatprep.mubr.f32.mxu0 0.0
    %503 = vmatmul.mubr.f32.gmra.mxu0 %v277
    %v504 = vpop.f32.mrf.mxu0
    %v505 = vadd.f32 %v258, %v504
    %v506 = vpop.f32.mrf.mxu0
    %507 = vmatprep.mubr.f32.mxu0 0.0
    %508 = vmatmul.mubr.f32.gmra.mxu0 %v278
    %v509 = vpop.f32.mrf.mxu0
    %v510 = vadd.f32 %v259, %v509
    %v511 = vpop.f32.mrf.mxu0
    %512 = vmatprep.mubr.f32.mxu0 0.0
    %513 = vmatmul.mubr.f32.gmra.mxu0 %v279
    %v514 = vpop.f32.mrf.mxu0
    %v515 = vadd.f32 %v260, %v514
    %v516 = vpop.f32.mrf.mxu0
    %517 = vmatprep.mubr.f32.mxu0 0.0
    %518 = vmatmul.mubr.f32.gmra.mxu0 %v280
    %v519 = vpop.f32.mrf.mxu0
    %v520 = vadd.f32 %v261, %v519
    %v521 = vpop.f32.mrf.mxu0
    %522 = vmatprep.mubr.f32.mxu0 0.0
    %523 = vmatmul.mubr.f32.gmra.mxu0 %v281
    %v524 = vpop.f32.mrf.mxu0
    %v525 = vadd.f32 %v262, %v524
    %v526 = vpop.f32.mrf.mxu0
    %527 = vmatprep.mubr.f32.mxu0 0.0
    %528 = vmatmul.mubr.f32.gmra.mxu0 %v282
    %v529 = vpop.f32.mrf.mxu0
    %v530 = vadd.f32 %v263, %v529
    %v531 = vpop.f32.mrf.mxu0
    %532 = vmatprep.mubr.f32.mxu0 0.0
    %533 = vmatmul.mubr.f32.gmra.mxu0 %v283
    %v534 = vpop.f32.mrf.mxu0
    %v535 = vadd.f32 %v264, %v534
    %v536 = vpop.f32.mrf.mxu0
    %537 = vmatprep.mubr.f32.mxu0 0.0
    %538 = vmatmul.mubr.f32.gmra.mxu0 %v284
    %v539 = vpop.f32.mrf.mxu0
    %v540 = vadd.f32 %v265, %v539
    %v541 = vpop.f32.mrf.mxu0
    %542 = vmatprep.mubr.f32.mxu0 0.0
    %543 = vmatmul.mubr.f32.gmra.mxu0 %v285
    %v544 = vpop.f32.mrf.mxu0
    %v545 = vadd.f32 %v266, %v544
    %v546 = vpop.f32.mrf.mxu0
    %547 = vmatprep.mubr.f32.mxu0 0.0
    %548 = vmatmul.mubr.f32.gmra.mxu0 %v286
    %v549 = vpop.f32.mrf.mxu0
    %v550 = vadd.f32 %v267, %v549
    %v551 = vpop.f32.mrf.mxu0
    %552 = vmatprep.mubr.f32.mxu0 0.0
    %553 = vmatmul.mubr.f32.gmra.mxu0 %v287
    %v554 = vpop.f32.mrf.mxu0
    %v555 = vadd.f32 %v268, %v554
    %v556 = vpop.f32.mrf.mxu0
    %557 = vmatprep.mubr.f32.mxu0 0.0
    %558 = vmatmul.mubr.f32.gmra.mxu0 %v288
    %v559 = vpop.f32.mrf.mxu0
    %v560 = vadd.f32 %v269, %v559
    %v561 = vpop.f32.mrf.mxu0
    %562 = vmatprep.mubr.f32.mxu0 0.0
    %563 = vmatmul.mubr.f32.gmra.mxu0 %v289
    %v564 = vpop.f32.mrf.mxu0
    %v565 = vadd.f32 %v270, %v564
    %v566 = vpop.f32.mrf.mxu0
    %567 = vmatprep.mubr.f32.mxu0 0.0
    %568 = vmatmul.mubr.f32.gmra.mxu0 %v290
    %v569 = vpop.f32.mrf.mxu0
    %v570 = vadd.f32 %v271, %v569
    %v571 = vpop.f32.mrf.mxu0
    %572 = vmatprep.mubr.f32.mxu0 0.0
    %573 = vmatmul.mubr.f32.gmra.mxu0 %v291
    %v574 = vpop.f32.mrf.mxu0
    %v575 = vadd.f32 %v272, %v574
    %v576 = vpop.f32.mrf.mxu0
    %577 = vmatprep.mubr.f32.mxu0 0.0
    %578 = vmatmul.mubr.f32.gmra.mxu0 %v292
    %v579 = vpop.f32.mrf.mxu0
    %v580 = vadd.f32 %v273, %v579
    %v581 = vpop.f32.mrf.mxu0
    %582 = vdwg.mxu0
    %583 = vmatprep.subr.mxu0 0.0
    %584 = vmatpush1.msra.mxu0 %v580
    %585 = vmatprep.subr.mxu0 0.0
    %586 = vmatpush1.msra.mxu0 %v575
    %587 = vmatprep.subr.mxu0 0.0
    %588 = vmatpush1.msra.mxu0 %v570
    %589 = vmatprep.subr.mxu0 0.0
    %590 = vmatpush1.msra.mxu0 %v565
    %591 = vmatprep.subr.mxu0 0.0
    %592 = vmatpush1.msra.mxu0 %v560
    %593 = vmatprep.subr.mxu0 0.0
    %594 = vmatpush1.msra.mxu0 %v555
    %595 = vmatprep.subr.mxu0 0.0
    %596 = vmatpush1.msra.mxu0 %v550
    %597 = vmatprep.subr.mxu0 0.0
    %598 = vmatpush1.msra.mxu0 %v545
    %599 = vmatprep.subr.mxu0 0.0
    %600 = vmatpush1.msra.mxu0 %v540
    %601 = vmatprep.subr.mxu0 0.0
    %602 = vmatpush1.msra.mxu0 %v535
    %603 = vmatprep.subr.mxu0 0.0
    %604 = vmatpush1.msra.mxu0 %v530
    %605 = vmatprep.subr.mxu0 0.0
    %606 = vmatpush1.msra.mxu0 %v525
    %607 = vmatprep.subr.mxu0 0.0
    %608 = vmatpush1.msra.mxu0 %v520
    %609 = vmatprep.subr.mxu0 0.0
    %610 = vmatpush1.msra.mxu0 %v515
    %611 = vmatprep.subr.mxu0 0.0
    %612 = vmatpush1.msra.mxu0 %v510
    %613 = vmatprep.subr.mxu0 0.0
    %614 = vmatpush1.msra.mxu0 %v505
    %615 = vmatprep.subr.mxu0 0.0
    %616 = vmatpush2.msra.mxu0 0.0
    %617 = vmatprep.subr.mxu0 0.0
    %618 = vmatpush2.msra.mxu0 0.0
    %619 = vmatprep.subr.mxu0 0.0
    %620 = vmatpush2.msra.mxu0 0.0
    %621 = vmatprep.subr.mxu0 0.0
    %622 = vmatpush2.msra.mxu0 0.0
    %623 = vmatprep.subr.mxu0 0.0
    %624 = vmatpush2.msra.mxu0 0.0
    %625 = vmatprep.subr.mxu0 0.0
    %626 = vmatpush2.msra.mxu0 0.0
    %627 = vmatprep.subr.mxu0 0.0
    %628 = vmatpush2.msra.mxu0 0.0
    %629 = vmatprep.subr.mxu0 0.0
    %630 = vmatpush2.msra.mxu0 0.0
    %631 = vmatprep.subr.mxu0 0.0
    %632 = vmatpush2.msra.mxu0 0.0
    %633 = vmatprep.subr.mxu0 0.0
    %634 = vmatpush2.msra.mxu0 0.0
    %635 = vmatprep.subr.mxu0 0.0
    %636 = vmatpush2.msra.mxu0 0.0
    %637 = vmatprep.subr.mxu0 0.0
    %638 = vmatpush2.msra.mxu0 0.0
    %639 = vmatprep.subr.mxu0 0.0
    %640 = vmatpush2.msra.mxu0 0.0
    %641 = vmatprep.subr.mxu0 0.0
    %642 = vmatpush2.msra.mxu0 0.0
    %643 = vmatprep.subr.mxu0 0.0
    %644 = vmatpush2.msra.mxu0 0.0
    %645 = vmatprep.subr.mxu0 0.0
    %646 = vmatpush2.msra.mxu0 0.0
    %647 = vmatprep.mubr.f32.mxu0 0.0
    %648 = vmatmul.mubr.f32.gmra.mxu0 %v277
    %v649 = vpop.f32.mrf.mxu0
    %v650 = vadd.f32 %v258, %v649
    %v651 = vpop.f32.mrf.mxu0
    %652 = vmatprep.mubr.f32.mxu0 0.0
    %653 = vmatmul.mubr.f32.gmra.mxu0 %v278
    %v654 = vpop.f32.mrf.mxu0
    %v655 = vadd.f32 %v259, %v654
    %v656 = vpop.f32.mrf.mxu0
    %657 = vmatprep.mubr.f32.mxu0 0.0
    %658 = vmatmul.mubr.f32.gmra.mxu0 %v279
    %v659 = vpop.f32.mrf.mxu0
    %v660 = vadd.f32 %v260, %v659
    %v661 = vpop.f32.mrf.mxu0
    %662 = vmatprep.mubr.f32.mxu0 0.0
    %663 = vmatmul.mubr.f32.gmra.mxu0 %v280
    %v664 = vpop.f32.mrf.mxu0
    %v665 = vadd.f32 %v261, %v664
    %v666 = vpop.f32.mrf.mxu0
    %667 = vmatprep.mubr.f32.mxu0 0.0
    %668 = vmatmul.mubr.f32.gmra.mxu0 %v281
    %v669 = vpop.f32.mrf.mxu0
    %v670 = vadd.f32 %v262, %v669
    %v671 = vpop.f32.mrf.mxu0
    %672 = vmatprep.mubr.f32.mxu0 0.0
    %673 = vmatmul.mubr.f32.gmra.mxu0 %v282
    %v674 = vpop.f32.mrf.mxu0
    %v675 = vadd.f32 %v263, %v674
    %v676 = vpop.f32.mrf.mxu0
    %677 = vmatprep.mubr.f32.mxu0 0.0
    %678 = vmatmul.mubr.f32.gmra.mxu0 %v283
    %v679 = vpop.f32.mrf.mxu0
    %v680 = vadd.f32 %v264, %v679
    %v681 = vpop.f32.mrf.mxu0
    %682 = vmatprep.mubr.f32.mxu0 0.0
    %683 = vmatmul.mubr.f32.gmra.mxu0 %v284
    %v684 = vpop.f32.mrf.mxu0
    %v685 = vadd.f32 %v265, %v684
    %v686 = vpop.f32.mrf.mxu0
    %687 = vmatprep.mubr.f32.mxu0 0.0
    %688 = vmatmul.mubr.f32.gmra.mxu0 %v285
    %v689 = vpop.f32.mrf.mxu0
    %v690 = vadd.f32 %v266, %v689
    %v691 = vpop.f32.mrf.mxu0
    %692 = vmatprep.mubr.f32.mxu0 0.0
    %693 = vmatmul.mubr.f32.gmra.mxu0 %v286
    %v694 = vpop.f32.mrf.mxu0
    %v695 = vadd.f32 %v267, %v694
    %v696 = vpop.f32.mrf.mxu0
    %697 = vmatprep.mubr.f32.mxu0 0.0
    %698 = vmatmul.mubr.f32.gmra.mxu0 %v287
    %v699 = vpop.f32.mrf.mxu0
    %v700 = vadd.f32 %v268, %v699
    %v701 = vpop.f32.mrf.mxu0
    %702 = vmatprep.mubr.f32.mxu0 0.0
    %703 = vmatmul.mubr.f32.gmra.mxu0 %v288
    %v704 = vpop.f32.mrf.mxu0
    %v705 = vadd.f32 %v269, %v704
    %v706 = vpop.f32.mrf.mxu0
    %707 = vmatprep.mubr.f32.mxu0 0.0
    %708 = vmatmul.mubr.f32.gmra.mxu0 %v289
    %v709 = vpop.f32.mrf.mxu0
    %v710 = vadd.f32 %v270, %v709
    %v711 = vpop.f32.mrf.mxu0
    %712 = vmatprep.mubr.f32.mxu0 0.0
    %713 = vmatmul.mubr.f32.gmra.mxu0 %v290
    %v714 = vpop.f32.mrf.mxu0
    %v715 = vadd.f32 %v271, %v714
    %v716 = vpop.f32.mrf.mxu0
    %717 = vmatprep.mubr.f32.mxu0 0.0
    %718 = vmatmul.mubr.f32.gmra.mxu0 %v291
    %v719 = vpop.f32.mrf.mxu0
    %v720 = vadd.f32 %v272, %v719
    %v721 = vpop.f32.mrf.mxu0
    %722 = vmatprep.mubr.f32.mxu0 0.0
    %723 = vmatmul.mubr.f32.gmra.mxu0 %v292
    %v724 = vpop.f32.mrf.mxu0
    %v725 = vadd.f32 %v273, %v724
    %v726 = vpop.f32.mrf.mxu0
    %727 = vdwg.mxu0
    %728 = vmatprep.subr.mxu0 0.0
    %729 = vmatpush1.msra.mxu0 %v725
    %730 = vmatprep.subr.mxu0 0.0
    %731 = vmatpush1.msra.mxu0 %v720
    %732 = vmatprep.subr.mxu0 0.0
    %733 = vmatpush1.msra.mxu0 %v715
    %734 = vmatprep.subr.mxu0 0.0
    %735 = vmatpush1.msra.mxu0 %v710
    %736 = vmatprep.subr.mxu0 0.0
    %737 = vmatpush1.msra.mxu0 %v705
    %738 = vmatprep.subr.mxu0 0.0
    %739 = vmatpush1.msra.mxu0 %v700
    %740 = vmatprep.subr.mxu0 0.0
    %741 = vmatpush1.msra.mxu0 %v695
    %742 = vmatprep.subr.mxu0 0.0
    %743 = vmatpush1.msra.mxu0 %v690
    %744 = vmatprep.subr.mxu0 0.0
    %745 = vmatpush1.msra.mxu0 %v685
    %746 = vmatprep.subr.mxu0 0.0
    %747 = vmatpush1.msra.mxu0 %v680
    %748 = vmatprep.subr.mxu0 0.0
    %749 = vmatpush1.msra.mxu0 %v675
    %750 = vmatprep.subr.mxu0 0.0
    %751 = vmatpush1.msra.mxu0 %v670
    %752 = vmatprep.subr.mxu0 0.0
    %753 = vmatpush1.msra.mxu0 %v665
    %754 = vmatprep.subr.mxu0 0.0
    %755 = vmatpush1.msra.mxu0 %v660
    %756 = vmatprep.subr.mxu0 0.0
    %757 = vmatpush1.msra.mxu0 %v655
    %758 = vmatprep.subr.mxu0 0.0
    %759 = vmatpush1.msra.mxu0 %v650
    %760 = vmatprep.subr.mxu0 0.0
    %761 = vmatpush2.msra.mxu0 0.0
    %762 = vmatprep.subr.mxu0 0.0
    %763 = vmatpush2.msra.mxu0 0.0
    %764 = vmatprep.subr.mxu0 0.0
    %765 = vmatpush2.msra.mxu0 0.0
    %766 = vmatprep.subr.mxu0 0.0
    %767 = vmatpush2.msra.mxu0 0.0
    %768 = vmatprep.subr.mxu0 0.0
    %769 = vmatpush2.msra.mxu0 0.0
    %770 = vmatprep.subr.mxu0 0.0
    %771 = vmatpush2.msra.mxu0 0.0
    %772 = vmatprep.subr.mxu0 0.0
    %773 = vmatpush2.msra.mxu0 0.0
    %774 = vmatprep.subr.mxu0 0.0
    %775 = vmatpush2.msra.mxu0 0.0
    %776 = vmatprep.subr.mxu0 0.0
    %777 = vmatpush2.msra.mxu0 0.0
    %778 = vmatprep.subr.mxu0 0.0
    %779 = vmatpush2.msra.mxu0 0.0
    %780 = vmatprep.subr.mxu0 0.0
    %781 = vmatpush2.msra.mxu0 0.0
    %782 = vmatprep.subr.mxu0 0.0
    %783 = vmatpush2.msra.mxu0 0.0
    %784 = vmatprep.subr.mxu0 0.0
    %785 = vmatpush2.msra.mxu0 0.0
    %786 = vmatprep.subr.mxu0 0.0
    %787 = vmatpush2.msra.mxu0 0.0
    %788 = vmatprep.subr.mxu0 0.0
    %789 = vmatpush2.msra.mxu0 0.0
    %790 = vmatprep.subr.mxu0 0.0
    %791 = vmatpush2.msra.mxu0 0.0
    %792 = vmatprep.mubr.f32.mxu0 0.0
    %793 = vmatmul.mubr.f32.gmra.mxu0 %v277
    %v794 = vpop.f32.mrf.mxu0
    %v795 = vadd.f32 %v258, %v794
    %v796 = vpop.f32.mrf.mxu0
    %797 = vmatprep.mubr.f32.mxu0 0.0
    %798 = vmatmul.mubr.f32.gmra.mxu0 %v278
    %v799 = vpop.f32.mrf.mxu0
    %v800 = vadd.f32 %v259, %v799
    %v801 = vpop.f32.mrf.mxu0
    %802 = vmatprep.mubr.f32.mxu0 0.0
    %803 = vmatmul.mubr.f32.gmra.mxu0 %v279
    %v804 = vpop.f32.mrf.mxu0
    %v805 = vadd.f32 %v260, %v804
    %v806 = vpop.f32.mrf.mxu0
    %807 = vmatprep.mubr.f32.mxu0 0.0
    %808 = vmatmul.mubr.f32.gmra.mxu0 %v280
    %v809 = vpop.f32.mrf.mxu0
    %v810 = vadd.f32 %v261, %v809
    %v811 = vpop.f32.mrf.mxu0
    %812 = vmatprep.mubr.f32.mxu0 0.0
    %813 = vmatmul.mubr.f32.gmra.mxu0 %v281
    %v814 = vpop.f32.mrf.mxu0
    %v815 = vadd.f32 %v262, %v814
    %v816 = vpop.f32.mrf.mxu0
    %817 = vmatprep.mubr.f32.mxu0 0.0
    %818 = vmatmul.mubr.f32.gmra.mxu0 %v282
    %v819 = vpop.f32.mrf.mxu0
    %v820 = vadd.f32 %v263, %v819
    %v821 = vpop.f32.mrf.mxu0
    %822 = vmatprep.mubr.f32.mxu0 0.0
    %823 = vmatmul.mubr.f32.gmra.mxu0 %v283
    %v824 = vpop.f32.mrf.mxu0
    %v825 = vadd.f32 %v264, %v824
    %v826 = vpop.f32.mrf.mxu0
    %827 = vmatprep.mubr.f32.mxu0 0.0
    %828 = vmatmul.mubr.f32.gmra.mxu0 %v284
    %v829 = vpop.f32.mrf.mxu0
    %v830 = vadd.f32 %v265, %v829
    %v831 = vpop.f32.mrf.mxu0
    %832 = vmatprep.mubr.f32.mxu0 0.0
    %833 = vmatmul.mubr.f32.gmra.mxu0 %v285
    %v834 = vpop.f32.mrf.mxu0
    %v835 = vadd.f32 %v266, %v834
    %v836 = vpop.f32.mrf.mxu0
    %837 = vmatprep.mubr.f32.mxu0 0.0
    %838 = vmatmul.mubr.f32.gmra.mxu0 %v286
    %v839 = vpop.f32.mrf.mxu0
    %v840 = vadd.f32 %v267, %v839
    %v841 = vpop.f32.mrf.mxu0
    %842 = vmatprep.mubr.f32.mxu0 0.0
    %843 = vmatmul.mubr.f32.gmra.mxu0 %v287
    %v844 = vpop.f32.mrf.mxu0
    %v845 = vadd.f32 %v268, %v844
    %v846 = vpop.f32.mrf.mxu0
    %847 = vmatprep.mubr.f32.mxu0 0.0
    %848 = vmatmul.mubr.f32.gmra.mxu0 %v288
    %v849 = vpop.f32.mrf.mxu0
    %v850 = vadd.f32 %v269, %v849
    %v851 = vpop.f32.mrf.mxu0
    %852 = vmatprep.mubr.f32.mxu0 0.0
    %853 = vmatmul.mubr.f32.gmra.mxu0 %v289
    %v854 = vpop.f32.mrf.mxu0
    %v855 = vadd.f32 %v270, %v854
    %v856 = vpop.f32.mrf.mxu0
    %857 = vmatprep.mubr.f32.mxu0 0.0
    %858 = vmatmul.mubr.f32.gmra.mxu0 %v290
    %v859 = vpop.f32.mrf.mxu0
    %v860 = vadd.f32 %v271, %v859
    %v861 = vpop.f32.mrf.mxu0
    %862 = vmatprep.mubr.f32.mxu0 0.0
    %863 = vmatmul.mubr.f32.gmra.mxu0 %v291
    %v864 = vpop.f32.mrf.mxu0
    %v865 = vadd.f32 %v272, %v864
    %v866 = vpop.f32.mrf.mxu0
    %867 = vmatprep.mubr.f32.mxu0 0.0
    %868 = vmatmul.mubr.f32.gmra.mxu0 %v292
    %v869 = vpop.f32.mrf.mxu0
    %v870 = vadd.f32 %v273, %v869
    %v871 = vpop.f32.mrf.mxu0
    %872 = vdwg.mxu0
    %873 = vmatprep.subr.mxu0 0.0
    %874 = vmatpush1.msra.mxu0 %v870
    %875 = vmatprep.subr.mxu0 0.0
    %876 = vmatpush1.msra.mxu0 %v865
    %877 = vmatprep.subr.mxu0 0.0
    %878 = vmatpush1.msra.mxu0 %v860
    %879 = vmatprep.subr.mxu0 0.0
    %880 = vmatpush1.msra.mxu0 %v855
    %881 = vmatprep.subr.mxu0 0.0
    %882 = vmatpush1.msra.mxu0 %v850
    %883 = vmatprep.subr.mxu0 0.0
    %884 = vmatpush1.msra.mxu0 %v845
    %885 = vmatprep.subr.mxu0 0.0
    %886 = vmatpush1.msra.mxu0 %v840
    %887 = vmatprep.subr.mxu0 0.0
    %888 = vmatpush1.msra.mxu0 %v835
    %889 = vmatprep.subr.mxu0 0.0
    %890 = vmatpush1.msra.mxu0 %v830
    %891 = vmatprep.subr.mxu0 0.0
    %892 = vmatpush1.msra.mxu0 %v825
    %893 = vmatprep.subr.mxu0 0.0
    %894 = vmatpush1.msra.mxu0 %v820
    %895 = vmatprep.subr.mxu0 0.0
    %896 = vmatpush1.msra.mxu0 %v815
    %897 = vmatprep.subr.mxu0 0.0
    %898 = vmatpush1.msra.mxu0 %v810
    %899 = vmatprep.subr.mxu0 0.0
    %900 = vmatpush1.msra.mxu0 %v805
    %901 = vmatprep.subr.mxu0 0.0
    %902 = vmatpush1.msra.mxu0 %v800
    %903 = vmatprep.subr.mxu0 0.0
    %904 = vmatpush1.msra.mxu0 %v795
    %905 = vmatprep.subr.mxu0 0.0
    %906 = vmatpush2.msra.mxu0 0.0
    %907 = vmatprep.subr.mxu0 0.0
    %908 = vmatpush2.msra.mxu0 0.0
    %909 = vmatprep.subr.mxu0 0.0
    %910 = vmatpush2.msra.mxu0 0.0
    %911 = vmatprep.subr.mxu0 0.0
    %912 = vmatpush2.msra.mxu0 0.0
    %913 = vmatprep.subr.mxu0 0.0
    %914 = vmatpush2.msra.mxu0 0.0
    %915 = vmatprep.subr.mxu0 0.0
    %916 = vmatpush2.msra.mxu0 0.0
    %917 = vmatprep.subr.mxu0 0.0
    %918 = vmatpush2.msra.mxu0 0.0
    %919 = vmatprep.subr.mxu0 0.0
    %920 = vmatpush2.msra.mxu0 0.0
    %921 = vmatprep.subr.mxu0 0.0
    %922 = vmatpush2.msra.mxu0 0.0
    %923 = vmatprep.subr.mxu0 0.0
    %924 = vmatpush2.msra.mxu0 0.0
    %925 = vmatprep.subr.mxu0 0.0
    %926 = vmatpush2.msra.mxu0 0.0
    %927 = vmatprep.subr.mxu0 0.0
    %928 = vmatpush2.msra.mxu0 0.0
    %929 = vmatprep.subr.mxu0 0.0
    %930 = vmatpush2.msra.mxu0 0.0
    %931 = vmatprep.subr.mxu0 0.0
    %932 = vmatpush2.msra.mxu0 0.0
    %933 = vmatprep.subr.mxu0 0.0
    %934 = vmatpush2.msra.mxu0 0.0
    %935 = vmatprep.subr.mxu0 0.0
    %936 = vmatpush2.msra.mxu0 0.0
    %937 = vmatprep.mubr.f32.mxu0 0.0
    %938 = vmatmul.mubr.f32.gmra.mxu0 %v277
    %v939 = vpop.f32.mrf.mxu0
    %v940 = vadd.f32 %v258, %v939
    %v941 = vpop.f32.mrf.mxu0
    %942 = vmatprep.mubr.f32.mxu0 0.0
    %943 = vmatmul.mubr.f32.gmra.mxu0 %v278
    %v944 = vpop.f32.mrf.mxu0
    %v945 = vadd.f32 %v259, %v944
    %v946 = vpop.f32.mrf.mxu0
    %947 = vmatprep.mubr.f32.mxu0 0.0
    %948 = vmatmul.mubr.f32.gmra.mxu0 %v279
    %v949 = vpop.f32.mrf.mxu0
    %v950 = vadd.f32 %v260, %v949
    %v951 = vpop.f32.mrf.mxu0
    %952 = vmatprep.mubr.f32.mxu0 0.0
    %953 = vmatmul.mubr.f32.gmra.mxu0 %v280
    %v954 = vpop.f32.mrf.mxu0
    %v955 = vadd.f32 %v261, %v954
    %v956 = vpop.f32.mrf.mxu0
    %957 = vmatprep.mubr.f32.mxu0 0.0
    %958 = vmatmul.mubr.f32.gmra.mxu0 %v281
    %v959 = vpop.f32.mrf.mxu0
    %v960 = vadd.f32 %v262, %v959
    %v961 = vpop.f32.mrf.mxu0
    %962 = vmatprep.mubr.f32.mxu0 0.0
    %963 = vmatmul.mubr.f32.gmra.mxu0 %v282
    %v964 = vpop.f32.mrf.mxu0
    %v965 = vadd.f32 %v263, %v964
    %v966 = vpop.f32.mrf.mxu0
    %967 = vmatprep.mubr.f32.mxu0 0.0
    %968 = vmatmul.mubr.f32.gmra.mxu0 %v283
    %v969 = vpop.f32.mrf.mxu0
    %v970 = vadd.f32 %v264, %v969
    %v971 = vpop.f32.mrf.mxu0
    %972 = vmatprep.mubr.f32.mxu0 0.0
    %973 = vmatmul.mubr.f32.gmra.mxu0 %v284
    %v974 = vpop.f32.mrf.mxu0
    %v975 = vadd.f32 %v265, %v974
    %v976 = vpop.f32.mrf.mxu0
    %977 = vmatprep.mubr.f32.mxu0 0.0
    %978 = vmatmul.mubr.f32.gmra.mxu0 %v285
    %v979 = vpop.f32.mrf.mxu0
    %v980 = vadd.f32 %v266, %v979
    %v981 = vpop.f32.mrf.mxu0
    %982 = vmatprep.mubr.f32.mxu0 0.0
    %983 = vmatmul.mubr.f32.gmra.mxu0 %v286
    %v984 = vpop.f32.mrf.mxu0
    %v985 = vadd.f32 %v267, %v984
    %v986 = vpop.f32.mrf.mxu0
    %987 = vmatprep.mubr.f32.mxu0 0.0
    %988 = vmatmul.mubr.f32.gmra.mxu0 %v287
    %v989 = vpop.f32.mrf.mxu0
    %v990 = vadd.f32 %v268, %v989
    %v991 = vpop.f32.mrf.mxu0
    %992 = vmatprep.mubr.f32.mxu0 0.0
    %993 = vmatmul.mubr.f32.gmra.mxu0 %v288
    %v994 = vpop.f32.mrf.mxu0
    %v995 = vadd.f32 %v269, %v994
    %v996 = vpop.f32.mrf.mxu0
    %997 = vmatprep.mubr.f32.mxu0 0.0
    %998 = vmatmul.mubr.f32.gmra.mxu0 %v289
    %v999 = vpop.f32.mrf.mxu0
    %v1000 = vadd.f32 %v270, %v999
    %v1001 = vpop.f32.mrf.mxu0
    %1002 = vmatprep.mubr.f32.mxu0 0.0
    %1003 = vmatmul.mubr.f32.gmra.mxu0 %v290
    %v1004 = vpop.f32.mrf.mxu0
    %v1005 = vadd.f32 %v271, %v1004
    %v1006 = vpop.f32.mrf.mxu0
    %1007 = vmatprep.mubr.f32.mxu0 0.0
    %1008 = vmatmul.mubr.f32.gmra.mxu0 %v291
    %v1009 = vpop.f32.mrf.mxu0
    %v1010 = vadd.f32 %v272, %v1009
    %v1011 = vpop.f32.mrf.mxu0
    %1012 = vmatprep.mubr.f32.mxu0 0.0
    %1013 = vmatmul.mubr.f32.gmra.mxu0 %v292
    %v1014 = vpop.f32.mrf.mxu0
    %v1015 = vadd.f32 %v273, %v1014
    %v1016 = vpop.f32.mrf.mxu0
    %1017 = vdwg.mxu0
    %1018 = vmatprep.subr.mxu0 0.0
    %1019 = vmatpush1.msra.mxu0 %v1015
    %1020 = vmatprep.subr.mxu0 0.0
    %1021 = vmatpush1.msra.mxu0 %v1010
    %1022 = vmatprep.subr.mxu0 0.0
    %1023 = vmatpush1.msra.mxu0 %v1005
    %1024 = vmatprep.subr.mxu0 0.0
    %1025 = vmatpush1.msra.mxu0 %v1000
    %1026 = vmatprep.subr.mxu0 0.0
    %1027 = vmatpush1.msra.mxu0 %v995
    %1028 = vmatprep.subr.mxu0 0.0
    %1029 = vmatpush1.msra.mxu0 %v990
    %1030 = vmatprep.subr.mxu0 0.0
    %1031 = vmatpush1.msra.mxu0 %v985
    %1032 = vmatprep.subr.mxu0 0.0
    %1033 = vmatpush1.msra.mxu0 %v980
    %1034 = vmatprep.subr.mxu0 0.0
    %1035 = vmatpush1.msra.mxu0 %v975
    %1036 = vmatprep.subr.mxu0 0.0
    %1037 = vmatpush1.msra.mxu0 %v970
    %1038 = vmatprep.subr.mxu0 0.0
    %1039 = vmatpush1.msra.mxu0 %v965
    %1040 = vmatprep.subr.mxu0 0.0
    %1041 = vmatpush1.msra.mxu0 %v960
    %1042 = vmatprep.subr.mxu0 0.0
    %1043 = vmatpush1.msra.mxu0 %v955
    %1044 = vmatprep.subr.mxu0 0.0
    %1045 = vmatpush1.msra.mxu0 %v950
    %1046 = vmatprep.subr.mxu0 0.0
    %1047 = vmatpush1.msra.mxu0 %v945
    %1048 = vmatprep.subr.mxu0 0.0
    %1049 = vmatpush1.msra.mxu0 %v940
    %1050 = vmatprep.subr.mxu0 0.0
    %1051 = vmatpush2.msra.mxu0 0.0
    %1052 = vmatprep.subr.mxu0 0.0
    %1053 = vmatpush2.msra.mxu0 0.0
    %1054 = vmatprep.subr.mxu0 0.0
    %1055 = vmatpush2.msra.mxu0 0.0
    %1056 = vmatprep.subr.mxu0 0.0
    %1057 = vmatpush2.msra.mxu0 0.0
    %1058 = vmatprep.subr.mxu0 0.0
    %1059 = vmatpush2.msra.mxu0 0.0
    %1060 = vmatprep.subr.mxu0 0.0
    %1061 = vmatpush2.msra.mxu0 0.0
    %1062 = vmatprep.subr.mxu0 0.0
    %1063 = vmatpush2.msra.mxu0 0.0
    %1064 = vmatprep.subr.mxu0 0.0
    %1065 = vmatpush2.msra.mxu0 0.0
    %1066 = vmatprep.subr.mxu0 0.0
    %1067 = vmatpush2.msra.mxu0 0.0
    %1068 = vmatprep.subr.mxu0 0.0
    %1069 = vmatpush2.msra.mxu0 0.0
    %1070 = vmatprep.subr.mxu0 0.0
    %1071 = vmatpush2.msra.mxu0 0.0
    %1072 = vmatprep.subr.mxu0 0.0
    %1073 = vmatpush2.msra.mxu0 0.0
    %1074 = vmatprep.subr.mxu0 0.0
    %1075 = vmatpush2.msra.mxu0 0.0
    %1076 = vmatprep.subr.mxu0 0.0
    %1077 = vmatpush2.msra.mxu0 0.0
    %1078 = vmatprep.subr.mxu0 0.0
    %1079 = vmatpush2.msra.mxu0 0.0
    %1080 = vmatprep.subr.mxu0 0.0
    %1081 = vmatpush2.msra.mxu0 0.0
    %1082 = vmatprep.mubr.f32.mxu0 0.0
    %1083 = vmatmul.mubr.f32.gmra.mxu0 %v277
    %v1084 = vpop.f32.mrf.mxu0
    %v1085 = vadd.f32 %v258, %v1084
    %v1086 = vpop.f32.mrf.mxu0
    %1087 = vmatprep.mubr.f32.mxu0 0.0
    %1088 = vmatmul.mubr.f32.gmra.mxu0 %v278
    %v1089 = vpop.f32.mrf.mxu0
    %v1090 = vadd.f32 %v259, %v1089
    %v1091 = vpop.f32.mrf.mxu0
    %1092 = vmatprep.mubr.f32.mxu0 0.0
    %1093 = vmatmul.mubr.f32.gmra.mxu0 %v279
    %v1094 = vpop.f32.mrf.mxu0
    %v1095 = vadd.f32 %v260, %v1094
    %v1096 = vpop.f32.mrf.mxu0
    %1097 = vmatprep.mubr.f32.mxu0 0.0
    %1098 = vmatmul.mubr.f32.gmra.mxu0 %v280
    %v1099 = vpop.f32.mrf.mxu0
    %v1100 = vadd.f32 %v261, %v1099
    %v1101 = vpop.f32.mrf.mxu0
    %1102 = vmatprep.mubr.f32.mxu0 0.0
    %1103 = vmatmul.mubr.f32.gmra.mxu0 %v281
    %v1104 = vpop.f32.mrf.mxu0
    %v1105 = vadd.f32 %v262, %v1104
    %v1106 = vpop.f32.mrf.mxu0
    %1107 = vmatprep.mubr.f32.mxu0 0.0
    %1108 = vmatmul.mubr.f32.gmra.mxu0 %v282
    %v1109 = vpop.f32.mrf.mxu0
    %v1110 = vadd.f32 %v263, %v1109
    %v1111 = vpop.f32.mrf.mxu0
    %1112 = vmatprep.mubr.f32.mxu0 0.0
    %1113 = vmatmul.mubr.f32.gmra.mxu0 %v283
    %v1114 = vpop.f32.mrf.mxu0
    %v1115 = vadd.f32 %v264, %v1114
    %v1116 = vpop.f32.mrf.mxu0
    %1117 = vmatprep.mubr.f32.mxu0 0.0
    %1118 = vmatmul.mubr.f32.gmra.mxu0 %v284
    %v1119 = vpop.f32.mrf.mxu0
    %v1120 = vadd.f32 %v265, %v1119
    %v1121 = vpop.f32.mrf.mxu0
    %1122 = vmatprep.mubr.f32.mxu0 0.0
    %1123 = vmatmul.mubr.f32.gmra.mxu0 %v285
    %v1124 = vpop.f32.mrf.mxu0
    %v1125 = vadd.f32 %v266, %v1124
    %v1126 = vpop.f32.mrf.mxu0
    %1127 = vmatprep.mubr.f32.mxu0 0.0
    %1128 = vmatmul.mubr.f32.gmra.mxu0 %v286
    %v1129 = vpop.f32.mrf.mxu0
    %v1130 = vadd.f32 %v267, %v1129
    %v1131 = vpop.f32.mrf.mxu0
    %1132 = vmatprep.mubr.f32.mxu0 0.0
    %1133 = vmatmul.mubr.f32.gmra.mxu0 %v287
    %v1134 = vpop.f32.mrf.mxu0
    %v1135 = vadd.f32 %v268, %v1134
    %v1136 = vpop.f32.mrf.mxu0
    %1137 = vmatprep.mubr.f32.mxu0 0.0
    %1138 = vmatmul.mubr.f32.gmra.mxu0 %v288
    %v1139 = vpop.f32.mrf.mxu0
    %v1140 = vadd.f32 %v269, %v1139
    %v1141 = vpop.f32.mrf.mxu0
    %1142 = vmatprep.mubr.f32.mxu0 0.0
    %1143 = vmatmul.mubr.f32.gmra.mxu0 %v289
    %v1144 = vpop.f32.mrf.mxu0
    %v1145 = vadd.f32 %v270, %v1144
    %v1146 = vpop.f32.mrf.mxu0
    %1147 = vmatprep.mubr.f32.mxu0 0.0
    %1148 = vmatmul.mubr.f32.gmra.mxu0 %v290
    %v1149 = vpop.f32.mrf.mxu0
    %v1150 = vadd.f32 %v271, %v1149
    %v1151 = vpop.f32.mrf.mxu0
    %1152 = vmatprep.mubr.f32.mxu0 0.0
    %1153 = vmatmul.mubr.f32.gmra.mxu0 %v291
    %v1154 = vpop.f32.mrf.mxu0
    %v1155 = vadd.f32 %v272, %v1154
    %v1156 = vpop.f32.mrf.mxu0
    %1157 = vmatprep.mubr.f32.mxu0 0.0
    %1158 = vmatmul.mubr.f32.gmra.mxu0 %v292
    %v1159 = vpop.f32.mrf.mxu0
    %v1160 = vadd.f32 %v273, %v1159
    %v1161 = vpop.f32.mrf.mxu0
    %1162 = vdwg.mxu0
    %1163 = vmatprep.subr.mxu0 0.0
    %1164 = vmatpush1.msra.mxu0 %v1160
    %1165 = vmatprep.subr.mxu0 0.0
    %1166 = vmatpush1.msra.mxu0 %v1155
    %1167 = vmatprep.subr.mxu0 0.0
    %1168 = vmatpush1.msra.mxu0 %v1150
    %1169 = vmatprep.subr.mxu0 0.0
    %1170 = vmatpush1.msra.mxu0 %v1145
    %1171 = vmatprep.subr.mxu0 0.0
    %1172 = vmatpush1.msra.mxu0 %v1140
    %1173 = vmatprep.subr.mxu0 0.0
    %1174 = vmatpush1.msra.mxu0 %v1135
    %1175 = vmatprep.subr.mxu0 0.0
    %1176 = vmatpush1.msra.mxu0 %v1130
    %1177 = vmatprep.subr.mxu0 0.0
    %1178 = vmatpush1.msra.mxu0 %v1125
    %1179 = vmatprep.subr.mxu0 0.0
    %1180 = vmatpush1.msra.mxu0 %v1120
    %1181 = vmatprep.subr.mxu0 0.0
    %1182 = vmatpush1.msra.mxu0 %v1115
    %1183 = vmatprep.subr.mxu0 0.0
    %1184 = vmatpush1.msra.mxu0 %v1110
    %1185 = vmatprep.subr.mxu0 0.0
    %1186 = vmatpush1.msra.mxu0 %v1105
    %1187 = vmatprep.subr.mxu0 0.0
    %1188 = vmatpush1.msra.mxu0 %v1100
    %1189 = vmatprep.subr.mxu0 0.0
    %1190 = vmatpush1.msra.mxu0 %v1095
    %1191 = vmatprep.subr.mxu0 0.0
    %1192 = vmatpush1.msra.mxu0 %v1090
    %1193 = vmatprep.subr.mxu0 0.0
    %1194 = vmatpush1.msra.mxu0 %v1085
    %1195 = vmatprep.subr.mxu0 0.0
    %1196 = vmatpush2.msra.mxu0 0.0
    %1197 = vmatprep.subr.mxu0 0.0
    %1198 = vmatpush2.msra.mxu0 0.0
    %1199 = vmatprep.subr.mxu0 0.0
    %1200 = vmatpush2.msra.mxu0 0.0
    %1201 = vmatprep.subr.mxu0 0.0
    %1202 = vmatpush2.msra.mxu0 0.0
    %1203 = vmatprep.subr.mxu0 0.0
    %1204 = vmatpush2.msra.mxu0 0.0
    %1205 = vmatprep.subr.mxu0 0.0
    %1206 = vmatpush2.msra.mxu0 0.0
    %1207 = vmatprep.subr.mxu0 0.0
    %1208 = vmatpush2.msra.mxu0 0.0
    %1209 = vmatprep.subr.mxu0 0.0
    %1210 = vmatpush2.msra.mxu0 0.0
    %1211 = vmatprep.subr.mxu0 0.0
    %1212 = vmatpush2.msra.mxu0 0.0
    %1213 = vmatprep.subr.mxu0 0.0
    %1214 = vmatpush2.msra.mxu0 0.0
    %1215 = vmatprep.subr.mxu0 0.0
    %1216 = vmatpush2.msra.mxu0 0.0
    %1217 = vmatprep.subr.mxu0 0.0
    %1218 = vmatpush2.msra.mxu0 0.0
    %1219 = vmatprep.subr.mxu0 0.0
    %1220 = vmatpush2.msra.mxu0 0.0
    %1221 = vmatprep.subr.mxu0 0.0
    %1222 = vmatpush2.msra.mxu0 0.0
    %1223 = vmatprep.subr.mxu0 0.0
    %1224 = vmatpush2.msra.mxu0 0.0
    %1225 = vmatprep.subr.mxu0 0.0
    %1226 = vmatpush2.msra.mxu0 0.0
    %1227 = vmatprep.mubr.f32.mxu0 0.0
    %1228 = vmatmul.mubr.f32.gmra.mxu0 %v277
    %v1229 = vpop.f32.mrf.mxu0
    %v1230 = vadd.f32 %v258, %v1229
    %v1231 = vpop.f32.mrf.mxu0
    %1232 = vmatprep.mubr.f32.mxu0 0.0
    %1233 = vmatmul.mubr.f32.gmra.mxu0 %v278
    %v1234 = vpop.f32.mrf.mxu0
    %v1235 = vadd.f32 %v259, %v1234
    %v1236 = vpop.f32.mrf.mxu0
    %1237 = vmatprep.mubr.f32.mxu0 0.0
    %1238 = vmatmul.mubr.f32.gmra.mxu0 %v279
    %v1239 = vpop.f32.mrf.mxu0
    %v1240 = vadd.f32 %v260, %v1239
    %v1241 = vpop.f32.mrf.mxu0
    %1242 = vmatprep.mubr.f32.mxu0 0.0
    %1243 = vmatmul.mubr.f32.gmra.mxu0 %v280
    %v1244 = vpop.f32.mrf.mxu0
    %v1245 = vadd.f32 %v261, %v1244
    %v1246 = vpop.f32.mrf.mxu0
    %1247 = vmatprep.mubr.f32.mxu0 0.0
    %1248 = vmatmul.mubr.f32.gmra.mxu0 %v281
    %v1249 = vpop.f32.mrf.mxu0
    %v1250 = vadd.f32 %v262, %v1249
    %v1251 = vpop.f32.mrf.mxu0
    %1252 = vmatprep.mubr.f32.mxu0 0.0
    %1253 = vmatmul.mubr.f32.gmra.mxu0 %v282
    %v1254 = vpop.f32.mrf.mxu0
    %v1255 = vadd.f32 %v263, %v1254
    %v1256 = vpop.f32.mrf.mxu0
    %1257 = vmatprep.mubr.f32.mxu0 0.0
    %1258 = vmatmul.mubr.f32.gmra.mxu0 %v283
    %v1259 = vpop.f32.mrf.mxu0
    %v1260 = vadd.f32 %v264, %v1259
    %v1261 = vpop.f32.mrf.mxu0
    %1262 = vmatprep.mubr.f32.mxu0 0.0
    %1263 = vmatmul.mubr.f32.gmra.mxu0 %v284
    %v1264 = vpop.f32.mrf.mxu0
    %v1265 = vadd.f32 %v265, %v1264
    %v1266 = vpop.f32.mrf.mxu0
    %1267 = vmatprep.mubr.f32.mxu0 0.0
    %1268 = vmatmul.mubr.f32.gmra.mxu0 %v285
    %v1269 = vpop.f32.mrf.mxu0
    %v1270 = vadd.f32 %v266, %v1269
    %v1271 = vpop.f32.mrf.mxu0
    %1272 = vmatprep.mubr.f32.mxu0 0.0
    %1273 = vmatmul.mubr.f32.gmra.mxu0 %v286
    %v1274 = vpop.f32.mrf.mxu0
    %v1275 = vadd.f32 %v267, %v1274
    %v1276 = vpop.f32.mrf.mxu0
    %1277 = vmatprep.mubr.f32.mxu0 0.0
    %1278 = vmatmul.mubr.f32.gmra.mxu0 %v287
    %v1279 = vpop.f32.mrf.mxu0
    %v1280 = vadd.f32 %v268, %v1279
    %v1281 = vpop.f32.mrf.mxu0
    %1282 = vmatprep.mubr.f32.mxu0 0.0
    %1283 = vmatmul.mubr.f32.gmra.mxu0 %v288
    %v1284 = vpop.f32.mrf.mxu0
    %v1285 = vadd.f32 %v269, %v1284
    %v1286 = vpop.f32.mrf.mxu0
    %1287 = vmatprep.mubr.f32.mxu0 0.0
    %1288 = vmatmul.mubr.f32.gmra.mxu0 %v289
    %v1289 = vpop.f32.mrf.mxu0
    %v1290 = vadd.f32 %v270, %v1289
    %v1291 = vpop.f32.mrf.mxu0
    %1292 = vmatprep.mubr.f32.mxu0 0.0
    %1293 = vmatmul.mubr.f32.gmra.mxu0 %v290
    %v1294 = vpop.f32.mrf.mxu0
    %v1295 = vadd.f32 %v271, %v1294
    %v1296 = vpop.f32.mrf.mxu0
    %1297 = vmatprep.mubr.f32.mxu0 0.0
    %1298 = vmatmul.mubr.f32.gmra.mxu0 %v291
    %v1299 = vpop.f32.mrf.mxu0
    %v1300 = vadd.f32 %v272, %v1299
    %v1301 = vpop.f32.mrf.mxu0
    %1302 = vmatprep.mubr.f32.mxu0 0.0
    %1303 = vmatmul.mubr.f32.gmra.mxu0 %v292
    %v1304 = vpop.f32.mrf.mxu0
    %v1305 = vadd.f32 %v273, %v1304
    %v1306 = vpop.f32.mrf.mxu0
    %1307 = vdwg.mxu0
    %1308 = vmatprep.subr.mxu0 0.0
    %1309 = vmatpush1.msra.mxu0 %v1305
    %1310 = vmatprep.subr.mxu0 0.0
    %1311 = vmatpush1.msra.mxu0 %v1300
    %1312 = vmatprep.subr.mxu0 0.0
    %1313 = vmatpush1.msra.mxu0 %v1295
    %1314 = vmatprep.subr.mxu0 0.0
    %1315 = vmatpush1.msra.mxu0 %v1290
    %1316 = vmatprep.subr.mxu0 0.0
    %1317 = vmatpush1.msra.mxu0 %v1285
    %1318 = vmatprep.subr.mxu0 0.0
    %1319 = vmatpush1.msra.mxu0 %v1280
    %1320 = vmatprep.subr.mxu0 0.0
    %1321 = vmatpush1.msra.mxu0 %v1275
    %1322 = vmatprep.subr.mxu0 0.0
    %1323 = vmatpush1.msra.mxu0 %v1270
    %1324 = vmatprep.subr.mxu0 0.0
    %1325 = vmatpush1.msra.mxu0 %v1265
    %1326 = vmatprep.subr.mxu0 0.0
    %1327 = vmatpush1.msra.mxu0 %v1260
    %1328 = vmatprep.subr.mxu0 0.0
    %1329 = vmatpush1.msra.mxu0 %v1255
    %1330 = vmatprep.subr.mxu0 0.0
    %1331 = vmatpush1.msra.mxu0 %v1250
    %1332 = vmatprep.subr.mxu0 0.0
    %1333 = vmatpush1.msra.mxu0 %v1245
    %1334 = vmatprep.subr.mxu0 0.0
    %1335 = vmatpush1.msra.mxu0 %v1240
    %1336 = vmatprep.subr.mxu0 0.0
    %1337 = vmatpush1.msra.mxu0 %v1235
    %1338 = vmatprep.subr.mxu0 0.0
    %1339 = vmatpush1.msra.mxu0 %v1230
    %1340 = vmatprep.subr.mxu0 0.0
    %1341 = vmatpush2.msra.mxu0 0.0
    %1342 = vmatprep.subr.mxu0 0.0
    %1343 = vmatpush2.msra.mxu0 0.0
    %1344 = vmatprep.subr.mxu0 0.0
    %1345 = vmatpush2.msra.mxu0 0.0
    %1346 = vmatprep.subr.mxu0 0.0
    %1347 = vmatpush2.msra.mxu0 0.0
    %1348 = vmatprep.subr.mxu0 0.0
    %1349 = vmatpush2.msra.mxu0 0.0
    %1350 = vmatprep.subr.mxu0 0.0
    %1351 = vmatpush2.msra.mxu0 0.0
    %1352 = vmatprep.subr.mxu0 0.0
    %1353 = vmatpush2.msra.mxu0 0.0
    %1354 = vmatprep.subr.mxu0 0.0
    %1355 = vmatpush2.msra.mxu0 0.0
    %1356 = vmatprep.subr.mxu0 0.0
    %1357 = vmatpush2.msra.mxu0 0.0
    %1358 = vmatprep.subr.mxu0 0.0
    %1359 = vmatpush2.msra.mxu0 0.0
    %1360 = vmatprep.subr.mxu0 0.0
    %1361 = vmatpush2.msra.mxu0 0.0
    %1362 = vmatprep.subr.mxu0 0.0
    %1363 = vmatpush2.msra.mxu0 0.0
    %1364 = vmatprep.subr.mxu0 0.0
    %1365 = vmatpush2.msra.mxu0 0.0
    %1366 = vmatprep.subr.mxu0 0.0
    %1367 = vmatpush2.msra.mxu0 0.0
    %1368 = vmatprep.subr.mxu0 0.0
    %1369 = vmatpush2.msra.mxu0 0.0
    %1370 = vmatprep.subr.mxu0 0.0
    %1371 = vmatpush2.msra.mxu0 0.0
    %1372 = vmatprep.mubr.f32.mxu0 0.0
    %1373 = vmatmul.mubr.f32.gmra.mxu0 %v277
    %v1374 = vpop.f32.mrf.mxu0
    %v1375 = vadd.f32 %v258, %v1374
    %v1376 = vpop.f32.mrf.mxu0
    %1377 = vmatprep.mubr.f32.mxu0 0.0
    %1378 = vmatmul.mubr.f32.gmra.mxu0 %v278
    %v1379 = vpop.f32.mrf.mxu0
    %v1380 = vadd.f32 %v259, %v1379
    %v1381 = vpop.f32.mrf.mxu0
    %1382 = vmatprep.mubr.f32.mxu0 0.0
    %1383 = vmatmul.mubr.f32.gmra.mxu0 %v279
    %v1384 = vpop.f32.mrf.mxu0
    %v1385 = vadd.f32 %v260, %v1384
    %v1386 = vpop.f32.mrf.mxu0
    %1387 = vmatprep.mubr.f32.mxu0 0.0
    %1388 = vmatmul.mubr.f32.gmra.mxu0 %v280
    %v1389 = vpop.f32.mrf.mxu0
    %v1390 = vadd.f32 %v261, %v1389
    %v1391 = vpop.f32.mrf.mxu0
    %1392 = vmatprep.mubr.f32.mxu0 0.0
    %1393 = vmatmul.mubr.f32.gmra.mxu0 %v281
    %v1394 = vpop.f32.mrf.mxu0
    %v1395 = vadd.f32 %v262, %v1394
    %v1396 = vpop.f32.mrf.mxu0
    %1397 = vmatprep.mubr.f32.mxu0 0.0
    %1398 = vmatmul.mubr.f32.gmra.mxu0 %v282
    %v1399 = vpop.f32.mrf.mxu0
    %v1400 = vadd.f32 %v263, %v1399
    %v1401 = vpop.f32.mrf.mxu0
    %1402 = vmatprep.mubr.f32.mxu0 0.0
    %1403 = vmatmul.mubr.f32.gmra.mxu0 %v283
    %v1404 = vpop.f32.mrf.mxu0
    %v1405 = vadd.f32 %v264, %v1404
    %v1406 = vpop.f32.mrf.mxu0
    %1407 = vmatprep.mubr.f32.mxu0 0.0
    %1408 = vmatmul.mubr.f32.gmra.mxu0 %v284
    %v1409 = vpop.f32.mrf.mxu0
    %v1410 = vadd.f32 %v265, %v1409
    %v1411 = vpop.f32.mrf.mxu0
    %1412 = vmatprep.mubr.f32.mxu0 0.0
    %1413 = vmatmul.mubr.f32.gmra.mxu0 %v285
    %v1414 = vpop.f32.mrf.mxu0
    %v1415 = vadd.f32 %v266, %v1414
    %v1416 = vpop.f32.mrf.mxu0
    %1417 = vmatprep.mubr.f32.mxu0 0.0
    %1418 = vmatmul.mubr.f32.gmra.mxu0 %v286
    %v1419 = vpop.f32.mrf.mxu0
    %v1420 = vadd.f32 %v267, %v1419
    %v1421 = vpop.f32.mrf.mxu0
    %1422 = vmatprep.mubr.f32.mxu0 0.0
    %1423 = vmatmul.mubr.f32.gmra.mxu0 %v287
    %v1424 = vpop.f32.mrf.mxu0
    %v1425 = vadd.f32 %v268, %v1424
    %v1426 = vpop.f32.mrf.mxu0
    %1427 = vmatprep.mubr.f32.mxu0 0.0
    %1428 = vmatmul.mubr.f32.gmra.mxu0 %v288
    %v1429 = vpop.f32.mrf.mxu0
    %v1430 = vadd.f32 %v269, %v1429
    %v1431 = vpop.f32.mrf.mxu0
    %1432 = vmatprep.mubr.f32.mxu0 0.0
    %1433 = vmatmul.mubr.f32.gmra.mxu0 %v289
    %v1434 = vpop.f32.mrf.mxu0
    %v1435 = vadd.f32 %v270, %v1434
    %v1436 = vpop.f32.mrf.mxu0
    %1437 = vmatprep.mubr.f32.mxu0 0.0
    %1438 = vmatmul.mubr.f32.gmra.mxu0 %v290
    %v1439 = vpop.f32.mrf.mxu0
    %v1440 = vadd.f32 %v271, %v1439
    %v1441 = vpop.f32.mrf.mxu0
    %1442 = vmatprep.mubr.f32.mxu0 0.0
    %1443 = vmatmul.mubr.f32.gmra.mxu0 %v291
    %v1444 = vpop.f32.mrf.mxu0
    %v1445 = vadd.f32 %v272, %v1444
    %v1446 = vpop.f32.mrf.mxu0
    %1447 = vmatprep.mubr.f32.mxu0 0.0
    %1448 = vmatmul.mubr.f32.gmra.mxu0 %v292
    %v1449 = vpop.f32.mrf.mxu0
    %v1450 = vadd.f32 %v273, %v1449
    %v1451 = vpop.f32.mrf.mxu0
    %1452 = vdwg.mxu0
    %1453 = vmatprep.subr.mxu0 0.0
    %1454 = vmatpush1.msra.mxu0 %v1450
    %1455 = vmatprep.subr.mxu0 0.0
    %1456 = vmatpush1.msra.mxu0 %v1445
    %1457 = vmatprep.subr.mxu0 0.0
    %1458 = vmatpush1.msra.mxu0 %v1440
    %1459 = vmatprep.subr.mxu0 0.0
    %1460 = vmatpush1.msra.mxu0 %v1435
    %1461 = vmatprep.subr.mxu0 0.0
    %1462 = vmatpush1.msra.mxu0 %v1430
    %1463 = vmatprep.subr.mxu0 0.0
    %1464 = vmatpush1.msra.mxu0 %v1425
    %1465 = vmatprep.subr.mxu0 0.0
    %1466 = vmatpush1.msra.mxu0 %v1420
    %1467 = vmatprep.subr.mxu0 0.0
    %1468 = vmatpush1.msra.mxu0 %v1415
    %1469 = vmatprep.subr.mxu0 0.0
    %1470 = vmatpush1.msra.mxu0 %v1410
    %1471 = vmatprep.subr.mxu0 0.0
    %1472 = vmatpush1.msra.mxu0 %v1405
    %1473 = vmatprep.subr.mxu0 0.0
    %1474 = vmatpush1.msra.mxu0 %v1400
    %1475 = vmatprep.subr.mxu0 0.0
    %1476 = vmatpush1.msra.mxu0 %v1395
    %1477 = vmatprep.subr.mxu0 0.0
    %1478 = vmatpush1.msra.mxu0 %v1390
    %1479 = vmatprep.subr.mxu0 0.0
    %1480 = vmatpush1.msra.mxu0 %v1385
    %1481 = vmatprep.subr.mxu0 0.0
    %1482 = vmatpush1.msra.mxu0 %v1380
    %1483 = vmatprep.subr.mxu0 0.0
    %1484 = vmatpush1.msra.mxu0 %v1375
    %1485 = vmatprep.subr.mxu0 0.0
    %1486 = vmatpush2.msra.mxu0 0.0
    %1487 = vmatprep.subr.mxu0 0.0
    %1488 = vmatpush2.msra.mxu0 0.0
    %1489 = vmatprep.subr.mxu0 0.0
    %1490 = vmatpush2.msra.mxu0 0.0
    %1491 = vmatprep.subr.mxu0 0.0
    %1492 = vmatpush2.msra.mxu0 0.0
    %1493 = vmatprep.subr.mxu0 0.0
    %1494 = vmatpush2.msra.mxu0 0.0
    %1495 = vmatprep.subr.mxu0 0.0
    %1496 = vmatpush2.msra.mxu0 0.0
    %1497 = vmatprep.subr.mxu0 0.0
    %1498 = vmatpush2.msra.mxu0 0.0
    %1499 = vmatprep.subr.mxu0 0.0
    %1500 = vmatpush2.msra.mxu0 0.0
    %1501 = vmatprep.subr.mxu0 0.0
    %1502 = vmatpush2.msra.mxu0 0.0
    %1503 = vmatprep.subr.mxu0 0.0
    %1504 = vmatpush2.msra.mxu0 0.0
    %1505 = vmatprep.subr.mxu0 0.0
    %1506 = vmatpush2.msra.mxu0 0.0
    %1507 = vmatprep.subr.mxu0 0.0
    %1508 = vmatpush2.msra.mxu0 0.0
    %1509 = vmatprep.subr.mxu0 0.0
    %1510 = vmatpush2.msra.mxu0 0.0
    %1511 = vmatprep.subr.mxu0 0.0
    %1512 = vmatpush2.msra.mxu0 0.0
    %1513 = vmatprep.subr.mxu0 0.0
    %1514 = vmatpush2.msra.mxu0 0.0
    %1515 = vmatprep.subr.mxu0 0.0
    %1516 = vmatpush2.msra.mxu0 0.0
    %1517 = vmatprep.mubr.f32.mxu0 0.0
    %1518 = vmatmul.mubr.f32.gmra.mxu0 %v277
    %v1519 = vpop.f32.mrf.mxu0
    %v1520 = vadd.f32 %v258, %v1519
    %v1521 = vpop.f32.mrf.mxu0
    %1522 = vmatprep.mubr.f32.mxu0 0.0
    %1523 = vmatmul.mubr.f32.gmra.mxu0 %v278
    %v1524 = vpop.f32.mrf.mxu0
    %v1525 = vadd.f32 %v259, %v1524
    %v1526 = vpop.f32.mrf.mxu0
    %1527 = vmatprep.mubr.f32.mxu0 0.0
    %1528 = vmatmul.mubr.f32.gmra.mxu0 %v279
    %v1529 = vpop.f32.mrf.mxu0
    %v1530 = vadd.f32 %v260, %v1529
    %v1531 = vpop.f32.mrf.mxu0
    %1532 = vmatprep.mubr.f32.mxu0 0.0
    %1533 = vmatmul.mubr.f32.gmra.mxu0 %v280
    %v1534 = vpop.f32.mrf.mxu0
    %v1535 = vadd.f32 %v261, %v1534
    %v1536 = vpop.f32.mrf.mxu0
    %1537 = vmatprep.mubr.f32.mxu0 0.0
    %1538 = vmatmul.mubr.f32.gmra.mxu0 %v281
    %v1539 = vpop.f32.mrf.mxu0
    %v1540 = vadd.f32 %v262, %v1539
    %v1541 = vpop.f32.mrf.mxu0
    %1542 = vmatprep.mubr.f32.mxu0 0.0
    %1543 = vmatmul.mubr.f32.gmra.mxu0 %v282
    %v1544 = vpop.f32.mrf.mxu0
    %v1545 = vadd.f32 %v263, %v1544
    %v1546 = vpop.f32.mrf.mxu0
    %1547 = vmatprep.mubr.f32.mxu0 0.0
    %1548 = vmatmul.mubr.f32.gmra.mxu0 %v283
    %v1549 = vpop.f32.mrf.mxu0
    %v1550 = vadd.f32 %v264, %v1549
    %v1551 = vpop.f32.mrf.mxu0
    %1552 = vmatprep.mubr.f32.mxu0 0.0
    %1553 = vmatmul.mubr.f32.gmra.mxu0 %v284
    %v1554 = vpop.f32.mrf.mxu0
    %v1555 = vadd.f32 %v265, %v1554
    %v1556 = vpop.f32.mrf.mxu0
    %1557 = vmatprep.mubr.f32.mxu0 0.0
    %1558 = vmatmul.mubr.f32.gmra.mxu0 %v285
    %v1559 = vpop.f32.mrf.mxu0
    %v1560 = vadd.f32 %v266, %v1559
    %v1561 = vpop.f32.mrf.mxu0
    %1562 = vmatprep.mubr.f32.mxu0 0.0
    %1563 = vmatmul.mubr.f32.gmra.mxu0 %v286
    %v1564 = vpop.f32.mrf.mxu0
    %v1565 = vadd.f32 %v267, %v1564
    %v1566 = vpop.f32.mrf.mxu0
    %1567 = vmatprep.mubr.f32.mxu0 0.0
    %1568 = vmatmul.mubr.f32.gmra.mxu0 %v287
    %v1569 = vpop.f32.mrf.mxu0
    %v1570 = vadd.f32 %v268, %v1569
    %v1571 = vpop.f32.mrf.mxu0
    %1572 = vmatprep.mubr.f32.mxu0 0.0
    %1573 = vmatmul.mubr.f32.gmra.mxu0 %v288
    %v1574 = vpop.f32.mrf.mxu0
    %v1575 = vadd.f32 %v269, %v1574
    %v1576 = vpop.f32.mrf.mxu0
    %1577 = vmatprep.mubr.f32.mxu0 0.0
    %1578 = vmatmul.mubr.f32.gmra.mxu0 %v289
    %v1579 = vpop.f32.mrf.mxu0
    %v1580 = vadd.f32 %v270, %v1579
    %v1581 = vpop.f32.mrf.mxu0
    %1582 = vmatprep.mubr.f32.mxu0 0.0
    %1583 = vmatmul.mubr.f32.gmra.mxu0 %v290
    %v1584 = vpop.f32.mrf.mxu0
    %v1585 = vadd.f32 %v271, %v1584
    %v1586 = vpop.f32.mrf.mxu0
    %1587 = vmatprep.mubr.f32.mxu0 0.0
    %1588 = vmatmul.mubr.f32.gmra.mxu0 %v291
    %v1589 = vpop.f32.mrf.mxu0
    %v1590 = vadd.f32 %v272, %v1589
    %v1591 = vpop.f32.mrf.mxu0
    %1592 = vmatprep.mubr.f32.mxu0 0.0
    %1593 = vmatmul.mubr.f32.gmra.mxu0 %v292
    %v1594 = vpop.f32.mrf.mxu0
    %v1595 = vadd.f32 %v273, %v1594
    %v1596 = vpop.f32.mrf.mxu0
    %1597 = vdwg.mxu0
    %1598 = vmatprep.subr.mxu0 0.0
    %1599 = vmatpush1.msra.mxu0 %v1595
    %1600 = vmatprep.subr.mxu0 0.0
    %1601 = vmatpush1.msra.mxu0 %v1590
    %1602 = vmatprep.subr.mxu0 0.0
    %1603 = vmatpush1.msra.mxu0 %v1585
    %1604 = vmatprep.subr.mxu0 0.0
    %1605 = vmatpush1.msra.mxu0 %v1580
    %1606 = vmatprep.subr.mxu0 0.0
    %1607 = vmatpush1.msra.mxu0 %v1575
    %1608 = vmatprep.subr.mxu0 0.0
    %1609 = vmatpush1.msra.mxu0 %v1570
    %1610 = vmatprep.subr.mxu0 0.0
    %1611 = vmatpush1.msra.mxu0 %v1565
    %1612 = vmatprep.subr.mxu0 0.0
    %1613 = vmatpush1.msra.mxu0 %v1560
    %1614 = vmatprep.subr.mxu0 0.0
    %1615 = vmatpush1.msra.mxu0 %v1555
    %1616 = vmatprep.subr.mxu0 0.0
    %1617 = vmatpush1.msra.mxu0 %v1550
    %1618 = vmatprep.subr.mxu0 0.0
    %1619 = vmatpush1.msra.mxu0 %v1545
    %1620 = vmatprep.subr.mxu0 0.0
    %1621 = vmatpush1.msra.mxu0 %v1540
    %1622 = vmatprep.subr.mxu0 0.0
    %1623 = vmatpush1.msra.mxu0 %v1535
    %1624 = vmatprep.subr.mxu0 0.0
    %1625 = vmatpush1.msra.mxu0 %v1530
    %1626 = vmatprep.subr.mxu0 0.0
    %1627 = vmatpush1.msra.mxu0 %v1525
    %1628 = vmatprep.subr.mxu0 0.0
    %1629 = vmatpush1.msra.mxu0 %v1520
    %1630 = vmatprep.subr.mxu0 0.0
    %1631 = vmatpush2.msra.mxu0 0.0
    %1632 = vmatprep.subr.mxu0 0.0
    %1633 = vmatpush2.msra.mxu0 0.0
    %1634 = vmatprep.subr.mxu0 0.0
    %1635 = vmatpush2.msra.mxu0 0.0
    %1636 = vmatprep.subr.mxu0 0.0
    %1637 = vmatpush2.msra.mxu0 0.0
    %1638 = vmatprep.subr.mxu0 0.0
    %1639 = vmatpush2.msra.mxu0 0.0
    %1640 = vmatprep.subr.mxu0 0.0
    %1641 = vmatpush2.msra.mxu0 0.0
    %1642 = vmatprep.subr.mxu0 0.0
    %1643 = vmatpush2.msra.mxu0 0.0
    %1644 = vmatprep.subr.mxu0 0.0
    %1645 = vmatpush2.msra.mxu0 0.0
    %1646 = vmatprep.subr.mxu0 0.0
    %1647 = vmatpush2.msra.mxu0 0.0
    %1648 = vmatprep.subr.mxu0 0.0
    %1649 = vmatpush2.msra.mxu0 0.0
    %1650 = vmatprep.subr.mxu0 0.0
    %1651 = vmatpush2.msra.mxu0 0.0
    %1652 = vmatprep.subr.mxu0 0.0
    %1653 = vmatpush2.msra.mxu0 0.0
    %1654 = vmatprep.subr.mxu0 0.0
    %1655 = vmatpush2.msra.mxu0 0.0
    %1656 = vmatprep.subr.mxu0 0.0
    %1657 = vmatpush2.msra.mxu0 0.0
    %1658 = vmatprep.subr.mxu0 0.0
    %1659 = vmatpush2.msra.mxu0 0.0
    %1660 = vmatprep.subr.mxu0 0.0
    %1661 = vmatpush2.msra.mxu0 0.0
    %1662 = vmatprep.mubr.f32.mxu0 0.0
    %1663 = vmatmul.mubr.f32.gmra.mxu0 %v277
    %v1664 = vpop.f32.mrf.mxu0
    %v1665 = vadd.f32 %v258, %v1664
    %v1666 = vpop.f32.mrf.mxu0
    %1667 = vmatprep.mubr.f32.mxu0 0.0
    %1668 = vmatmul.mubr.f32.gmra.mxu0 %v278
    %v1669 = vpop.f32.mrf.mxu0
    %v1670 = vadd.f32 %v259, %v1669
    %v1671 = vpop.f32.mrf.mxu0
    %1672 = vmatprep.mubr.f32.mxu0 0.0
    %1673 = vmatmul.mubr.f32.gmra.mxu0 %v279
    %v1674 = vpop.f32.mrf.mxu0
    %v1675 = vadd.f32 %v260, %v1674
    %v1676 = vpop.f32.mrf.mxu0
    %1677 = vmatprep.mubr.f32.mxu0 0.0
    %1678 = vmatmul.mubr.f32.gmra.mxu0 %v280
    %v1679 = vpop.f32.mrf.mxu0
    %v1680 = vadd.f32 %v261, %v1679
    %v1681 = vpop.f32.mrf.mxu0
    %1682 = vmatprep.mubr.f32.mxu0 0.0
    %1683 = vmatmul.mubr.f32.gmra.mxu0 %v281
    %v1684 = vpop.f32.mrf.mxu0
    %v1685 = vadd.f32 %v262, %v1684
    %v1686 = vpop.f32.mrf.mxu0
    %1687 = vmatprep.mubr.f32.mxu0 0.0
    %1688 = vmatmul.mubr.f32.gmra.mxu0 %v282
    %v1689 = vpop.f32.mrf.mxu0
    %v1690 = vadd.f32 %v263, %v1689
    %v1691 = vpop.f32.mrf.mxu0
    %1692 = vmatprep.mubr.f32.mxu0 0.0
    %1693 = vmatmul.mubr.f32.gmra.mxu0 %v283
    %v1694 = vpop.f32.mrf.mxu0
    %v1695 = vadd.f32 %v264, %v1694
    %v1696 = vpop.f32.mrf.mxu0
    %1697 = vmatprep.mubr.f32.mxu0 0.0
    %1698 = vmatmul.mubr.f32.gmra.mxu0 %v284
    %v1699 = vpop.f32.mrf.mxu0
    %v1700 = vadd.f32 %v265, %v1699
    %v1701 = vpop.f32.mrf.mxu0
    %1702 = vmatprep.mubr.f32.mxu0 0.0
    %1703 = vmatmul.mubr.f32.gmra.mxu0 %v285
    %v1704 = vpop.f32.mrf.mxu0
    %v1705 = vadd.f32 %v266, %v1704
    %v1706 = vpop.f32.mrf.mxu0
    %1707 = vmatprep.mubr.f32.mxu0 0.0
    %1708 = vmatmul.mubr.f32.gmra.mxu0 %v286
    %v1709 = vpop.f32.mrf.mxu0
    %v1710 = vadd.f32 %v267, %v1709
    %v1711 = vpop.f32.mrf.mxu0
    %1712 = vmatprep.mubr.f32.mxu0 0.0
    %1713 = vmatmul.mubr.f32.gmra.mxu0 %v287
    %v1714 = vpop.f32.mrf.mxu0
    %v1715 = vadd.f32 %v268, %v1714
    %v1716 = vpop.f32.mrf.mxu0
    %1717 = vmatprep.mubr.f32.mxu0 0.0
    %1718 = vmatmul.mubr.f32.gmra.mxu0 %v288
    %v1719 = vpop.f32.mrf.mxu0
    %v1720 = vadd.f32 %v269, %v1719
    %v1721 = vpop.f32.mrf.mxu0
    %1722 = vmatprep.mubr.f32.mxu0 0.0
    %1723 = vmatmul.mubr.f32.gmra.mxu0 %v289
    %v1724 = vpop.f32.mrf.mxu0
    %v1725 = vadd.f32 %v270, %v1724
    %v1726 = vpop.f32.mrf.mxu0
    %1727 = vmatprep.mubr.f32.mxu0 0.0
    %1728 = vmatmul.mubr.f32.gmra.mxu0 %v290
    %v1729 = vpop.f32.mrf.mxu0
    %v1730 = vadd.f32 %v271, %v1729
    %v1731 = vpop.f32.mrf.mxu0
    %1732 = vmatprep.mubr.f32.mxu0 0.0
    %1733 = vmatmul.mubr.f32.gmra.mxu0 %v291
    %v1734 = vpop.f32.mrf.mxu0
    %v1735 = vadd.f32 %v272, %v1734
    %v1736 = vpop.f32.mrf.mxu0
    %1737 = vmatprep.mubr.f32.mxu0 0.0
    %1738 = vmatmul.mubr.f32.gmra.mxu0 %v292
    %v1739 = vpop.f32.mrf.mxu0
    %v1740 = vadd.f32 %v273, %v1739
    %v1741 = vpop.f32.mrf.mxu0
    %1742 = vdwg.mxu0
    %v1743 = vmax.f32 %v1665, 0.0
    %v1744 = vmax.f32 %v1670, 0.0
    %v1745 = vmax.f32 %v1675, 0.0
    %v1746 = vmax.f32 %v1680, 0.0
    %v1747 = vmax.f32 %v1685, 0.0
    %v1748 = vmax.f32 %v1690, 0.0
    %v1749 = vmax.f32 %v1695, 0.0
    %v1750 = vmax.f32 %v1700, 0.0
    %v1751 = vmax.f32 %v1705, 0.0
    %v1752 = vmax.f32 %v1710, 0.0
    %v1753 = vmax.f32 %v1715, 0.0
    %v1754 = vmax.f32 %v1720, 0.0
    %v1755 = vmax.f32 %v1725, 0.0
    %v1756 = vmax.f32 %v1730, 0.0
    %v1757 = vmax.f32 %v1735, 0.0
    %v1758 = vmax.f32 %v1740, 0.0
    %v1759 = vld [vmem:[#allocation9] sm:$0xff]
    %v1760 = vld [vmem:[#allocation9 + $0x8] sm:$0xff]
    %v1761 = vld [vmem:[#allocation9 + $0x10] sm:$0xff]
    %v1762 = vld [vmem:[#allocation9 + $0x18] sm:$0xff]
    %v1763 = vld [vmem:[#allocation9 + $0x20] sm:$0xff]
    %v1764 = vld [vmem:[#allocation9 + $0x28] sm:$0xff]
    %v1765 = vld [vmem:[#allocation9 + $0x30] sm:$0xff]
    %v1766 = vld [vmem:[#allocation9 + $0x38] sm:$0xff]
    %v1767 = vld [vmem:[#allocation9 + $0x40] sm:$0xff]
    %v1768 = vld [vmem:[#allocation9 + $0x48] sm:$0xff]
    %v1769 = vld [vmem:[#allocation9 + $0x50] sm:$0xff]
    %v1770 = vld [vmem:[#allocation9 + $0x58] sm:$0xff]
    %v1771 = vld [vmem:[#allocation9 + $0x60] sm:$0xff]
    %v1772 = vld [vmem:[#allocation9 + $0x68] sm:$0xff]
    %v1773 = vld [vmem:[#allocation9 + $0x70] sm:$0xff]
    %v1774 = vld [vmem:[#allocation9 + $0x78] sm:$0xff]
    %v1775 = vld [vmem:[%s4] sm:$0x1]
    %v1777 = vlaneseq
    %v1778 = vshrl.u32 %v1777, 7
    %v1779 = vsub.s32 0, %v1778
    %v1780 = vrot.slane %v1775, %v1779
    %1782 = vmatprep.subr.mxu0 0.0
    %1783 = vmatpush1.msra.mxu0 %v1774
    %1784 = vmatprep.subr.mxu0 0.0
    %1785 = vmatpush1.msra.mxu0 %v1773
    %1786 = vmatprep.subr.mxu0 0.0
    %1787 = vmatpush1.msra.mxu0 %v1772
    %1788 = vmatprep.subr.mxu0 0.0
    %1789 = vmatpush1.msra.mxu0 %v1771
    %1790 = vmatprep.subr.mxu0 0.0
    %1791 = vmatpush1.msra.mxu0 %v1770
    %1792 = vmatprep.subr.mxu0 0.0
    %1793 = vmatpush1.msra.mxu0 %v1769
    %1794 = vmatprep.subr.mxu0 0.0
    %1795 = vmatpush1.msra.mxu0 %v1768
    %1796 = vmatprep.subr.mxu0 0.0
    %1797 = vmatpush1.msra.mxu0 %v1767
    %1798 = vmatprep.subr.mxu0 0.0
    %1799 = vmatpush1.msra.mxu0 %v1766
    %1800 = vmatprep.subr.mxu0 0.0
    %1801 = vmatpush1.msra.mxu0 %v1765
    %1802 = vmatprep.subr.mxu0 0.0
    %1803 = vmatpush1.msra.mxu0 %v1764
    %1804 = vmatprep.subr.mxu0 0.0
    %1805 = vmatpush1.msra.mxu0 %v1763
    %1806 = vmatprep.subr.mxu0 0.0
    %1807 = vmatpush1.msra.mxu0 %v1762
    %1808 = vmatprep.subr.mxu0 0.0
    %1809 = vmatpush1.msra.mxu0 %v1761
    %1810 = vmatprep.subr.mxu0 0.0
    %1811 = vmatpush1.msra.mxu0 %v1760
    %1812 = vmatprep.subr.mxu0 0.0
    %1813 = vmatpush1.msra.mxu0 %v1759
    %1814 = vmatprep.subr.mxu0 0.0
    %1815 = vmatpush2.msra.mxu0 0.0
    %1816 = vmatprep.subr.mxu0 0.0
    %1817 = vmatpush2.msra.mxu0 0.0
    %1818 = vmatprep.subr.mxu0 0.0
    %1819 = vmatpush2.msra.mxu0 0.0
    %1820 = vmatprep.subr.mxu0 0.0
    %1821 = vmatpush2.msra.mxu0 0.0
    %1822 = vmatprep.subr.mxu0 0.0
    %1823 = vmatpush2.msra.mxu0 0.0
    %1824 = vmatprep.subr.mxu0 0.0
    %1825 = vmatpush2.msra.mxu0 0.0
    %1826 = vmatprep.subr.mxu0 0.0
    %1827 = vmatpush2.msra.mxu0 0.0
    %1828 = vmatprep.subr.mxu0 0.0
    %1829 = vmatpush2.msra.mxu0 0.0
    %1830 = vmatprep.subr.mxu0 0.0
    %1831 = vmatpush2.msra.mxu0 0.0
    %1832 = vmatprep.subr.mxu0 0.0
    %1833 = vmatpush2.msra.mxu0 0.0
    %1834 = vmatprep.subr.mxu0 0.0
    %1835 = vmatpush2.msra.mxu0 0.0
    %1836 = vmatprep.subr.mxu0 0.0
    %1837 = vmatpush2.msra.mxu0 0.0
    %1838 = vmatprep.subr.mxu0 0.0
    %1839 = vmatpush2.msra.mxu0 0.0
    %1840 = vmatprep.subr.mxu0 0.0
    %1841 = vmatpush2.msra.mxu0 0.0
    %1842 = vmatprep.subr.mxu0 0.0
    %1843 = vmatpush2.msra.mxu0 0.0
    %1844 = vmatprep.subr.mxu0 0.0
    %1845 = vmatpush2.msra.mxu0 0.0
    %1846 = vmatprep.mubr.f32.mxu0 0.0
    %1847 = vmatmul.mubr.f32.gmra.mxu0 %v1743
    %v1848 = vpop.f32.mrf.mxu0
    %v1849 = vadd.f32 %v1780, %v1848
    %v1850 = vpop.f32.mrf.mxu0
    %1851 = vmatprep.mubr.f32.mxu0 0.0
    %1852 = vmatmul.mubr.f32.gmra.mxu0 %v1744
    %v1853 = vpop.f32.mrf.mxu0
    %v1854 = vadd.f32 %v1780, %v1853
    %v1855 = vpop.f32.mrf.mxu0
    %1856 = vmatprep.mubr.f32.mxu0 0.0
    %1857 = vmatmul.mubr.f32.gmra.mxu0 %v1745
    %v1858 = vpop.f32.mrf.mxu0
    %v1859 = vadd.f32 %v1780, %v1858
    %v1860 = vpop.f32.mrf.mxu0
    %1861 = vmatprep.mubr.f32.mxu0 0.0
    %1862 = vmatmul.mubr.f32.gmra.mxu0 %v1746
    %v1863 = vpop.f32.mrf.mxu0
    %v1864 = vadd.f32 %v1780, %v1863
    %v1865 = vpop.f32.mrf.mxu0
    %1866 = vmatprep.mubr.f32.mxu0 0.0
    %1867 = vmatmul.mubr.f32.gmra.mxu0 %v1747
    %v1868 = vpop.f32.mrf.mxu0
    %v1869 = vadd.f32 %v1780, %v1868
    %v1870 = vpop.f32.mrf.mxu0
    %1871 = vmatprep.mubr.f32.mxu0 0.0
    %1872 = vmatmul.mubr.f32.gmra.mxu0 %v1748
    %v1873 = vpop.f32.mrf.mxu0
    %v1874 = vadd.f32 %v1780, %v1873
    %v1875 = vpop.f32.mrf.mxu0
    %1876 = vmatprep.mubr.f32.mxu0 0.0
    %1877 = vmatmul.mubr.f32.gmra.mxu0 %v1749
    %v1878 = vpop.f32.mrf.mxu0
    %v1879 = vadd.f32 %v1780, %v1878
    %v1880 = vpop.f32.mrf.mxu0
    %1881 = vmatprep.mubr.f32.mxu0 0.0
    %1882 = vmatmul.mubr.f32.gmra.mxu0 %v1750
    %v1883 = vpop.f32.mrf.mxu0
    %v1884 = vadd.f32 %v1780, %v1883
    %v1885 = vpop.f32.mrf.mxu0
    %1886 = vmatprep.mubr.f32.mxu0 0.0
    %1887 = vmatmul.mubr.f32.gmra.mxu0 %v1751
    %v1888 = vpop.f32.mrf.mxu0
    %v1889 = vadd.f32 %v1780, %v1888
    %v1890 = vpop.f32.mrf.mxu0
    %1891 = vmatprep.mubr.f32.mxu0 0.0
    %1892 = vmatmul.mubr.f32.gmra.mxu0 %v1752
    %v1893 = vpop.f32.mrf.mxu0
    %v1894 = vadd.f32 %v1780, %v1893
    %v1895 = vpop.f32.mrf.mxu0
    %1896 = vmatprep.mubr.f32.mxu0 0.0
    %1897 = vmatmul.mubr.f32.gmra.mxu0 %v1753
    %v1898 = vpop.f32.mrf.mxu0
    %v1899 = vadd.f32 %v1780, %v1898
    %v1900 = vpop.f32.mrf.mxu0
    %1901 = vmatprep.mubr.f32.mxu0 0.0
    %1902 = vmatmul.mubr.f32.gmra.mxu0 %v1754
    %v1903 = vpop.f32.mrf.mxu0
    %v1904 = vadd.f32 %v1780, %v1903
    %v1905 = vpop.f32.mrf.mxu0
    %1906 = vmatprep.mubr.f32.mxu0 0.0
    %1907 = vmatmul.mubr.f32.gmra.mxu0 %v1755
    %v1908 = vpop.f32.mrf.mxu0
    %v1909 = vadd.f32 %v1780, %v1908
    %v1910 = vpop.f32.mrf.mxu0
    %1911 = vmatprep.mubr.f32.mxu0 0.0
    %1912 = vmatmul.mubr.f32.gmra.mxu0 %v1756
    %v1913 = vpop.f32.mrf.mxu0
    %v1914 = vadd.f32 %v1780, %v1913
    %v1915 = vpop.f32.mrf.mxu0
    %1916 = vmatprep.mubr.f32.mxu0 0.0
    %1917 = vmatmul.mubr.f32.gmra.mxu0 %v1757
    %v1918 = vpop.f32.mrf.mxu0
    %v1919 = vadd.f32 %v1780, %v1918
    %v1920 = vpop.f32.mrf.mxu0
    %1921 = vmatprep.mubr.f32.mxu0 0.0
    %1922 = vmatmul.mubr.f32.gmra.mxu0 %v1758
    %v1923 = vpop.f32.mrf.mxu0
    %v1924 = vadd.f32 %v1780, %v1923
    %v1925 = vpop.f32.mrf.mxu0
    %1926 = vdwg.mxu0
    %v1927 = vmul.f32 %v1849, 0.1
    %v1928 = vmul.f32 %v1854, 0.1
    %v1929 = vmul.f32 %v1859, 0.1
    %v1930 = vmul.f32 %v1864, 0.1
    %v1931 = vmul.f32 %v1869, 0.1
    %v1932 = vmul.f32 %v1874, 0.1
    %v1933 = vmul.f32 %v1879, 0.1
    %v1934 = vmul.f32 %v1884, 0.1
    %v1935 = vmul.f32 %v1889, 0.1
    %v1936 = vmul.f32 %v1894, 0.1
    %v1937 = vmul.f32 %v1899, 0.1
    %v1938 = vmul.f32 %v1904, 0.1
    %v1939 = vmul.f32 %v1909, 0.1
    %v1940 = vmul.f32 %v1914, 0.1
    %v1941 = vmul.f32 %v1919, 0.1
    %v1942 = vmul.f32 %v1924, 0.1
    %1943 = vmatprep.subr.mxu0 0.0
    %1944 = vmatpush1.msra.mxu0 %v1924
    %1945 = vmatprep.subr.mxu0 0.0
    %1946 = vmatpush1.msra.mxu0 %v1919
    %1947 = vmatprep.subr.mxu0 0.0
    %1948 = vmatpush1.msra.mxu0 %v1914
    %1949 = vmatprep.subr.mxu0 0.0
    %1950 = vmatpush1.msra.mxu0 %v1909
    %1951 = vmatprep.subr.mxu0 0.0
    %1952 = vmatpush1.msra.mxu0 %v1904
    %1953 = vmatprep.subr.mxu0 0.0
    %1954 = vmatpush1.msra.mxu0 %v1899
    %1955 = vmatprep.subr.mxu0 0.0
    %1956 = vmatpush1.msra.mxu0 %v1894
    %1957 = vmatprep.subr.mxu0 0.0
    %1958 = vmatpush1.msra.mxu0 %v1889
    %1959 = vmatprep.subr.mxu0 0.0
    %1960 = vmatpush1.msra.mxu0 %v1884
    %1961 = vmatprep.subr.mxu0 0.0
    %1962 = vmatpush1.msra.mxu0 %v1879
    %1963 = vmatprep.subr.mxu0 0.0
    %1964 = vmatpush1.msra.mxu0 %v1874
    %1965 = vmatprep.subr.mxu0 0.0
    %1966 = vmatpush1.msra.mxu0 %v1869
    %1967 = vmatprep.subr.mxu0 0.0
    %1968 = vmatpush1.msra.mxu0 %v1864
    %1969 = vmatprep.subr.mxu0 0.0
    %1970 = vmatpush1.msra.mxu0 %v1859
    %1971 = vmatprep.subr.mxu0 0.0
    %1972 = vmatpush1.msra.mxu0 %v1854
    %1973 = vmatprep.subr.mxu0 0.0
    %1974 = vmatpush1.msra.mxu0 %v1849
    %1975 = vmatprep.subr.mxu0 0.0
    %1976 = vmatpush2.msra.mxu0 0.0
    %1977 = vmatprep.subr.mxu0 0.0
    %1978 = vmatpush2.msra.mxu0 0.0
    %1979 = vmatprep.subr.mxu0 0.0
    %1980 = vmatpush2.msra.mxu0 0.0
    %1981 = vmatprep.subr.mxu0 0.0
    %1982 = vmatpush2.msra.mxu0 0.0
    %1983 = vmatprep.subr.mxu0 0.0
    %1984 = vmatpush2.msra.mxu0 0.0
    %1985 = vmatprep.subr.mxu0 0.0
    %1986 = vmatpush2.msra.mxu0 0.0
    %1987 = vmatprep.subr.mxu0 0.0
    %1988 = vmatpush2.msra.mxu0 0.0
    %1989 = vmatprep.subr.mxu0 0.0
    %1990 = vmatpush2.msra.mxu0 0.0
    %1991 = vmatprep.subr.mxu0 0.0
    %1992 = vmatpush2.msra.mxu0 0.0
    %1993 = vmatprep.subr.mxu0 0.0
    %1994 = vmatpush2.msra.mxu0 0.0
    %1995 = vmatprep.subr.mxu0 0.0
    %1996 = vmatpush2.msra.mxu0 0.0
    %1997 = vmatprep.subr.mxu0 0.0
    %1998 = vmatpush2.msra.mxu0 0.0
    %1999 = vmatprep.subr.mxu0 0.0
    %2000 = vmatpush2.msra.mxu0 0.0
    %2001 = vmatprep.subr.mxu0 0.0
    %2002 = vmatpush2.msra.mxu0 0.0
    %2003 = vmatprep.subr.mxu0 0.0
    %2004 = vmatpush2.msra.mxu0 0.0
    %2005 = vmatprep.subr.mxu0 0.0
    %2006 = vmatpush2.msra.mxu0 0.0
    %2007 = vmatprep.mubr.f32.mxu0 0.0
    %2008 = vmatmul.mubr.f32.gmra.mxu0 %v277
    %v2009 = vpop.f32.mrf.mxu0
    %v2010 = vadd.f32 %v1927, %v2009
    %v2011 = vpop.f32.mrf.mxu0
    %2012 = vmatprep.mubr.f32.mxu0 0.0
    %2013 = vmatmul.mubr.f32.gmra.mxu0 %v278
    %v2014 = vpop.f32.mrf.mxu0
    %v2015 = vadd.f32 %v1928, %v2014
    %v2016 = vpop.f32.mrf.mxu0
    %2017 = vmatprep.mubr.f32.mxu0 0.0
    %2018 = vmatmul.mubr.f32.gmra.mxu0 %v279
    %v2019 = vpop.f32.mrf.mxu0
    %v2020 = vadd.f32 %v1929, %v2019
    %v2021 = vpop.f32.mrf.mxu0
    %2022 = vmatprep.mubr.f32.mxu0 0.0
    %2023 = vmatmul.mubr.f32.gmra.mxu0 %v280
    %v2024 = vpop.f32.mrf.mxu0
    %v2025 = vadd.f32 %v1930, %v2024
    %v2026 = vpop.f32.mrf.mxu0
    %2027 = vmatprep.mubr.f32.mxu0 0.0
    %2028 = vmatmul.mubr.f32.gmra.mxu0 %v281
    %v2029 = vpop.f32.mrf.mxu0
    %v2030 = vadd.f32 %v1931, %v2029
    %v2031 = vpop.f32.mrf.mxu0
    %2032 = vmatprep.mubr.f32.mxu0 0.0
    %2033 = vmatmul.mubr.f32.gmra.mxu0 %v282
    %v2034 = vpop.f32.mrf.mxu0
    %v2035 = vadd.f32 %v1932, %v2034
    %v2036 = vpop.f32.mrf.mxu0
    %2037 = vmatprep.mubr.f32.mxu0 0.0
    %2038 = vmatmul.mubr.f32.gmra.mxu0 %v283
    %v2039 = vpop.f32.mrf.mxu0
    %v2040 = vadd.f32 %v1933, %v2039
    %v2041 = vpop.f32.mrf.mxu0
    %2042 = vmatprep.mubr.f32.mxu0 0.0
    %2043 = vmatmul.mubr.f32.gmra.mxu0 %v284
    %v2044 = vpop.f32.mrf.mxu0
    %v2045 = vadd.f32 %v1934, %v2044
    %v2046 = vpop.f32.mrf.mxu0
    %2047 = vmatprep.mubr.f32.mxu0 0.0
    %2048 = vmatmul.mubr.f32.gmra.mxu0 %v285
    %v2049 = vpop.f32.mrf.mxu0
    %v2050 = vadd.f32 %v1935, %v2049
    %v2051 = vpop.f32.mrf.mxu0
    %2052 = vmatprep.mubr.f32.mxu0 0.0
    %2053 = vmatmul.mubr.f32.gmra.mxu0 %v286
    %v2054 = vpop.f32.mrf.mxu0
    %v2055 = vadd.f32 %v1936, %v2054
    %v2056 = vpop.f32.mrf.mxu0
    %2057 = vmatprep.mubr.f32.mxu0 0.0
    %2058 = vmatmul.mubr.f32.gmra.mxu0 %v287
    %v2059 = vpop.f32.mrf.mxu0
    %v2060 = vadd.f32 %v1937, %v2059
    %v2061 = vpop.f32.mrf.mxu0
    %2062 = vmatprep.mubr.f32.mxu0 0.0
    %2063 = vmatmul.mubr.f32.gmra.mxu0 %v288
    %v2064 = vpop.f32.mrf.mxu0
    %v2065 = vadd.f32 %v1938, %v2064
    %v2066 = vpop.f32.mrf.mxu0
    %2067 = vmatprep.mubr.f32.mxu0 0.0
    %2068 = vmatmul.mubr.f32.gmra.mxu0 %v289
    %v2069 = vpop.f32.mrf.mxu0
    %v2070 = vadd.f32 %v1939, %v2069
    %v2071 = vpop.f32.mrf.mxu0
    %2072 = vmatprep.mubr.f32.mxu0 0.0
    %2073 = vmatmul.mubr.f32.gmra.mxu0 %v290
    %v2074 = vpop.f32.mrf.mxu0
    %v2075 = vadd.f32 %v1940, %v2074
    %v2076 = vpop.f32.mrf.mxu0
    %2077 = vmatprep.mubr.f32.mxu0 0.0
    %2078 = vmatmul.mubr.f32.gmra.mxu0 %v291
    %v2079 = vpop.f32.mrf.mxu0
    %v2080 = vadd.f32 %v1941, %v2079
    %v2081 = vpop.f32.mrf.mxu0
    %2082 = vmatprep.mubr.f32.mxu0 0.0
    %2083 = vmatmul.mubr.f32.gmra.mxu0 %v292
    %v2084 = vpop.f32.mrf.mxu0
    %v2085 = vadd.f32 %v1942, %v2084
    %v2086 = vpop.f32.mrf.mxu0
    %2087 = vdwg.mxu0
    %2088 = vmatprep.subr.mxu0 0.0
    %2089 = vmatpush1.msra.mxu0 %v2085
    %2090 = vmatprep.subr.mxu0 0.0
    %2091 = vmatpush1.msra.mxu0 %v2080
    %2092 = vmatprep.subr.mxu0 0.0
    %2093 = vmatpush1.msra.mxu0 %v2075
    %2094 = vmatprep.subr.mxu0 0.0
    %2095 = vmatpush1.msra.mxu0 %v2070
    %2096 = vmatprep.subr.mxu0 0.0
    %2097 = vmatpush1.msra.mxu0 %v2065
    %2098 = vmatprep.subr.mxu0 0.0
    %2099 = vmatpush1.msra.mxu0 %v2060
    %2100 = vmatprep.subr.mxu0 0.0
    %2101 = vmatpush1.msra.mxu0 %v2055
    %2102 = vmatprep.subr.mxu0 0.0
    %2103 = vmatpush1.msra.mxu0 %v2050
    %2104 = vmatprep.subr.mxu0 0.0
    %2105 = vmatpush1.msra.mxu0 %v2045
    %2106 = vmatprep.subr.mxu0 0.0
    %2107 = vmatpush1.msra.mxu0 %v2040
    %2108 = vmatprep.subr.mxu0 0.0
    %2109 = vmatpush1.msra.mxu0 %v2035
    %2110 = vmatprep.subr.mxu0 0.0
    %2111 = vmatpush1.msra.mxu0 %v2030
    %2112 = vmatprep.subr.mxu0 0.0
    %2113 = vmatpush1.msra.mxu0 %v2025
    %2114 = vmatprep.subr.mxu0 0.0
    %2115 = vmatpush1.msra.mxu0 %v2020
    %2116 = vmatprep.subr.mxu0 0.0
    %2117 = vmatpush1.msra.mxu0 %v2015
    %2118 = vmatprep.subr.mxu0 0.0
    %2119 = vmatpush1.msra.mxu0 %v2010
    %2120 = vmatprep.subr.mxu0 0.0
    %2121 = vmatpush2.msra.mxu0 0.0
    %2122 = vmatprep.subr.mxu0 0.0
    %2123 = vmatpush2.msra.mxu0 0.0
    %2124 = vmatprep.subr.mxu0 0.0
    %2125 = vmatpush2.msra.mxu0 0.0
    %2126 = vmatprep.subr.mxu0 0.0
    %2127 = vmatpush2.msra.mxu0 0.0
    %2128 = vmatprep.subr.mxu0 0.0
    %2129 = vmatpush2.msra.mxu0 0.0
    %2130 = vmatprep.subr.mxu0 0.0
    %2131 = vmatpush2.msra.mxu0 0.0
    %2132 = vmatprep.subr.mxu0 0.0
    %2133 = vmatpush2.msra.mxu0 0.0
    %2134 = vmatprep.subr.mxu0 0.0
    %2135 = vmatpush2.msra.mxu0 0.0
    %2136 = vmatprep.subr.mxu0 0.0
    %2137 = vmatpush2.msra.mxu0 0.0
    %2138 = vmatprep.subr.mxu0 0.0
    %2139 = vmatpush2.msra.mxu0 0.0
    %2140 = vmatprep.subr.mxu0 0.0
    %2141 = vmatpush2.msra.mxu0 0.0
    %2142 = vmatprep.subr.mxu0 0.0
    %2143 = vmatpush2.msra.mxu0 0.0
    %2144 = vmatprep.subr.mxu0 0.0
    %2145 = vmatpush2.msra.mxu0 0.0
    %2146 = vmatprep.subr.mxu0 0.0
    %2147 = vmatpush2.msra.mxu0 0.0
    %2148 = vmatprep.subr.mxu0 0.0
    %2149 = vmatpush2.msra.mxu0 0.0
    %2150 = vmatprep.subr.mxu0 0.0
    %2151 = vmatpush2.msra.mxu0 0.0
    %2152 = vmatprep.mubr.f32.mxu0 0.0
    %2153 = vmatmul.mubr.f32.gmra.mxu0 %v277
    %v2154 = vpop.f32.mrf.mxu0
    %v2155 = vadd.f32 %v1927, %v2154
    %v2156 = vpop.f32.mrf.mxu0
    %2157 = vmatprep.mubr.f32.mxu0 0.0
    %2158 = vmatmul.mubr.f32.gmra.mxu0 %v278
    %v2159 = vpop.f32.mrf.mxu0
    %v2160 = vadd.f32 %v1928, %v2159
    %v2161 = vpop.f32.mrf.mxu0
    %2162 = vmatprep.mubr.f32.mxu0 0.0
    %2163 = vmatmul.mubr.f32.gmra.mxu0 %v279
    %v2164 = vpop.f32.mrf.mxu0
    %v2165 = vadd.f32 %v1929, %v2164
    %v2166 = vpop.f32.mrf.mxu0
    %2167 = vmatprep.mubr.f32.mxu0 0.0
    %2168 = vmatmul.mubr.f32.gmra.mxu0 %v280
    %v2169 = vpop.f32.mrf.mxu0
    %v2170 = vadd.f32 %v1930, %v2169
    %v2171 = vpop.f32.mrf.mxu0
    %2172 = vmatprep.mubr.f32.mxu0 0.0
    %2173 = vmatmul.mubr.f32.gmra.mxu0 %v281
    %v2174 = vpop.f32.mrf.mxu0
    %v2175 = vadd.f32 %v1931, %v2174
    %v2176 = vpop.f32.mrf.mxu0
    %2177 = vmatprep.mubr.f32.mxu0 0.0
    %2178 = vmatmul.mubr.f32.gmra.mxu0 %v282
    %v2179 = vpop.f32.mrf.mxu0
    %v2180 = vadd.f32 %v1932, %v2179
    %v2181 = vpop.f32.mrf.mxu0
    %2182 = vmatprep.mubr.f32.mxu0 0.0
    %2183 = vmatmul.mubr.f32.gmra.mxu0 %v283
    %v2184 = vpop.f32.mrf.mxu0
    %v2185 = vadd.f32 %v1933, %v2184
    %v2186 = vpop.f32.mrf.mxu0
    %2187 = vmatprep.mubr.f32.mxu0 0.0
    %2188 = vmatmul.mubr.f32.gmra.mxu0 %v284
    %v2189 = vpop.f32.mrf.mxu0
    %v2190 = vadd.f32 %v1934, %v2189
    %v2191 = vpop.f32.mrf.mxu0
    %2192 = vmatprep.mubr.f32.mxu0 0.0
    %2193 = vmatmul.mubr.f32.gmra.mxu0 %v285
    %v2194 = vpop.f32.mrf.mxu0
    %v2195 = vadd.f32 %v1935, %v2194
    %v2196 = vpop.f32.mrf.mxu0
    %2197 = vmatprep.mubr.f32.mxu0 0.0
    %2198 = vmatmul.mubr.f32.gmra.mxu0 %v286
    %v2199 = vpop.f32.mrf.mxu0
    %v2200 = vadd.f32 %v1936, %v2199
    %v2201 = vpop.f32.mrf.mxu0
    %2202 = vmatprep.mubr.f32.mxu0 0.0
    %2203 = vmatmul.mubr.f32.gmra.mxu0 %v287
    %v2204 = vpop.f32.mrf.mxu0
    %v2205 = vadd.f32 %v1937, %v2204
    %v2206 = vpop.f32.mrf.mxu0
    %2207 = vmatprep.mubr.f32.mxu0 0.0
    %2208 = vmatmul.mubr.f32.gmra.mxu0 %v288
    %v2209 = vpop.f32.mrf.mxu0
    %v2210 = vadd.f32 %v1938, %v2209
    %v2211 = vpop.f32.mrf.mxu0
    %2212 = vmatprep.mubr.f32.mxu0 0.0
    %2213 = vmatmul.mubr.f32.gmra.mxu0 %v289
    %v2214 = vpop.f32.mrf.mxu0
    %v2215 = vadd.f32 %v1939, %v2214
    %v2216 = vpop.f32.mrf.mxu0
    %2217 = vmatprep.mubr.f32.mxu0 0.0
    %2218 = vmatmul.mubr.f32.gmra.mxu0 %v290
    %v2219 = vpop.f32.mrf.mxu0
    %v2220 = vadd.f32 %v1940, %v2219
    %v2221 = vpop.f32.mrf.mxu0
    %2222 = vmatprep.mubr.f32.mxu0 0.0
    %2223 = vmatmul.mubr.f32.gmra.mxu0 %v291
    %v2224 = vpop.f32.mrf.mxu0
    %v2225 = vadd.f32 %v1941, %v2224
    %v2226 = vpop.f32.mrf.mxu0
    %2227 = vmatprep.mubr.f32.mxu0 0.0
    %2228 = vmatmul.mubr.f32.gmra.mxu0 %v292
    %v2229 = vpop.f32.mrf.mxu0
    %v2230 = vadd.f32 %v1942, %v2229
    %v2231 = vpop.f32.mrf.mxu0
    %2232 = vdwg.mxu0
    %2233 = vmatprep.subr.mxu0 0.0
    %2234 = vmatpush1.msra.mxu0 %v2230
    %2235 = vmatprep.subr.mxu0 0.0
    %2236 = vmatpush1.msra.mxu0 %v2225
    %2237 = vmatprep.subr.mxu0 0.0
    %2238 = vmatpush1.msra.mxu0 %v2220
    %2239 = vmatprep.subr.mxu0 0.0
    %2240 = vmatpush1.msra.mxu0 %v2215
    %2241 = vmatprep.subr.mxu0 0.0
    %2242 = vmatpush1.msra.mxu0 %v2210
    %2243 = vmatprep.subr.mxu0 0.0
    %2244 = vmatpush1.msra.mxu0 %v2205
    %2245 = vmatprep.subr.mxu0 0.0
    %2246 = vmatpush1.msra.mxu0 %v2200
    %2247 = vmatprep.subr.mxu0 0.0
    %2248 = vmatpush1.msra.mxu0 %v2195
    %2249 = vmatprep.subr.mxu0 0.0
    %2250 = vmatpush1.msra.mxu0 %v2190
    %2251 = vmatprep.subr.mxu0 0.0
    %2252 = vmatpush1.msra.mxu0 %v2185
    %2253 = vmatprep.subr.mxu0 0.0
    %2254 = vmatpush1.msra.mxu0 %v2180
    %2255 = vmatprep.subr.mxu0 0.0
    %2256 = vmatpush1.msra.mxu0 %v2175
    %2257 = vmatprep.subr.mxu0 0.0
    %2258 = vmatpush1.msra.mxu0 %v2170
    %2259 = vmatprep.subr.mxu0 0.0
    %2260 = vmatpush1.msra.mxu0 %v2165
    %2261 = vmatprep.subr.mxu0 0.0
    %2262 = vmatpush1.msra.mxu0 %v2160
    %2263 = vmatprep.subr.mxu0 0.0
    %2264 = vmatpush1.msra.mxu0 %v2155
    %2265 = vmatprep.subr.mxu0 0.0
    %2266 = vmatpush2.msra.mxu0 0.0
    %2267 = vmatprep.subr.mxu0 0.0
    %2268 = vmatpush2.msra.mxu0 0.0
    %2269 = vmatprep.subr.mxu0 0.0
    %2270 = vmatpush2.msra.mxu0 0.0
    %2271 = vmatprep.subr.mxu0 0.0
    %2272 = vmatpush2.msra.mxu0 0.0
    %2273 = vmatprep.subr.mxu0 0.0
    %2274 = vmatpush2.msra.mxu0 0.0
    %2275 = vmatprep.subr.mxu0 0.0
    %2276 = vmatpush2.msra.mxu0 0.0
    %2277 = vmatprep.subr.mxu0 0.0
    %2278 = vmatpush2.msra.mxu0 0.0
    %2279 = vmatprep.subr.mxu0 0.0
    %2280 = vmatpush2.msra.mxu0 0.0
    %2281 = vmatprep.subr.mxu0 0.0
    %2282 = vmatpush2.msra.mxu0 0.0
    %2283 = vmatprep.subr.mxu0 0.0
    %2284 = vmatpush2.msra.mxu0 0.0
    %2285 = vmatprep.subr.mxu0 0.0
    %2286 = vmatpush2.msra.mxu0 0.0
    %2287 = vmatprep.subr.mxu0 0.0
    %2288 = vmatpush2.msra.mxu0 0.0
    %2289 = vmatprep.subr.mxu0 0.0
    %2290 = vmatpush2.msra.mxu0 0.0
    %2291 = vmatprep.subr.mxu0 0.0
    %2292 = vmatpush2.msra.mxu0 0.0
    %2293 = vmatprep.subr.mxu0 0.0
    %2294 = vmatpush2.msra.mxu0 0.0
    %2295 = vmatprep.subr.mxu0 0.0
    %2296 = vmatpush2.msra.mxu0 0.0
    %2297 = vmatprep.mubr.f32.mxu0 0.0
    %2298 = vmatmul.mubr.f32.gmra.mxu0 %v277
    %v2299 = vpop.f32.mrf.mxu0
    %v2300 = vadd.f32 %v1927, %v2299
    %v2301 = vpop.f32.mrf.mxu0
    %2302 = vmatprep.mubr.f32.mxu0 0.0
    %2303 = vmatmul.mubr.f32.gmra.mxu0 %v278
    %v2304 = vpop.f32.mrf.mxu0
    %v2305 = vadd.f32 %v1928, %v2304
    %v2306 = vpop.f32.mrf.mxu0
    %2307 = vmatprep.mubr.f32.mxu0 0.0
    %2308 = vmatmul.mubr.f32.gmra.mxu0 %v279
    %v2309 = vpop.f32.mrf.mxu0
    %v2310 = vadd.f32 %v1929, %v2309
    %v2311 = vpop.f32.mrf.mxu0
    %2312 = vmatprep.mubr.f32.mxu0 0.0
    %2313 = vmatmul.mubr.f32.gmra.mxu0 %v280
    %v2314 = vpop.f32.mrf.mxu0
    %v2315 = vadd.f32 %v1930, %v2314
    %v2316 = vpop.f32.mrf.mxu0
    %2317 = vmatprep.mubr.f32.mxu0 0.0
    %2318 = vmatmul.mubr.f32.gmra.mxu0 %v281
    %v2319 = vpop.f32.mrf.mxu0
    %v2320 = vadd.f32 %v1931, %v2319
    %v2321 = vpop.f32.mrf.mxu0
    %2322 = vmatprep.mubr.f32.mxu0 0.0
    %2323 = vmatmul.mubr.f32.gmra.mxu0 %v282
    %v2324 = vpop.f32.mrf.mxu0
    %v2325 = vadd.f32 %v1932, %v2324
    %v2326 = vpop.f32.mrf.mxu0
    %2327 = vmatprep.mubr.f32.mxu0 0.0
    %2328 = vmatmul.mubr.f32.gmra.mxu0 %v283
    %v2329 = vpop.f32.mrf.mxu0
    %v2330 = vadd.f32 %v1933, %v2329
    %v2331 = vpop.f32.mrf.mxu0
    %2332 = vmatprep.mubr.f32.mxu0 0.0
    %2333 = vmatmul.mubr.f32.gmra.mxu0 %v284
    %v2334 = vpop.f32.mrf.mxu0
    %v2335 = vadd.f32 %v1934, %v2334
    %v2336 = vpop.f32.mrf.mxu0
    %2337 = vmatprep.mubr.f32.mxu0 0.0
    %2338 = vmatmul.mubr.f32.gmra.mxu0 %v285
    %v2339 = vpop.f32.mrf.mxu0
    %v2340 = vadd.f32 %v1935, %v2339
    %v2341 = vpop.f32.mrf.mxu0
    %2342 = vmatprep.mubr.f32.mxu0 0.0
    %2343 = vmatmul.mubr.f32.gmra.mxu0 %v286
    %v2344 = vpop.f32.mrf.mxu0
    %v2345 = vadd.f32 %v1936, %v2344
    %v2346 = vpop.f32.mrf.mxu0
    %2347 = vmatprep.mubr.f32.mxu0 0.0
    %2348 = vmatmul.mubr.f32.gmra.mxu0 %v287
    %v2349 = vpop.f32.mrf.mxu0
    %v2350 = vadd.f32 %v1937, %v2349
    %v2351 = vpop.f32.mrf.mxu0
    %2352 = vmatprep.mubr.f32.mxu0 0.0
    %2353 = vmatmul.mubr.f32.gmra.mxu0 %v288
    %v2354 = vpop.f32.mrf.mxu0
    %v2355 = vadd.f32 %v1938, %v2354
    %v2356 = vpop.f32.mrf.mxu0
    %2357 = vmatprep.mubr.f32.mxu0 0.0
    %2358 = vmatmul.mubr.f32.gmra.mxu0 %v289
    %v2359 = vpop.f32.mrf.mxu0
    %v2360 = vadd.f32 %v1939, %v2359
    %v2361 = vpop.f32.mrf.mxu0
    %2362 = vmatprep.mubr.f32.mxu0 0.0
    %2363 = vmatmul.mubr.f32.gmra.mxu0 %v290
    %v2364 = vpop.f32.mrf.mxu0
    %v2365 = vadd.f32 %v1940, %v2364
    %v2366 = vpop.f32.mrf.mxu0
    %2367 = vmatprep.mubr.f32.mxu0 0.0
    %2368 = vmatmul.mubr.f32.gmra.mxu0 %v291
    %v2369 = vpop.f32.mrf.mxu0
    %v2370 = vadd.f32 %v1941, %v2369
    %v2371 = vpop.f32.mrf.mxu0
    %2372 = vmatprep.mubr.f32.mxu0 0.0
    %2373 = vmatmul.mubr.f32.gmra.mxu0 %v292
    %v2374 = vpop.f32.mrf.mxu0
    %v2375 = vadd.f32 %v1942, %v2374
    %v2376 = vpop.f32.mrf.mxu0
    %2377 = vdwg.mxu0
    %2378 = vmatprep.subr.mxu0 0.0
    %2379 = vmatpush1.msra.mxu0 %v2375
    %2380 = vmatprep.subr.mxu0 0.0
    %2381 = vmatpush1.msra.mxu0 %v2370
    %2382 = vmatprep.subr.mxu0 0.0
    %2383 = vmatpush1.msra.mxu0 %v2365
    %2384 = vmatprep.subr.mxu0 0.0
    %2385 = vmatpush1.msra.mxu0 %v2360
    %2386 = vmatprep.subr.mxu0 0.0
    %2387 = vmatpush1.msra.mxu0 %v2355
    %2388 = vmatprep.subr.mxu0 0.0
    %2389 = vmatpush1.msra.mxu0 %v2350
    %2390 = vmatprep.subr.mxu0 0.0
    %2391 = vmatpush1.msra.mxu0 %v2345
    %2392 = vmatprep.subr.mxu0 0.0
    %2393 = vmatpush1.msra.mxu0 %v2340
    %2394 = vmatprep.subr.mxu0 0.0
    %2395 = vmatpush1.msra.mxu0 %v2335
    %2396 = vmatprep.subr.mxu0 0.0
    %2397 = vmatpush1.msra.mxu0 %v2330
    %2398 = vmatprep.subr.mxu0 0.0
    %2399 = vmatpush1.msra.mxu0 %v2325
    %2400 = vmatprep.subr.mxu0 0.0
    %2401 = vmatpush1.msra.mxu0 %v2320
    %2402 = vmatprep.subr.mxu0 0.0
    %2403 = vmatpush1.msra.mxu0 %v2315
    %2404 = vmatprep.subr.mxu0 0.0
    %2405 = vmatpush1.msra.mxu0 %v2310
    %2406 = vmatprep.subr.mxu0 0.0
    %2407 = vmatpush1.msra.mxu0 %v2305
    %2408 = vmatprep.subr.mxu0 0.0
    %2409 = vmatpush1.msra.mxu0 %v2300
    %2410 = vmatprep.subr.mxu0 0.0
    %2411 = vmatpush2.msra.mxu0 0.0
    %2412 = vmatprep.subr.mxu0 0.0
    %2413 = vmatpush2.msra.mxu0 0.0
    %2414 = vmatprep.subr.mxu0 0.0
    %2415 = vmatpush2.msra.mxu0 0.0
    %2416 = vmatprep.subr.mxu0 0.0
    %2417 = vmatpush2.msra.mxu0 0.0
    %2418 = vmatprep.subr.mxu0 0.0
    %2419 = vmatpush2.msra.mxu0 0.0
    %2420 = vmatprep.subr.mxu0 0.0
    %2421 = vmatpush2.msra.mxu0 0.0
    %2422 = vmatprep.subr.mxu0 0.0
    %2423 = vmatpush2.msra.mxu0 0.0
    %2424 = vmatprep.subr.mxu0 0.0
    %2425 = vmatpush2.msra.mxu0 0.0
    %2426 = vmatprep.subr.mxu0 0.0
    %2427 = vmatpush2.msra.mxu0 0.0
    %2428 = vmatprep.subr.mxu0 0.0
    %2429 = vmatpush2.msra.mxu0 0.0
    %2430 = vmatprep.subr.mxu0 0.0
    %2431 = vmatpush2.msra.mxu0 0.0
    %2432 = vmatprep.subr.mxu0 0.0
    %2433 = vmatpush2.msra.mxu0 0.0
    %2434 = vmatprep.subr.mxu0 0.0
    %2435 = vmatpush2.msra.mxu0 0.0
    %2436 = vmatprep.subr.mxu0 0.0
    %2437 = vmatpush2.msra.mxu0 0.0
    %2438 = vmatprep.subr.mxu0 0.0
    %2439 = vmatpush2.msra.mxu0 0.0
    %2440 = vmatprep.subr.mxu0 0.0
    %2441 = vmatpush2.msra.mxu0 0.0
    %2442 = vmatprep.mubr.f32.mxu0 0.0
    %2443 = vmatmul.mubr.f32.gmra.mxu0 %v277
    %v2444 = vpop.f32.mrf.mxu0
    %v2445 = vadd.f32 %v1927, %v2444
    %v2446 = vpop.f32.mrf.mxu0
    %2447 = vmatprep.mubr.f32.mxu0 0.0
    %2448 = vmatmul.mubr.f32.gmra.mxu0 %v278
    %v2449 = vpop.f32.mrf.mxu0
    %v2450 = vadd.f32 %v1928, %v2449
    %v2451 = vpop.f32.mrf.mxu0
    %2452 = vmatprep.mubr.f32.mxu0 0.0
    %2453 = vmatmul.mubr.f32.gmra.mxu0 %v279
    %v2454 = vpop.f32.mrf.mxu0
    %v2455 = vadd.f32 %v1929, %v2454
    %v2456 = vpop.f32.mrf.mxu0
    %2457 = vmatprep.mubr.f32.mxu0 0.0
    %2458 = vmatmul.mubr.f32.gmra.mxu0 %v280
    %v2459 = vpop.f32.mrf.mxu0
    %v2460 = vadd.f32 %v1930, %v2459
    %v2461 = vpop.f32.mrf.mxu0
    %2462 = vmatprep.mubr.f32.mxu0 0.0
    %2463 = vmatmul.mubr.f32.gmra.mxu0 %v281
    %v2464 = vpop.f32.mrf.mxu0
    %v2465 = vadd.f32 %v1931, %v2464
    %v2466 = vpop.f32.mrf.mxu0
    %2467 = vmatprep.mubr.f32.mxu0 0.0
    %2468 = vmatmul.mubr.f32.gmra.mxu0 %v282
    %v2469 = vpop.f32.mrf.mxu0
    %v2470 = vadd.f32 %v1932, %v2469
    %v2471 = vpop.f32.mrf.mxu0
    %2472 = vmatprep.mubr.f32.mxu0 0.0
    %2473 = vmatmul.mubr.f32.gmra.mxu0 %v283
    %v2474 = vpop.f32.mrf.mxu0
    %v2475 = vadd.f32 %v1933, %v2474
    %v2476 = vpop.f32.mrf.mxu0
    %2477 = vmatprep.mubr.f32.mxu0 0.0
    %2478 = vmatmul.mubr.f32.gmra.mxu0 %v284
    %v2479 = vpop.f32.mrf.mxu0
    %v2480 = vadd.f32 %v1934, %v2479
    %v2481 = vpop.f32.mrf.mxu0
    %2482 = vmatprep.mubr.f32.mxu0 0.0
    %2483 = vmatmul.mubr.f32.gmra.mxu0 %v285
    %v2484 = vpop.f32.mrf.mxu0
    %v2485 = vadd.f32 %v1935, %v2484
    %v2486 = vpop.f32.mrf.mxu0
    %2487 = vmatprep.mubr.f32.mxu0 0.0
    %2488 = vmatmul.mubr.f32.gmra.mxu0 %v286
    %v2489 = vpop.f32.mrf.mxu0
    %v2490 = vadd.f32 %v1936, %v2489
    %v2491 = vpop.f32.mrf.mxu0
    %2492 = vmatprep.mubr.f32.mxu0 0.0
    %2493 = vmatmul.mubr.f32.gmra.mxu0 %v287
    %v2494 = vpop.f32.mrf.mxu0
    %v2495 = vadd.f32 %v1937, %v2494
    %v2496 = vpop.f32.mrf.mxu0
    %2497 = vmatprep.mubr.f32.mxu0 0.0
    %2498 = vmatmul.mubr.f32.gmra.mxu0 %v288
    %v2499 = vpop.f32.mrf.mxu0
    %v2500 = vadd.f32 %v1938, %v2499
    %v2501 = vpop.f32.mrf.mxu0
    %2502 = vmatprep.mubr.f32.mxu0 0.0
    %2503 = vmatmul.mubr.f32.gmra.mxu0 %v289
    %v2504 = vpop.f32.mrf.mxu0
    %v2505 = vadd.f32 %v1939, %v2504
    %v2506 = vpop.f32.mrf.mxu0
    %2507 = vmatprep.mubr.f32.mxu0 0.0
    %2508 = vmatmul.mubr.f32.gmra.mxu0 %v290
    %v2509 = vpop.f32.mrf.mxu0
    %v2510 = vadd.f32 %v1940, %v2509
    %v2511 = vpop.f32.mrf.mxu0
    %2512 = vmatprep.mubr.f32.mxu0 0.0
    %2513 = vmatmul.mubr.f32.gmra.mxu0 %v291
    %v2514 = vpop.f32.mrf.mxu0
    %v2515 = vadd.f32 %v1941, %v2514
    %v2516 = vpop.f32.mrf.mxu0
    %2517 = vmatprep.mubr.f32.mxu0 0.0
    %2518 = vmatmul.mubr.f32.gmra.mxu0 %v292
    %v2519 = vpop.f32.mrf.mxu0
    %v2520 = vadd.f32 %v1942, %v2519
    %v2521 = vpop.f32.mrf.mxu0
    %2522 = vdwg.mxu0
    %2523 = vmatprep.subr.mxu0 0.0
    %2524 = vmatpush1.msra.mxu0 %v2520
    %2525 = vmatprep.subr.mxu0 0.0
    %2526 = vmatpush1.msra.mxu0 %v2515
    %2527 = vmatprep.subr.mxu0 0.0
    %2528 = vmatpush1.msra.mxu0 %v2510
    %2529 = vmatprep.subr.mxu0 0.0
    %2530 = vmatpush1.msra.mxu0 %v2505
    %2531 = vmatprep.subr.mxu0 0.0
    %2532 = vmatpush1.msra.mxu0 %v2500
    %2533 = vmatprep.subr.mxu0 0.0
    %2534 = vmatpush1.msra.mxu0 %v2495
    %2535 = vmatprep.subr.mxu0 0.0
    %2536 = vmatpush1.msra.mxu0 %v2490
    %2537 = vmatprep.subr.mxu0 0.0
    %2538 = vmatpush1.msra.mxu0 %v2485
    %2539 = vmatprep.subr.mxu0 0.0
    %2540 = vmatpush1.msra.mxu0 %v2480
    %2541 = vmatprep.subr.mxu0 0.0
    %2542 = vmatpush1.msra.mxu0 %v2475
    %2543 = vmatprep.subr.mxu0 0.0
    %2544 = vmatpush1.msra.mxu0 %v2470
    %2545 = vmatprep.subr.mxu0 0.0
    %2546 = vmatpush1.msra.mxu0 %v2465
    %2547 = vmatprep.subr.mxu0 0.0
    %2548 = vmatpush1.msra.mxu0 %v2460
    %2549 = vmatprep.subr.mxu0 0.0
    %2550 = vmatpush1.msra.mxu0 %v2455
    %2551 = vmatprep.subr.mxu0 0.0
    %2552 = vmatpush1.msra.mxu0 %v2450
    %2553 = vmatprep.subr.mxu0 0.0
    %2554 = vmatpush1.msra.mxu0 %v2445
    %2555 = vmatprep.subr.mxu0 0.0
    %2556 = vmatpush2.msra.mxu0 0.0
    %2557 = vmatprep.subr.mxu0 0.0
    %2558 = vmatpush2.msra.mxu0 0.0
    %2559 = vmatprep.subr.mxu0 0.0
    %2560 = vmatpush2.msra.mxu0 0.0
    %2561 = vmatprep.subr.mxu0 0.0
    %2562 = vmatpush2.msra.mxu0 0.0
    %2563 = vmatprep.subr.mxu0 0.0
    %2564 = vmatpush2.msra.mxu0 0.0
    %2565 = vmatprep.subr.mxu0 0.0
    %2566 = vmatpush2.msra.mxu0 0.0
    %2567 = vmatprep.subr.mxu0 0.0
    %2568 = vmatpush2.msra.mxu0 0.0
    %2569 = vmatprep.subr.mxu0 0.0
    %2570 = vmatpush2.msra.mxu0 0.0
    %2571 = vmatprep.subr.mxu0 0.0
    %2572 = vmatpush2.msra.mxu0 0.0
    %2573 = vmatprep.subr.mxu0 0.0
    %2574 = vmatpush2.msra.mxu0 0.0
    %2575 = vmatprep.subr.mxu0 0.0
    %2576 = vmatpush2.msra.mxu0 0.0
    %2577 = vmatprep.subr.mxu0 0.0
    %2578 = vmatpush2.msra.mxu0 0.0
    %2579 = vmatprep.subr.mxu0 0.0
    %2580 = vmatpush2.msra.mxu0 0.0
    %2581 = vmatprep.subr.mxu0 0.0
    %2582 = vmatpush2.msra.mxu0 0.0
    %2583 = vmatprep.subr.mxu0 0.0
    %2584 = vmatpush2.msra.mxu0 0.0
    %2585 = vmatprep.subr.mxu0 0.0
    %2586 = vmatpush2.msra.mxu0 0.0
    %2587 = vmatprep.mubr.f32.mxu0 0.0
    %2588 = vmatmul.mubr.f32.gmra.mxu0 %v277
    %v2589 = vpop.f32.mrf.mxu0
    %v2590 = vadd.f32 %v1927, %v2589
    %v2591 = vpop.f32.mrf.mxu0
    %2592 = vmatprep.mubr.f32.mxu0 0.0
    %2593 = vmatmul.mubr.f32.gmra.mxu0 %v278
    %v2594 = vpop.f32.mrf.mxu0
    %v2595 = vadd.f32 %v1928, %v2594
    %v2596 = vpop.f32.mrf.mxu0
    %2597 = vmatprep.mubr.f32.mxu0 0.0
    %2598 = vmatmul.mubr.f32.gmra.mxu0 %v279
    %v2599 = vpop.f32.mrf.mxu0
    %v2600 = vadd.f32 %v1929, %v2599
    %v2601 = vpop.f32.mrf.mxu0
    %2602 = vmatprep.mubr.f32.mxu0 0.0
    %2603 = vmatmul.mubr.f32.gmra.mxu0 %v280
    %v2604 = vpop.f32.mrf.mxu0
    %v2605 = vadd.f32 %v1930, %v2604
    %v2606 = vpop.f32.mrf.mxu0
    %2607 = vmatprep.mubr.f32.mxu0 0.0
    %2608 = vmatmul.mubr.f32.gmra.mxu0 %v281
    %v2609 = vpop.f32.mrf.mxu0
    %v2610 = vadd.f32 %v1931, %v2609
    %v2611 = vpop.f32.mrf.mxu0
    %2612 = vmatprep.mubr.f32.mxu0 0.0
    %2613 = vmatmul.mubr.f32.gmra.mxu0 %v282
    %v2614 = vpop.f32.mrf.mxu0
    %v2615 = vadd.f32 %v1932, %v2614
    %v2616 = vpop.f32.mrf.mxu0
    %2617 = vmatprep.mubr.f32.mxu0 0.0
    %2618 = vmatmul.mubr.f32.gmra.mxu0 %v283
    %v2619 = vpop.f32.mrf.mxu0
    %v2620 = vadd.f32 %v1933, %v2619
    %v2621 = vpop.f32.mrf.mxu0
    %2622 = vmatprep.mubr.f32.mxu0 0.0
    %2623 = vmatmul.mubr.f32.gmra.mxu0 %v284
    %v2624 = vpop.f32.mrf.mxu0
    %v2625 = vadd.f32 %v1934, %v2624
    %v2626 = vpop.f32.mrf.mxu0
    %2627 = vmatprep.mubr.f32.mxu0 0.0
    %2628 = vmatmul.mubr.f32.gmra.mxu0 %v285
    %v2629 = vpop.f32.mrf.mxu0
    %v2630 = vadd.f32 %v1935, %v2629
    %v2631 = vpop.f32.mrf.mxu0
    %2632 = vmatprep.mubr.f32.mxu0 0.0
    %2633 = vmatmul.mubr.f32.gmra.mxu0 %v286
    %v2634 = vpop.f32.mrf.mxu0
    %v2635 = vadd.f32 %v1936, %v2634
    %v2636 = vpop.f32.mrf.mxu0
    %2637 = vmatprep.mubr.f32.mxu0 0.0
    %2638 = vmatmul.mubr.f32.gmra.mxu0 %v287
    %v2639 = vpop.f32.mrf.mxu0
    %v2640 = vadd.f32 %v1937, %v2639
    %v2641 = vpop.f32.mrf.mxu0
    %2642 = vmatprep.mubr.f32.mxu0 0.0
    %2643 = vmatmul.mubr.f32.gmra.mxu0 %v288
    %v2644 = vpop.f32.mrf.mxu0
    %v2645 = vadd.f32 %v1938, %v2644
    %v2646 = vpop.f32.mrf.mxu0
    %2647 = vmatprep.mubr.f32.mxu0 0.0
    %2648 = vmatmul.mubr.f32.gmra.mxu0 %v289
    %v2649 = vpop.f32.mrf.mxu0
    %v2650 = vadd.f32 %v1939, %v2649
    %v2651 = vpop.f32.mrf.mxu0
    %2652 = vmatprep.mubr.f32.mxu0 0.0
    %2653 = vmatmul.mubr.f32.gmra.mxu0 %v290
    %v2654 = vpop.f32.mrf.mxu0
    %v2655 = vadd.f32 %v1940, %v2654
    %v2656 = vpop.f32.mrf.mxu0
    %2657 = vmatprep.mubr.f32.mxu0 0.0
    %2658 = vmatmul.mubr.f32.gmra.mxu0 %v291
    %v2659 = vpop.f32.mrf.mxu0
    %v2660 = vadd.f32 %v1941, %v2659
    %v2661 = vpop.f32.mrf.mxu0
    %2662 = vmatprep.mubr.f32.mxu0 0.0
    %2663 = vmatmul.mubr.f32.gmra.mxu0 %v292
    %v2664 = vpop.f32.mrf.mxu0
    %v2665 = vadd.f32 %v1942, %v2664
    %v2666 = vpop.f32.mrf.mxu0
    %2667 = vdwg.mxu0
    %2668 = vmatprep.subr.mxu0 0.0
    %2669 = vmatpush1.msra.mxu0 %v2665
    %2670 = vmatprep.subr.mxu0 0.0
    %2671 = vmatpush1.msra.mxu0 %v2660
    %2672 = vmatprep.subr.mxu0 0.0
    %2673 = vmatpush1.msra.mxu0 %v2655
    %2674 = vmatprep.subr.mxu0 0.0
    %2675 = vmatpush1.msra.mxu0 %v2650
    %2676 = vmatprep.subr.mxu0 0.0
    %2677 = vmatpush1.msra.mxu0 %v2645
    %2678 = vmatprep.subr.mxu0 0.0
    %2679 = vmatpush1.msra.mxu0 %v2640
    %2680 = vmatprep.subr.mxu0 0.0
    %2681 = vmatpush1.msra.mxu0 %v2635
    %2682 = vmatprep.subr.mxu0 0.0
    %2683 = vmatpush1.msra.mxu0 %v2630
    %2684 = vmatprep.subr.mxu0 0.0
    %2685 = vmatpush1.msra.mxu0 %v2625
    %2686 = vmatprep.subr.mxu0 0.0
    %2687 = vmatpush1.msra.mxu0 %v2620
    %2688 = vmatprep.subr.mxu0 0.0
    %2689 = vmatpush1.msra.mxu0 %v2615
    %2690 = vmatprep.subr.mxu0 0.0
    %2691 = vmatpush1.msra.mxu0 %v2610
    %2692 = vmatprep.subr.mxu0 0.0
    %2693 = vmatpush1.msra.mxu0 %v2605
    %2694 = vmatprep.subr.mxu0 0.0
    %2695 = vmatpush1.msra.mxu0 %v2600
    %2696 = vmatprep.subr.mxu0 0.0
    %2697 = vmatpush1.msra.mxu0 %v2595
    %2698 = vmatprep.subr.mxu0 0.0
    %2699 = vmatpush1.msra.mxu0 %v2590
    %2700 = vmatprep.subr.mxu0 0.0
    %2701 = vmatpush2.msra.mxu0 0.0
    %2702 = vmatprep.subr.mxu0 0.0
    %2703 = vmatpush2.msra.mxu0 0.0
    %2704 = vmatprep.subr.mxu0 0.0
    %2705 = vmatpush2.msra.mxu0 0.0
    %2706 = vmatprep.subr.mxu0 0.0
    %2707 = vmatpush2.msra.mxu0 0.0
    %2708 = vmatprep.subr.mxu0 0.0
    %2709 = vmatpush2.msra.mxu0 0.0
    %2710 = vmatprep.subr.mxu0 0.0
    %2711 = vmatpush2.msra.mxu0 0.0
    %2712 = vmatprep.subr.mxu0 0.0
    %2713 = vmatpush2.msra.mxu0 0.0
    %2714 = vmatprep.subr.mxu0 0.0
    %2715 = vmatpush2.msra.mxu0 0.0
    %2716 = vmatprep.subr.mxu0 0.0
    %2717 = vmatpush2.msra.mxu0 0.0
    %2718 = vmatprep.subr.mxu0 0.0
    %2719 = vmatpush2.msra.mxu0 0.0
    %2720 = vmatprep.subr.mxu0 0.0
    %2721 = vmatpush2.msra.mxu0 0.0
    %2722 = vmatprep.subr.mxu0 0.0
    %2723 = vmatpush2.msra.mxu0 0.0
    %2724 = vmatprep.subr.mxu0 0.0
    %2725 = vmatpush2.msra.mxu0 0.0
    %2726 = vmatprep.subr.mxu0 0.0
    %2727 = vmatpush2.msra.mxu0 0.0
    %2728 = vmatprep.subr.mxu0 0.0
    %2729 = vmatpush2.msra.mxu0 0.0
    %2730 = vmatprep.subr.mxu0 0.0
    %2731 = vmatpush2.msra.mxu0 0.0
    %2732 = vmatprep.mubr.f32.mxu0 0.0
    %2733 = vmatmul.mubr.f32.gmra.mxu0 %v277
    %v2734 = vpop.f32.mrf.mxu0
    %v2735 = vadd.f32 %v1927, %v2734
    %v2736 = vpop.f32.mrf.mxu0
    %2737 = vmatprep.mubr.f32.mxu0 0.0
    %2738 = vmatmul.mubr.f32.gmra.mxu0 %v278
    %v2739 = vpop.f32.mrf.mxu0
    %v2740 = vadd.f32 %v1928, %v2739
    %v2741 = vpop.f32.mrf.mxu0
    %2742 = vmatprep.mubr.f32.mxu0 0.0
    %2743 = vmatmul.mubr.f32.gmra.mxu0 %v279
    %v2744 = vpop.f32.mrf.mxu0
    %v2745 = vadd.f32 %v1929, %v2744
    %v2746 = vpop.f32.mrf.mxu0
    %2747 = vmatprep.mubr.f32.mxu0 0.0
    %2748 = vmatmul.mubr.f32.gmra.mxu0 %v280
    %v2749 = vpop.f32.mrf.mxu0
    %v2750 = vadd.f32 %v1930, %v2749
    %v2751 = vpop.f32.mrf.mxu0
    %2752 = vmatprep.mubr.f32.mxu0 0.0
    %2753 = vmatmul.mubr.f32.gmra.mxu0 %v281
    %v2754 = vpop.f32.mrf.mxu0
    %v2755 = vadd.f32 %v1931, %v2754
    %v2756 = vpop.f32.mrf.mxu0
    %2757 = vmatprep.mubr.f32.mxu0 0.0
    %2758 = vmatmul.mubr.f32.gmra.mxu0 %v282
    %v2759 = vpop.f32.mrf.mxu0
    %v2760 = vadd.f32 %v1932, %v2759
    %v2761 = vpop.f32.mrf.mxu0
    %2762 = vmatprep.mubr.f32.mxu0 0.0
    %2763 = vmatmul.mubr.f32.gmra.mxu0 %v283
    %v2764 = vpop.f32.mrf.mxu0
    %v2765 = vadd.f32 %v1933, %v2764
    %v2766 = vpop.f32.mrf.mxu0
    %2767 = vmatprep.mubr.f32.mxu0 0.0
    %2768 = vmatmul.mubr.f32.gmra.mxu0 %v284
    %v2769 = vpop.f32.mrf.mxu0
    %v2770 = vadd.f32 %v1934, %v2769
    %v2771 = vpop.f32.mrf.mxu0
    %2772 = vmatprep.mubr.f32.mxu0 0.0
    %2773 = vmatmul.mubr.f32.gmra.mxu0 %v285
    %v2774 = vpop.f32.mrf.mxu0
    %v2775 = vadd.f32 %v1935, %v2774
    %v2776 = vpop.f32.mrf.mxu0
    %2777 = vmatprep.mubr.f32.mxu0 0.0
    %2778 = vmatmul.mubr.f32.gmra.mxu0 %v286
    %v2779 = vpop.f32.mrf.mxu0
    %v2780 = vadd.f32 %v1936, %v2779
    %v2781 = vpop.f32.mrf.mxu0
    %2782 = vmatprep.mubr.f32.mxu0 0.0
    %2783 = vmatmul.mubr.f32.gmra.mxu0 %v287
    %v2784 = vpop.f32.mrf.mxu0
    %v2785 = vadd.f32 %v1937, %v2784
    %v2786 = vpop.f32.mrf.mxu0
    %2787 = vmatprep.mubr.f32.mxu0 0.0
    %2788 = vmatmul.mubr.f32.gmra.mxu0 %v288
    %v2789 = vpop.f32.mrf.mxu0
    %v2790 = vadd.f32 %v1938, %v2789
    %v2791 = vpop.f32.mrf.mxu0
    %2792 = vmatprep.mubr.f32.mxu0 0.0
    %2793 = vmatmul.mubr.f32.gmra.mxu0 %v289
    %v2794 = vpop.f32.mrf.mxu0
    %v2795 = vadd.f32 %v1939, %v2794
    %v2796 = vpop.f32.mrf.mxu0
    %2797 = vmatprep.mubr.f32.mxu0 0.0
    %2798 = vmatmul.mubr.f32.gmra.mxu0 %v290
    %v2799 = vpop.f32.mrf.mxu0
    %v2800 = vadd.f32 %v1940, %v2799
    %v2801 = vpop.f32.mrf.mxu0
    %2802 = vmatprep.mubr.f32.mxu0 0.0
    %2803 = vmatmul.mubr.f32.gmra.mxu0 %v291
    %v2804 = vpop.f32.mrf.mxu0
    %v2805 = vadd.f32 %v1941, %v2804
    %v2806 = vpop.f32.mrf.mxu0
    %2807 = vmatprep.mubr.f32.mxu0 0.0
    %2808 = vmatmul.mubr.f32.gmra.mxu0 %v292
    %v2809 = vpop.f32.mrf.mxu0
    %v2810 = vadd.f32 %v1942, %v2809
    %v2811 = vpop.f32.mrf.mxu0
    %2812 = vdwg.mxu0
    %2813 = vmatprep.subr.mxu0 0.0
    %2814 = vmatpush1.msra.mxu0 %v2810
    %2815 = vmatprep.subr.mxu0 0.0
    %2816 = vmatpush1.msra.mxu0 %v2805
    %2817 = vmatprep.subr.mxu0 0.0
    %2818 = vmatpush1.msra.mxu0 %v2800
    %2819 = vmatprep.subr.mxu0 0.0
    %2820 = vmatpush1.msra.mxu0 %v2795
    %2821 = vmatprep.subr.mxu0 0.0
    %2822 = vmatpush1.msra.mxu0 %v2790
    %2823 = vmatprep.subr.mxu0 0.0
    %2824 = vmatpush1.msra.mxu0 %v2785
    %2825 = vmatprep.subr.mxu0 0.0
    %2826 = vmatpush1.msra.mxu0 %v2780
    %2827 = vmatprep.subr.mxu0 0.0
    %2828 = vmatpush1.msra.mxu0 %v2775
    %2829 = vmatprep.subr.mxu0 0.0
    %2830 = vmatpush1.msra.mxu0 %v2770
    %2831 = vmatprep.subr.mxu0 0.0
    %2832 = vmatpush1.msra.mxu0 %v2765
    %2833 = vmatprep.subr.mxu0 0.0
    %2834 = vmatpush1.msra.mxu0 %v2760
    %2835 = vmatprep.subr.mxu0 0.0
    %2836 = vmatpush1.msra.mxu0 %v2755
    %2837 = vmatprep.subr.mxu0 0.0
    %2838 = vmatpush1.msra.mxu0 %v2750
    %2839 = vmatprep.subr.mxu0 0.0
    %2840 = vmatpush1.msra.mxu0 %v2745
    %2841 = vmatprep.subr.mxu0 0.0
    %2842 = vmatpush1.msra.mxu0 %v2740
    %2843 = vmatprep.subr.mxu0 0.0
    %2844 = vmatpush1.msra.mxu0 %v2735
    %2845 = vmatprep.subr.mxu0 0.0
    %2846 = vmatpush2.msra.mxu0 0.0
    %2847 = vmatprep.subr.mxu0 0.0
    %2848 = vmatpush2.msra.mxu0 0.0
    %2849 = vmatprep.subr.mxu0 0.0
    %2850 = vmatpush2.msra.mxu0 0.0
    %2851 = vmatprep.subr.mxu0 0.0
    %2852 = vmatpush2.msra.mxu0 0.0
    %2853 = vmatprep.subr.mxu0 0.0
    %2854 = vmatpush2.msra.mxu0 0.0
    %2855 = vmatprep.subr.mxu0 0.0
    %2856 = vmatpush2.msra.mxu0 0.0
    %2857 = vmatprep.subr.mxu0 0.0
    %2858 = vmatpush2.msra.mxu0 0.0
    %2859 = vmatprep.subr.mxu0 0.0
    %2860 = vmatpush2.msra.mxu0 0.0
    %2861 = vmatprep.subr.mxu0 0.0
    %2862 = vmatpush2.msra.mxu0 0.0
    %2863 = vmatprep.subr.mxu0 0.0
    %2864 = vmatpush2.msra.mxu0 0.0
    %2865 = vmatprep.subr.mxu0 0.0
    %2866 = vmatpush2.msra.mxu0 0.0
    %2867 = vmatprep.subr.mxu0 0.0
    %2868 = vmatpush2.msra.mxu0 0.0
    %2869 = vmatprep.subr.mxu0 0.0
    %2870 = vmatpush2.msra.mxu0 0.0
    %2871 = vmatprep.subr.mxu0 0.0
    %2872 = vmatpush2.msra.mxu0 0.0
    %2873 = vmatprep.subr.mxu0 0.0
    %2874 = vmatpush2.msra.mxu0 0.0
    %2875 = vmatprep.subr.mxu0 0.0
    %2876 = vmatpush2.msra.mxu0 0.0
    %2877 = vmatprep.mubr.f32.mxu0 0.0
    %2878 = vmatmul.mubr.f32.gmra.mxu0 %v277
    %v2879 = vpop.f32.mrf.mxu0
    %v2880 = vadd.f32 %v1927, %v2879
    %v2881 = vpop.f32.mrf.mxu0
    %2882 = vmatprep.mubr.f32.mxu0 0.0
    %2883 = vmatmul.mubr.f32.gmra.mxu0 %v278
    %v2884 = vpop.f32.mrf.mxu0
    %v2885 = vadd.f32 %v1928, %v2884
    %v2886 = vpop.f32.mrf.mxu0
    %2887 = vmatprep.mubr.f32.mxu0 0.0
    %2888 = vmatmul.mubr.f32.gmra.mxu0 %v279
    %v2889 = vpop.f32.mrf.mxu0
    %v2890 = vadd.f32 %v1929, %v2889
    %v2891 = vpop.f32.mrf.mxu0
    %2892 = vmatprep.mubr.f32.mxu0 0.0
    %2893 = vmatmul.mubr.f32.gmra.mxu0 %v280
    %v2894 = vpop.f32.mrf.mxu0
    %v2895 = vadd.f32 %v1930, %v2894
    %v2896 = vpop.f32.mrf.mxu0
    %2897 = vmatprep.mubr.f32.mxu0 0.0
    %2898 = vmatmul.mubr.f32.gmra.mxu0 %v281
    %v2899 = vpop.f32.mrf.mxu0
    %v2900 = vadd.f32 %v1931, %v2899
    %v2901 = vpop.f32.mrf.mxu0
    %2902 = vmatprep.mubr.f32.mxu0 0.0
    %2903 = vmatmul.mubr.f32.gmra.mxu0 %v282
    %v2904 = vpop.f32.mrf.mxu0
    %v2905 = vadd.f32 %v1932, %v2904
    %v2906 = vpop.f32.mrf.mxu0
    %2907 = vmatprep.mubr.f32.mxu0 0.0
    %2908 = vmatmul.mubr.f32.gmra.mxu0 %v283
    %v2909 = vpop.f32.mrf.mxu0
    %v2910 = vadd.f32 %v1933, %v2909
    %v2911 = vpop.f32.mrf.mxu0
    %2912 = vmatprep.mubr.f32.mxu0 0.0
    %2913 = vmatmul.mubr.f32.gmra.mxu0 %v284
    %v2914 = vpop.f32.mrf.mxu0
    %v2915 = vadd.f32 %v1934, %v2914
    %v2916 = vpop.f32.mrf.mxu0
    %2917 = vmatprep.mubr.f32.mxu0 0.0
    %2918 = vmatmul.mubr.f32.gmra.mxu0 %v285
    %v2919 = vpop.f32.mrf.mxu0
    %v2920 = vadd.f32 %v1935, %v2919
    %v2921 = vpop.f32.mrf.mxu0
    %2922 = vmatprep.mubr.f32.mxu0 0.0
    %2923 = vmatmul.mubr.f32.gmra.mxu0 %v286
    %v2924 = vpop.f32.mrf.mxu0
    %v2925 = vadd.f32 %v1936, %v2924
    %v2926 = vpop.f32.mrf.mxu0
    %2927 = vmatprep.mubr.f32.mxu0 0.0
    %2928 = vmatmul.mubr.f32.gmra.mxu0 %v287
    %v2929 = vpop.f32.mrf.mxu0
    %v2930 = vadd.f32 %v1937, %v2929
    %v2931 = vpop.f32.mrf.mxu0
    %2932 = vmatprep.mubr.f32.mxu0 0.0
    %2933 = vmatmul.mubr.f32.gmra.mxu0 %v288
    %v2934 = vpop.f32.mrf.mxu0
    %v2935 = vadd.f32 %v1938, %v2934
    %v2936 = vpop.f32.mrf.mxu0
    %2937 = vmatprep.mubr.f32.mxu0 0.0
    %2938 = vmatmul.mubr.f32.gmra.mxu0 %v289
    %v2939 = vpop.f32.mrf.mxu0
    %v2940 = vadd.f32 %v1939, %v2939
    %v2941 = vpop.f32.mrf.mxu0
    %2942 = vmatprep.mubr.f32.mxu0 0.0
    %2943 = vmatmul.mubr.f32.gmra.mxu0 %v290
    %v2944 = vpop.f32.mrf.mxu0
    %v2945 = vadd.f32 %v1940, %v2944
    %v2946 = vpop.f32.mrf.mxu0
    %2947 = vmatprep.mubr.f32.mxu0 0.0
    %2948 = vmatmul.mubr.f32.gmra.mxu0 %v291
    %v2949 = vpop.f32.mrf.mxu0
    %v2950 = vadd.f32 %v1941, %v2949
    %v2951 = vpop.f32.mrf.mxu0
    %2952 = vmatprep.mubr.f32.mxu0 0.0
    %2953 = vmatmul.mubr.f32.gmra.mxu0 %v292
    %v2954 = vpop.f32.mrf.mxu0
    %v2955 = vadd.f32 %v1942, %v2954
    %v2956 = vpop.f32.mrf.mxu0
    %2957 = vdwg.mxu0
    %2958 = vmatprep.subr.mxu0 0.0
    %2959 = vmatpush1.msra.mxu0 %v2955
    %2960 = vmatprep.subr.mxu0 0.0
    %2961 = vmatpush1.msra.mxu0 %v2950
    %2962 = vmatprep.subr.mxu0 0.0
    %2963 = vmatpush1.msra.mxu0 %v2945
    %2964 = vmatprep.subr.mxu0 0.0
    %2965 = vmatpush1.msra.mxu0 %v2940
    %2966 = vmatprep.subr.mxu0 0.0
    %2967 = vmatpush1.msra.mxu0 %v2935
    %2968 = vmatprep.subr.mxu0 0.0
    %2969 = vmatpush1.msra.mxu0 %v2930
    %2970 = vmatprep.subr.mxu0 0.0
    %2971 = vmatpush1.msra.mxu0 %v2925
    %2972 = vmatprep.subr.mxu0 0.0
    %2973 = vmatpush1.msra.mxu0 %v2920
    %2974 = vmatprep.subr.mxu0 0.0
    %2975 = vmatpush1.msra.mxu0 %v2915
    %2976 = vmatprep.subr.mxu0 0.0
    %2977 = vmatpush1.msra.mxu0 %v2910
    %2978 = vmatprep.subr.mxu0 0.0
    %2979 = vmatpush1.msra.mxu0 %v2905
    %2980 = vmatprep.subr.mxu0 0.0
    %2981 = vmatpush1.msra.mxu0 %v2900
    %2982 = vmatprep.subr.mxu0 0.0
    %2983 = vmatpush1.msra.mxu0 %v2895
    %2984 = vmatprep.subr.mxu0 0.0
    %2985 = vmatpush1.msra.mxu0 %v2890
    %2986 = vmatprep.subr.mxu0 0.0
    %2987 = vmatpush1.msra.mxu0 %v2885
    %2988 = vmatprep.subr.mxu0 0.0
    %2989 = vmatpush1.msra.mxu0 %v2880
    %2990 = vmatprep.subr.mxu0 0.0
    %2991 = vmatpush2.msra.mxu0 0.0
    %2992 = vmatprep.subr.mxu0 0.0
    %2993 = vmatpush2.msra.mxu0 0.0
    %2994 = vmatprep.subr.mxu0 0.0
    %2995 = vmatpush2.msra.mxu0 0.0
    %2996 = vmatprep.subr.mxu0 0.0
    %2997 = vmatpush2.msra.mxu0 0.0
    %2998 = vmatprep.subr.mxu0 0.0
    %2999 = vmatpush2.msra.mxu0 0.0
    %3000 = vmatprep.subr.mxu0 0.0
    %3001 = vmatpush2.msra.mxu0 0.0
    %3002 = vmatprep.subr.mxu0 0.0
    %3003 = vmatpush2.msra.mxu0 0.0
    %3004 = vmatprep.subr.mxu0 0.0
    %3005 = vmatpush2.msra.mxu0 0.0
    %3006 = vmatprep.subr.mxu0 0.0
    %3007 = vmatpush2.msra.mxu0 0.0
    %3008 = vmatprep.subr.mxu0 0.0
    %3009 = vmatpush2.msra.mxu0 0.0
    %3010 = vmatprep.subr.mxu0 0.0
    %3011 = vmatpush2.msra.mxu0 0.0
    %3012 = vmatprep.subr.mxu0 0.0
    %3013 = vmatpush2.msra.mxu0 0.0
    %3014 = vmatprep.subr.mxu0 0.0
    %3015 = vmatpush2.msra.mxu0 0.0
    %3016 = vmatprep.subr.mxu0 0.0
    %3017 = vmatpush2.msra.mxu0 0.0
    %3018 = vmatprep.subr.mxu0 0.0
    %3019 = vmatpush2.msra.mxu0 0.0
    %3020 = vmatprep.subr.mxu0 0.0
    %3021 = vmatpush2.msra.mxu0 0.0
    %3022 = vmatprep.mubr.f32.mxu0 0.0
    %3023 = vmatmul.mubr.f32.gmra.mxu0 %v277
    %v3024 = vpop.f32.mrf.mxu0
    %v3025 = vadd.f32 %v1927, %v3024
    %v3026 = vpop.f32.mrf.mxu0
    %3027 = vmatprep.mubr.f32.mxu0 0.0
    %3028 = vmatmul.mubr.f32.gmra.mxu0 %v278
    %v3029 = vpop.f32.mrf.mxu0
    %v3030 = vadd.f32 %v1928, %v3029
    %v3031 = vpop.f32.mrf.mxu0
    %3032 = vmatprep.mubr.f32.mxu0 0.0
    %3033 = vmatmul.mubr.f32.gmra.mxu0 %v279
    %v3034 = vpop.f32.mrf.mxu0
    %v3035 = vadd.f32 %v1929, %v3034
    %v3036 = vpop.f32.mrf.mxu0
    %3037 = vmatprep.mubr.f32.mxu0 0.0
    %3038 = vmatmul.mubr.f32.gmra.mxu0 %v280
    %v3039 = vpop.f32.mrf.mxu0
    %v3040 = vadd.f32 %v1930, %v3039
    %v3041 = vpop.f32.mrf.mxu0
    %3042 = vmatprep.mubr.f32.mxu0 0.0
    %3043 = vmatmul.mubr.f32.gmra.mxu0 %v281
    %v3044 = vpop.f32.mrf.mxu0
    %v3045 = vadd.f32 %v1931, %v3044
    %v3046 = vpop.f32.mrf.mxu0
    %3047 = vmatprep.mubr.f32.mxu0 0.0
    %3048 = vmatmul.mubr.f32.gmra.mxu0 %v282
    %v3049 = vpop.f32.mrf.mxu0
    %v3050 = vadd.f32 %v1932, %v3049
    %v3051 = vpop.f32.mrf.mxu0
    %3052 = vmatprep.mubr.f32.mxu0 0.0
    %3053 = vmatmul.mubr.f32.gmra.mxu0 %v283
    %v3054 = vpop.f32.mrf.mxu0
    %v3055 = vadd.f32 %v1933, %v3054
    %v3056 = vpop.f32.mrf.mxu0
    %3057 = vmatprep.mubr.f32.mxu0 0.0
    %3058 = vmatmul.mubr.f32.gmra.mxu0 %v284
    %v3059 = vpop.f32.mrf.mxu0
    %v3060 = vadd.f32 %v1934, %v3059
    %v3061 = vpop.f32.mrf.mxu0
    %3062 = vmatprep.mubr.f32.mxu0 0.0
    %3063 = vmatmul.mubr.f32.gmra.mxu0 %v285
    %v3064 = vpop.f32.mrf.mxu0
    %v3065 = vadd.f32 %v1935, %v3064
    %v3066 = vpop.f32.mrf.mxu0
    %3067 = vmatprep.mubr.f32.mxu0 0.0
    %3068 = vmatmul.mubr.f32.gmra.mxu0 %v286
    %v3069 = vpop.f32.mrf.mxu0
    %v3070 = vadd.f32 %v1936, %v3069
    %v3071 = vpop.f32.mrf.mxu0
    %3072 = vmatprep.mubr.f32.mxu0 0.0
    %3073 = vmatmul.mubr.f32.gmra.mxu0 %v287
    %v3074 = vpop.f32.mrf.mxu0
    %v3075 = vadd.f32 %v1937, %v3074
    %v3076 = vpop.f32.mrf.mxu0
    %3077 = vmatprep.mubr.f32.mxu0 0.0
    %3078 = vmatmul.mubr.f32.gmra.mxu0 %v288
    %v3079 = vpop.f32.mrf.mxu0
    %v3080 = vadd.f32 %v1938, %v3079
    %v3081 = vpop.f32.mrf.mxu0
    %3082 = vmatprep.mubr.f32.mxu0 0.0
    %3083 = vmatmul.mubr.f32.gmra.mxu0 %v289
    %v3084 = vpop.f32.mrf.mxu0
    %v3085 = vadd.f32 %v1939, %v3084
    %v3086 = vpop.f32.mrf.mxu0
    %3087 = vmatprep.mubr.f32.mxu0 0.0
    %3088 = vmatmul.mubr.f32.gmra.mxu0 %v290
    %v3089 = vpop.f32.mrf.mxu0
    %v3090 = vadd.f32 %v1940, %v3089
    %v3091 = vpop.f32.mrf.mxu0
    %3092 = vmatprep.mubr.f32.mxu0 0.0
    %3093 = vmatmul.mubr.f32.gmra.mxu0 %v291
    %v3094 = vpop.f32.mrf.mxu0
    %v3095 = vadd.f32 %v1941, %v3094
    %v3096 = vpop.f32.mrf.mxu0
    %3097 = vmatprep.mubr.f32.mxu0 0.0
    %3098 = vmatmul.mubr.f32.gmra.mxu0 %v292
    %v3099 = vpop.f32.mrf.mxu0
    %v3100 = vadd.f32 %v1942, %v3099
    %v3101 = vpop.f32.mrf.mxu0
    %3102 = vdwg.mxu0
    %3103 = vmatprep.subr.mxu0 0.0
    %3104 = vmatpush1.msra.mxu0 %v3100
    %3105 = vmatprep.subr.mxu0 0.0
    %3106 = vmatpush1.msra.mxu0 %v3095
    %3107 = vmatprep.subr.mxu0 0.0
    %3108 = vmatpush1.msra.mxu0 %v3090
    %3109 = vmatprep.subr.mxu0 0.0
    %3110 = vmatpush1.msra.mxu0 %v3085
    %3111 = vmatprep.subr.mxu0 0.0
    %3112 = vmatpush1.msra.mxu0 %v3080
    %3113 = vmatprep.subr.mxu0 0.0
    %3114 = vmatpush1.msra.mxu0 %v3075
    %3115 = vmatprep.subr.mxu0 0.0
    %3116 = vmatpush1.msra.mxu0 %v3070
    %3117 = vmatprep.subr.mxu0 0.0
    %3118 = vmatpush1.msra.mxu0 %v3065
    %3119 = vmatprep.subr.mxu0 0.0
    %3120 = vmatpush1.msra.mxu0 %v3060
    %3121 = vmatprep.subr.mxu0 0.0
    %3122 = vmatpush1.msra.mxu0 %v3055
    %3123 = vmatprep.subr.mxu0 0.0
    %3124 = vmatpush1.msra.mxu0 %v3050
    %3125 = vmatprep.subr.mxu0 0.0
    %3126 = vmatpush1.msra.mxu0 %v3045
    %3127 = vmatprep.subr.mxu0 0.0
    %3128 = vmatpush1.msra.mxu0 %v3040
    %3129 = vmatprep.subr.mxu0 0.0
    %3130 = vmatpush1.msra.mxu0 %v3035
    %3131 = vmatprep.subr.mxu0 0.0
    %3132 = vmatpush1.msra.mxu0 %v3030
    %3133 = vmatprep.subr.mxu0 0.0
    %3134 = vmatpush1.msra.mxu0 %v3025
    %3135 = vmatprep.subr.mxu0 0.0
    %3136 = vmatpush2.msra.mxu0 0.0
    %3137 = vmatprep.subr.mxu0 0.0
    %3138 = vmatpush2.msra.mxu0 0.0
    %3139 = vmatprep.subr.mxu0 0.0
    %3140 = vmatpush2.msra.mxu0 0.0
    %3141 = vmatprep.subr.mxu0 0.0
    %3142 = vmatpush2.msra.mxu0 0.0
    %3143 = vmatprep.subr.mxu0 0.0
    %3144 = vmatpush2.msra.mxu0 0.0
    %3145 = vmatprep.subr.mxu0 0.0
    %3146 = vmatpush2.msra.mxu0 0.0
    %3147 = vmatprep.subr.mxu0 0.0
    %3148 = vmatpush2.msra.mxu0 0.0
    %3149 = vmatprep.subr.mxu0 0.0
    %3150 = vmatpush2.msra.mxu0 0.0
    %3151 = vmatprep.subr.mxu0 0.0
    %3152 = vmatpush2.msra.mxu0 0.0
    %3153 = vmatprep.subr.mxu0 0.0
    %3154 = vmatpush2.msra.mxu0 0.0
    %3155 = vmatprep.subr.mxu0 0.0
    %3156 = vmatpush2.msra.mxu0 0.0
    %3157 = vmatprep.subr.mxu0 0.0
    %3158 = vmatpush2.msra.mxu0 0.0
    %3159 = vmatprep.subr.mxu0 0.0
    %3160 = vmatpush2.msra.mxu0 0.0
    %3161 = vmatprep.subr.mxu0 0.0
    %3162 = vmatpush2.msra.mxu0 0.0
    %3163 = vmatprep.subr.mxu0 0.0
    %3164 = vmatpush2.msra.mxu0 0.0
    %3165 = vmatprep.subr.mxu0 0.0
    %3166 = vmatpush2.msra.mxu0 0.0
    %3167 = vmatprep.mubr.f32.mxu0 0.0
    %3168 = vmatmul.mubr.f32.gmra.mxu0 %v277
    %v3169 = vpop.f32.mrf.mxu0
    %v3170 = vadd.f32 %v1927, %v3169
    %v3171 = vpop.f32.mrf.mxu0
    %3172 = vmatprep.mubr.f32.mxu0 0.0
    %3173 = vmatmul.mubr.f32.gmra.mxu0 %v278
    %v3174 = vpop.f32.mrf.mxu0
    %v3175 = vadd.f32 %v1928, %v3174
    %v3176 = vpop.f32.mrf.mxu0
    %3177 = vmatprep.mubr.f32.mxu0 0.0
    %3178 = vmatmul.mubr.f32.gmra.mxu0 %v279
    %v3179 = vpop.f32.mrf.mxu0
    %v3180 = vadd.f32 %v1929, %v3179
    %v3181 = vpop.f32.mrf.mxu0
    %3182 = vmatprep.mubr.f32.mxu0 0.0
    %3183 = vmatmul.mubr.f32.gmra.mxu0 %v280
    %v3184 = vpop.f32.mrf.mxu0
    %v3185 = vadd.f32 %v1930, %v3184
    %v3186 = vpop.f32.mrf.mxu0
    %3187 = vmatprep.mubr.f32.mxu0 0.0
    %3188 = vmatmul.mubr.f32.gmra.mxu0 %v281
    %v3189 = vpop.f32.mrf.mxu0
    %v3190 = vadd.f32 %v1931, %v3189
    %v3191 = vpop.f32.mrf.mxu0
    %3192 = vmatprep.mubr.f32.mxu0 0.0
    %3193 = vmatmul.mubr.f32.gmra.mxu0 %v282
    %v3194 = vpop.f32.mrf.mxu0
    %v3195 = vadd.f32 %v1932, %v3194
    %v3196 = vpop.f32.mrf.mxu0
    %3197 = vmatprep.mubr.f32.mxu0 0.0
    %3198 = vmatmul.mubr.f32.gmra.mxu0 %v283
    %v3199 = vpop.f32.mrf.mxu0
    %v3200 = vadd.f32 %v1933, %v3199
    %v3201 = vpop.f32.mrf.mxu0
    %3202 = vmatprep.mubr.f32.mxu0 0.0
    %3203 = vmatmul.mubr.f32.gmra.mxu0 %v284
    %v3204 = vpop.f32.mrf.mxu0
    %v3205 = vadd.f32 %v1934, %v3204
    %v3206 = vpop.f32.mrf.mxu0
    %3207 = vmatprep.mubr.f32.mxu0 0.0
    %3208 = vmatmul.mubr.f32.gmra.mxu0 %v285
    %v3209 = vpop.f32.mrf.mxu0
    %v3210 = vadd.f32 %v1935, %v3209
    %v3211 = vpop.f32.mrf.mxu0
    %3212 = vmatprep.mubr.f32.mxu0 0.0
    %3213 = vmatmul.mubr.f32.gmra.mxu0 %v286
    %v3214 = vpop.f32.mrf.mxu0
    %v3215 = vadd.f32 %v1936, %v3214
    %v3216 = vpop.f32.mrf.mxu0
    %3217 = vmatprep.mubr.f32.mxu0 0.0
    %3218 = vmatmul.mubr.f32.gmra.mxu0 %v287
    %v3219 = vpop.f32.mrf.mxu0
    %v3220 = vadd.f32 %v1937, %v3219
    %v3221 = vpop.f32.mrf.mxu0
    %3222 = vmatprep.mubr.f32.mxu0 0.0
    %3223 = vmatmul.mubr.f32.gmra.mxu0 %v288
    %v3224 = vpop.f32.mrf.mxu0
    %v3225 = vadd.f32 %v1938, %v3224
    %v3226 = vpop.f32.mrf.mxu0
    %3227 = vmatprep.mubr.f32.mxu0 0.0
    %3228 = vmatmul.mubr.f32.gmra.mxu0 %v289
    %v3229 = vpop.f32.mrf.mxu0
    %v3230 = vadd.f32 %v1939, %v3229
    %v3231 = vpop.f32.mrf.mxu0
    %3232 = vmatprep.mubr.f32.mxu0 0.0
    %3233 = vmatmul.mubr.f32.gmra.mxu0 %v290
    %v3234 = vpop.f32.mrf.mxu0
    %v3235 = vadd.f32 %v1940, %v3234
    %v3236 = vpop.f32.mrf.mxu0
    %3237 = vmatprep.mubr.f32.mxu0 0.0
    %3238 = vmatmul.mubr.f32.gmra.mxu0 %v291
    %v3239 = vpop.f32.mrf.mxu0
    %v3240 = vadd.f32 %v1941, %v3239
    %v3241 = vpop.f32.mrf.mxu0
    %3242 = vmatprep.mubr.f32.mxu0 0.0
    %3243 = vmatmul.mubr.f32.gmra.mxu0 %v292
    %v3244 = vpop.f32.mrf.mxu0
    %v3245 = vadd.f32 %v1942, %v3244
    %v3246 = vpop.f32.mrf.mxu0
    %3247 = vdwg.mxu0
    %3248 = vmatprep.subr.mxu0 0.0
    %3249 = vmatpush1.msra.mxu0 %v3245
    %3250 = vmatprep.subr.mxu0 0.0
    %3251 = vmatpush1.msra.mxu0 %v3240
    %3252 = vmatprep.subr.mxu0 0.0
    %3253 = vmatpush1.msra.mxu0 %v3235
    %3254 = vmatprep.subr.mxu0 0.0
    %3255 = vmatpush1.msra.mxu0 %v3230
    %3256 = vmatprep.subr.mxu0 0.0
    %3257 = vmatpush1.msra.mxu0 %v3225
    %3258 = vmatprep.subr.mxu0 0.0
    %3259 = vmatpush1.msra.mxu0 %v3220
    %3260 = vmatprep.subr.mxu0 0.0
    %3261 = vmatpush1.msra.mxu0 %v3215
    %3262 = vmatprep.subr.mxu0 0.0
    %3263 = vmatpush1.msra.mxu0 %v3210
    %3264 = vmatprep.subr.mxu0 0.0
    %3265 = vmatpush1.msra.mxu0 %v3205
    %3266 = vmatprep.subr.mxu0 0.0
    %3267 = vmatpush1.msra.mxu0 %v3200
    %3268 = vmatprep.subr.mxu0 0.0
    %3269 = vmatpush1.msra.mxu0 %v3195
    %3270 = vmatprep.subr.mxu0 0.0
    %3271 = vmatpush1.msra.mxu0 %v3190
    %3272 = vmatprep.subr.mxu0 0.0
    %3273 = vmatpush1.msra.mxu0 %v3185
    %3274 = vmatprep.subr.mxu0 0.0
    %3275 = vmatpush1.msra.mxu0 %v3180
    %3276 = vmatprep.subr.mxu0 0.0
    %3277 = vmatpush1.msra.mxu0 %v3175
    %3278 = vmatprep.subr.mxu0 0.0
    %3279 = vmatpush1.msra.mxu0 %v3170
    %3280 = vmatprep.subr.mxu0 0.0
    %3281 = vmatpush2.msra.mxu0 0.0
    %3282 = vmatprep.subr.mxu0 0.0
    %3283 = vmatpush2.msra.mxu0 0.0
    %3284 = vmatprep.subr.mxu0 0.0
    %3285 = vmatpush2.msra.mxu0 0.0
    %3286 = vmatprep.subr.mxu0 0.0
    %3287 = vmatpush2.msra.mxu0 0.0
    %3288 = vmatprep.subr.mxu0 0.0
    %3289 = vmatpush2.msra.mxu0 0.0
    %3290 = vmatprep.subr.mxu0 0.0
    %3291 = vmatpush2.msra.mxu0 0.0
    %3292 = vmatprep.subr.mxu0 0.0
    %3293 = vmatpush2.msra.mxu0 0.0
    %3294 = vmatprep.subr.mxu0 0.0
    %3295 = vmatpush2.msra.mxu0 0.0
    %3296 = vmatprep.subr.mxu0 0.0
    %3297 = vmatpush2.msra.mxu0 0.0
    %3298 = vmatprep.subr.mxu0 0.0
    %3299 = vmatpush2.msra.mxu0 0.0
    %3300 = vmatprep.subr.mxu0 0.0
    %3301 = vmatpush2.msra.mxu0 0.0
    %3302 = vmatprep.subr.mxu0 0.0
    %3303 = vmatpush2.msra.mxu0 0.0
    %3304 = vmatprep.subr.mxu0 0.0
    %3305 = vmatpush2.msra.mxu0 0.0
    %3306 = vmatprep.subr.mxu0 0.0
    %3307 = vmatpush2.msra.mxu0 0.0
    %3308 = vmatprep.subr.mxu0 0.0
    %3309 = vmatpush2.msra.mxu0 0.0
    %3310 = vmatprep.subr.mxu0 0.0
    %3311 = vmatpush2.msra.mxu0 0.0
    %3312 = vmatprep.mubr.f32.mxu0 0.0
    %3313 = vmatmul.mubr.f32.gmra.mxu0 %v277
    %v3314 = vpop.f32.mrf.mxu0
    %v3315 = vadd.f32 %v1927, %v3314
    %v3316 = vpop.f32.mrf.mxu0
    %3317 = vmatprep.mubr.f32.mxu0 0.0
    %3318 = vmatmul.mubr.f32.gmra.mxu0 %v278
    %v3319 = vpop.f32.mrf.mxu0
    %v3320 = vadd.f32 %v1928, %v3319
    %v3321 = vpop.f32.mrf.mxu0
    %3322 = vmatprep.mubr.f32.mxu0 0.0
    %3323 = vmatmul.mubr.f32.gmra.mxu0 %v279
    %v3324 = vpop.f32.mrf.mxu0
    %v3325 = vadd.f32 %v1929, %v3324
    %v3326 = vpop.f32.mrf.mxu0
    %3327 = vmatprep.mubr.f32.mxu0 0.0
    %3328 = vmatmul.mubr.f32.gmra.mxu0 %v280
    %v3329 = vpop.f32.mrf.mxu0
    %v3330 = vadd.f32 %v1930, %v3329
    %v3331 = vpop.f32.mrf.mxu0
    %3332 = vmatprep.mubr.f32.mxu0 0.0
    %3333 = vmatmul.mubr.f32.gmra.mxu0 %v281
    %v3334 = vpop.f32.mrf.mxu0
    %v3335 = vadd.f32 %v1931, %v3334
    %v3336 = vpop.f32.mrf.mxu0
    %3337 = vmatprep.mubr.f32.mxu0 0.0
    %3338 = vmatmul.mubr.f32.gmra.mxu0 %v282
    %v3339 = vpop.f32.mrf.mxu0
    %v3340 = vadd.f32 %v1932, %v3339
    %v3341 = vpop.f32.mrf.mxu0
    %3342 = vmatprep.mubr.f32.mxu0 0.0
    %3343 = vmatmul.mubr.f32.gmra.mxu0 %v283
    %v3344 = vpop.f32.mrf.mxu0
    %v3345 = vadd.f32 %v1933, %v3344
    %v3346 = vpop.f32.mrf.mxu0
    %3347 = vmatprep.mubr.f32.mxu0 0.0
    %3348 = vmatmul.mubr.f32.gmra.mxu0 %v284
    %v3349 = vpop.f32.mrf.mxu0
    %v3350 = vadd.f32 %v1934, %v3349
    %v3351 = vpop.f32.mrf.mxu0
    %3352 = vmatprep.mubr.f32.mxu0 0.0
    %3353 = vmatmul.mubr.f32.gmra.mxu0 %v285
    %v3354 = vpop.f32.mrf.mxu0
    %v3355 = vadd.f32 %v1935, %v3354
    %v3356 = vpop.f32.mrf.mxu0
    %3357 = vmatprep.mubr.f32.mxu0 0.0
    %3358 = vmatmul.mubr.f32.gmra.mxu0 %v286
    %v3359 = vpop.f32.mrf.mxu0
    %v3360 = vadd.f32 %v1936, %v3359
    %v3361 = vpop.f32.mrf.mxu0
    %3362 = vmatprep.mubr.f32.mxu0 0.0
    %3363 = vmatmul.mubr.f32.gmra.mxu0 %v287
    %v3364 = vpop.f32.mrf.mxu0
    %v3365 = vadd.f32 %v1937, %v3364
    %v3366 = vpop.f32.mrf.mxu0
    %3367 = vmatprep.mubr.f32.mxu0 0.0
    %3368 = vmatmul.mubr.f32.gmra.mxu0 %v288
    %v3369 = vpop.f32.mrf.mxu0
    %v3370 = vadd.f32 %v1938, %v3369
    %v3371 = vpop.f32.mrf.mxu0
    %3372 = vmatprep.mubr.f32.mxu0 0.0
    %3373 = vmatmul.mubr.f32.gmra.mxu0 %v289
    %v3374 = vpop.f32.mrf.mxu0
    %v3375 = vadd.f32 %v1939, %v3374
    %v3376 = vpop.f32.mrf.mxu0
    %3377 = vmatprep.mubr.f32.mxu0 0.0
    %3378 = vmatmul.mubr.f32.gmra.mxu0 %v290
    %v3379 = vpop.f32.mrf.mxu0
    %v3380 = vadd.f32 %v1940, %v3379
    %v3381 = vpop.f32.mrf.mxu0
    %3382 = vmatprep.mubr.f32.mxu0 0.0
    %3383 = vmatmul.mubr.f32.gmra.mxu0 %v291
    %v3384 = vpop.f32.mrf.mxu0
    %v3385 = vadd.f32 %v1941, %v3384
    %v3386 = vpop.f32.mrf.mxu0
    %3387 = vmatprep.mubr.f32.mxu0 0.0
    %3388 = vmatmul.mubr.f32.gmra.mxu0 %v292
    %v3389 = vpop.f32.mrf.mxu0
    %v3390 = vadd.f32 %v1942, %v3389
    %v3391 = vpop.f32.mrf.mxu0
    %3392 = vdwg.mxu0
    %3393 = vst [vmem:[#allocation10] sm:$0xff] %v3315
    %3394 = vst [vmem:[#allocation10 + $0x8] sm:$0xff] %v3320
    %3395 = vst [vmem:[#allocation10 + $0x10] sm:$0xff] %v3325
    %3396 = vst [vmem:[#allocation10 + $0x18] sm:$0xff] %v3330
    %3397 = vst [vmem:[#allocation10 + $0x20] sm:$0xff] %v3335
    %3398 = vst [vmem:[#allocation10 + $0x28] sm:$0xff] %v3340
    %3399 = vst [vmem:[#allocation10 + $0x30] sm:$0xff] %v3345
    %3400 = vst [vmem:[#allocation10 + $0x38] sm:$0xff] %v3350
    %3401 = vst [vmem:[#allocation10 + $0x40] sm:$0xff] %v3355
    %3402 = vst [vmem:[#allocation10 + $0x48] sm:$0xff] %v3360
    %3403 = vst [vmem:[#allocation10 + $0x50] sm:$0xff] %v3365
    %3404 = vst [vmem:[#allocation10 + $0x58] sm:$0xff] %v3370
    %3405 = vst [vmem:[#allocation10 + $0x60] sm:$0xff] %v3375
    %3406 = vst [vmem:[#allocation10 + $0x68] sm:$0xff] %v3380
    %3407 = vst [vmem:[#allocation10 + $0x70] sm:$0xff] %v3385
    %3408 = vst [vmem:[#allocation10 + $0x78] sm:$0xff] %v3390
    // Predicated region
    $region38: #{tpu_custom_call.1} parent=1 // pred_check
      _
    $region39: #{tpu_custom_call.1} parent=1 // pred_check_branch
      %3410 = sbr.rel (0) target = $region41
    $region40: #{tpu_custom_call.1} parent=1 // pred_region
      %s3412 = ssub.s32 2048, 2048
      %3413 = vsyncadd [#allocation6], %s3412
      %s3414 = sshll.u32 [#allocation10], 4
      %s3415 = int_to_ptr.vmem [resolvable:$true] %s3414
      %3420 = dma.vmem_to_hbm [thread:$0]  %s3415, 2048, %s6, [#allocation6], 128, 128, 8
    $region41: #{tpu_custom_call.1} parent=1 // pred_fallthru
      _
    // Predicated region
    $region42: #{tpu_custom_call.1} parent=1 // pred_check
      _
    $region43: #{tpu_custom_call.1} parent=1 // pred_check_branch
      %3422 = sbr.rel (0) target = $region45
    $region44: #{tpu_custom_call.1} parent=1 // pred_region
      %3423 = dma.done [#allocation6], 2048
    $region45: #{tpu_custom_call.1} parent=1 // pred_fallthru
      _
    %3424 = vsyncpa [#allocation5], 1
    %3425 = vsyncpa [#allocation8], 1
    %3426 = vsyncpa [#allocation6], 1
  %3427 = vsyncmov [#allocation3]
  %s3428 = vpop.sfrf %3427
  %p3429 = scmp.eq.s32.totalorder %s3428, 0
  %p3430 = pneg %p3429
  %3432 = shalt.err (%p3430)

</llo_original>
